<compile_context>
chip_gen: v6e
topology: v6e:2x2x1
jax: 0.10.0
libtpu: 0.0.40
codegen_flags: <defaults>
</compile_context>

<pallas_src>
import functools
import math

import jax
import jax.numpy as jnp
from jax.experimental import pallas as pl
from jax.experimental.pallas import tpu as pltpu


# ----------------------------- Pallas kernels ------------------------------

def _embed_ln_kernel(tok_ref, pos_ref, g_ref, b_ref, o_ref, *, B, eps):
    """Fused (token + position) add + LayerNorm(eps=1e-12)."""
    pos = pos_ref[...].astype(jnp.float32)                 # (S, D)
    pos_full = jnp.concatenate([pos] * B, axis=0)          # (B*S, D)
    x = tok_ref[...].astype(jnp.float32) + pos_full        # (B*S, D)
    mean = jnp.mean(x, axis=-1, keepdims=True)
    var = jnp.mean((x - mean) ** 2, axis=-1, keepdims=True)
    y = (x - mean) * jax.lax.rsqrt(var + eps)
    o_ref[...] = (y * g_ref[...] + b_ref[...]).astype(o_ref.dtype)


def _encoder_layer_kernel(x_ref, maskb_ref,
                          ln1g_ref, ln1b_ref,
                          wqk_ref, bqk_ref,
                          wo_ref, bo_ref,
                          ln2g_ref, ln2b_ref,
                          w1_ref, b1_ref,
                          w2_ref, b2_ref,
                          o_ref, *, B, S, H, hd, scale):
    """Entire TransformerEncoderLayer fused: all intermediates stay in VMEM."""
    D = H * hd
    x = x_ref[...].astype(jnp.float32)                     # (B*S, D)

    # ---- LayerNorm 1 (eps = 1e-5, PyTorch default) ----
    mean = jnp.mean(x, axis=-1, keepdims=True)
    var = jnp.mean((x - mean) ** 2, axis=-1, keepdims=True)
    xn = (x - mean) * jax.lax.rsqrt(var + 1e-5)
    xn = xn * ln1g_ref[...] + ln1b_ref[...]                # (B*S, D)

    # ---- fused Q/K projection: single MXU pass over xn ----
    qk = jnp.dot(xn, wqk_ref[...],
                 preferred_element_type=jnp.float32) + bqk_ref[...]   # (B*S, 2D)
    q_all = qk[:, :D]                                      # (B*S, H*hd)
    k_all = qk[:, D:]                                      # (B*S, H*hd)
    # v == q (reference reuses q_net for V) -> no extra projection, no extra DMA.

    # ---- multi-head attention, lane-dense layout, heads looped in-kernel ----
    mb = maskb_ref[...]                                    # (B, S) additive bias
    dn = (((1,), (1,)), ((), ()))                          # contract last dims: q @ k^T
    batch_rows = []
    for b in range(B):                                     # static loops (traced once)
        qb = q_all[b * S:(b + 1) * S, :]                   # (S, D)
        kb = k_all[b * S:(b + 1) * S, :]
        bias = mb[b:b + 1, :]                              # (1, S): padding-mask bias
        head_outs = []
        for h in range(H):
            qh = qb[:, h * hd:(h + 1) * hd]                # (S, hd)
            kh = kb[:, h * hd:(h + 1) * hd]
            s = jax.lax.dot_general(qh, kh, dn,
                                    preferred_element_type=jnp.float32) * scale
            s = s + bias                                   # broadcast over query rows
            s = s - jnp.max(s, axis=-1, keepdims=True)
            e = jnp.exp(s)
            p = e * pl.reciprocal(jnp.sum(e, axis=-1, keepdims=True), approx=True)
            head_outs.append(jnp.dot(p, qh,                # v = q
                                     preferred_element_type=jnp.float32))
        batch_rows.append(jnp.concatenate(head_outs, axis=-1))   # (S, D)
    attn = jnp.concatenate(batch_rows, axis=0)             # (B*S, D)

    # ---- output projection + residual on LN1 output ----
    attn = jnp.dot(attn, wo_ref[...],
                   preferred_element_type=jnp.float32) + bo_ref[...]
    x1 = xn + attn

    # ---- LayerNorm 2 ----
    mean2 = jnp.mean(x1, axis=-1, keepdims=True)
    var2 = jnp.mean((x1 - mean2) ** 2, axis=-1, keepdims=True)
    x2 = (x1 - mean2) * jax.lax.rsqrt(var2 + 1e-5)
    x2 = x2 * ln2g_ref[...] + ln2b_ref[...]

    # ---- feed-forward (exact erf GELU) + residual on LN2 output ----
    h1 = jnp.dot(x2, w1_ref[...],
                 preferred_element_type=jnp.float32) + b1_ref[...]
    h1 = 0.5 * h1 * (1.0 + jax.lax.erf(h1 / jnp.sqrt(jnp.float32(2.0))))
    ff = jnp.dot(h1, w2_ref[...],
                 preferred_element_type=jnp.float32) + b2_ref[...]
    o_ref[...] = (x2 + ff).astype(o_ref.dtype)


# ------------------------------ Pallas wrappers -----------------------------

def embed_ln(tok_flat, pos, gamma, beta, B, eps):
    """tok_flat: (B*S, D); pos: (S, D); gamma/beta: (1, D)."""
    M, D = tok_flat.shape
    return pl.pallas_call(
        functools.partial(_embed_ln_kernel, B=B, eps=eps),
        out_shape=jax.ShapeDtypeStruct((M, D), tok_flat.dtype),
    )(tok_flat, pos, gamma, beta)


def encoder_layer(p, x, mask_bias, scale, B, S, cfg):
    """One fused pallas_call for the whole encoder layer. x: (B*S, D)."""
    M, D = x.shape
    H = cfg.num_heads
    hd = D // H
    kernel = functools.partial(_encoder_layer_kernel,
                               B=B, S=S, H=H, hd=hd, scale=scale)
    return pl.pallas_call(
        kernel,
        out_shape=jax.ShapeDtypeStruct((M, D), x.dtype),
    )(x, mask_bias,
      p["ln1_g"], p["ln1_b"],
      p["wqk"], p["bqk"],
      p["wo"], p["bo"],
      p["ln2_g"], p["ln2_b"],
      p["w1"], p["b1"],
      p["w2"], p["b2"])


# --------------------------------- Model ------------------------------------

class Config:
    vocab_size = 100
    max_seq_length = 16
    embed_dim = 32
    num_heads = 4
    intermediate_dim = 64
    num_encoder_blocks = 2
    classification_head = False
    num_labels = 2


def init_params(key, cfg):
    D, H = cfg.embed_dim, cfg.num_heads
    hd = D // H
    I = cfg.intermediate_dim

    def nrm(k, shape, scale=0.02):
        return (scale * jax.random.normal(k, shape)).astype(jnp.float32)

    keys = iter(jax.random.split(key, 4 + 8 * cfg.num_encoder_blocks))
    params = {
        "token_emb": nrm(next(keys), (cfg.vocab_size, D)),
        "pos_emb": nrm(next(keys), (cfg.max_seq_length, D)),
        "emb_ln_g": jnp.ones((1, D), jnp.float32),
        "emb_ln_b": jnp.zeros((1, D), jnp.float32),
        "layers": [],
    }
    for _ in range(cfg.num_encoder_blocks):
        wq = nrm(next(keys), (D, H * hd))
        wk = nrm(next(keys), (D, H * hd))
        layer = {
            "ln1_g": jnp.ones((1, D), jnp.float32),
            "ln1_b": jnp.zeros((1, D), jnp.float32),
            "ln2_g": jnp.ones((1, D), jnp.float32),
            "ln2_b": jnp.zeros((1, D), jnp.float32),
            # q|k projections fused into one weight -> single MXU pass in-kernel.
            # (v_net exists in the reference module but is unused: v = q_net(x))
            "wqk": jnp.concatenate([wq, wk], axis=1),          # (D, 2D)
            "bqk": jnp.zeros((1, 2 * H * hd), jnp.float32),
            "wo": nrm(next(keys), (D, D)),
            "bo": jnp.zeros((1, D), jnp.float32),
            "w1": nrm(next(keys), (D, I)),
            "b1": jnp.zeros((1, I), jnp.float32),
            "w2": nrm(next(keys), (I, D)),
            "b2": jnp.zeros((1, D), jnp.float32),
        }
        params["layers"].append(layer)
    return params


def bert_forward(params, input_ids, cfg, attention_mask=None):
    B, S = input_ids.shape
    D = cfg.embed_dim

    # token gather in XLA (glue), then fused add+LayerNorm kernel (eps=1e-12)
    tok = params["token_emb"][input_ids].reshape(B * S, D)
    pos = params["pos_emb"][:S]                             # (S, D)
    x = embed_ln(tok, pos, params["emb_ln_g"], params["emb_ln_b"], B, 1e-12)

    # Precompute additive padding-mask bias ONCE (not re-compared per head).
    # NOTE: padding-mask semantics only (broadcast over query rows), as in the
    # reference masked_fill(mask==0, -1e9); not a causal mask.
    if attention_mask is None:
        mask_bias = jnp.zeros((B, S), jnp.float32)
    else:
        am = attention_mask.reshape(B, S)
        mask_bias = jnp.where(am == 0, jnp.float32(-1000000000.0),
                              jnp.float32(0.0))

    scale = 1.0 / math.sqrt(S)                              # reference: 1/sqrt(seq_len)
    for layer in params["layers"]:
        x = encoder_layer(layer, x, mask_bias, scale, B, S, cfg)

    # classification_head = False in this config; full sequence output returned.
    return x.reshape(B, S, D)


# ---------------------------------- main -------------------------------------

if __name__ == "__main__":
    cfg = Config()
    key = jax.random.PRNGKey(0)
    pkey, ikey = jax.random.split(key)

    params = init_params(pkey, cfg)

    batch, seq = 2, 8
    input_ids = jax.random.randint(ikey, (batch, seq), 0, cfg.vocab_size,
                                   dtype=jnp.int32)

    fwd = jax.jit(functools.partial(bert_forward, cfg=cfg))
    out = fwd(params, input_ids)
    out = jax.block_until_ready(out)

    assert out.shape == (batch, seq, cfg.embed_dim), out.shape
    assert bool(jnp.all(jnp.isfinite(out)))
    print("KERNEL_OK")
</pallas_src>

<mosaic_0001>
module attributes {stable_mosaic.version = 11 : i64} {
  func.func @_embed_ln_kernel(%arg0: memref<16x32xf32, #tpu.memory_space<vmem>>, %arg1: memref<8x32xf32, #tpu.memory_space<vmem>>, %arg2: memref<1x32xf32, #tpu.memory_space<vmem>>, %arg3: memref<1x32xf32, #tpu.memory_space<vmem>>, %arg4: memref<16x32xf32, #tpu.memory_space<vmem>>) attributes {dimension_semantics = [], scalar_prefetch = 0 : i64, scratch_operands = 0 : i64, tpu.core_type = #tpu.core_type<tc>} {
    %c0 = arith.constant 0 : index
    %c0_0 = arith.constant 0 : index
    %0 = vector.load %arg1[%c0, %c0_0] : memref<8x32xf32, #tpu.memory_space<vmem>>, vector<8x32xf32>
    %1 = tpu.concatenate %0, %0 in 0 : vector<8x32xf32>, vector<8x32xf32> -> vector<16x32xf32>
    %c0_1 = arith.constant 0 : index
    %c0_2 = arith.constant 0 : index
    %2 = vector.load %arg0[%c0_1, %c0_2] : memref<16x32xf32, #tpu.memory_space<vmem>>, vector<16x32xf32>
    %3 = arith.addf %2, %1 : vector<16x32xf32>
    %cst = arith.constant dense<0.000000e+00> : vector<16xf32>
    %4 = vector.multi_reduction <add>, %3, %cst [1] : vector<16x32xf32> to vector<16xf32>
    %5 = vector.shape_cast %4 : vector<16xf32> to vector<16x1xf32>
    %cst_3 = arith.constant 3.200000e+01 : f32
    %6 = vector.broadcast %cst_3 : f32 to vector<16x1xf32>
    %7 = arith.divf %5, %6 : vector<16x1xf32>
    %8 = vector.broadcast %7 : vector<16x1xf32> to vector<16x32xf32>
    %9 = arith.subf %3, %8 : vector<16x32xf32>
    %10 = arith.mulf %9, %9 : vector<16x32xf32>
    %cst_4 = arith.constant dense<0.000000e+00> : vector<16xf32>
    %11 = vector.multi_reduction <add>, %10, %cst_4 [1] : vector<16x32xf32> to vector<16xf32>
    %12 = vector.shape_cast %11 : vector<16xf32> to vector<16x1xf32>
    %cst_5 = arith.constant 3.200000e+01 : f32
    %13 = vector.broadcast %cst_5 : f32 to vector<16x1xf32>
    %14 = arith.divf %12, %13 : vector<16x1xf32>
    %15 = vector.broadcast %7 : vector<16x1xf32> to vector<16x32xf32>
    %16 = arith.subf %3, %15 : vector<16x32xf32>
    %cst_6 = arith.constant 9.99999996E-13 : f32
    %17 = vector.broadcast %cst_6 : f32 to vector<16x1xf32>
    %18 = arith.addf %14, %17 : vector<16x1xf32>
    %19 = math.rsqrt %18 : vector<16x1xf32>
    %20 = vector.broadcast %19 : vector<16x1xf32> to vector<16x32xf32>
    %21 = arith.mulf %16, %20 : vector<16x32xf32>
    %c0_7 = arith.constant 0 : index
    %c0_8 = arith.constant 0 : index
    %22 = vector.load %arg2[%c0_7, %c0_8] : memref<1x32xf32, #tpu.memory_space<vmem>>, vector<1x32xf32>
    %23 = vector.broadcast %22 : vector<1x32xf32> to vector<16x32xf32>
    %24 = arith.mulf %21, %23 : vector<16x32xf32>
    %c0_9 = arith.constant 0 : index
    %c0_10 = arith.constant 0 : index
    %25 = vector.load %arg3[%c0_9, %c0_10] : memref<1x32xf32, #tpu.memory_space<vmem>>, vector<1x32xf32>
    %26 = vector.broadcast %25 : vector<1x32xf32> to vector<16x32xf32>
    %27 = arith.addf %24, %26 : vector<16x32xf32>
    %c0_11 = arith.constant 0 : index
    %c0_12 = arith.constant 0 : index
    %28 = vector.load %arg4[%c0_11, %c0_12] : memref<16x32xf32, #tpu.memory_space<vmem>>, vector<16x32xf32>
    tpu.vector_store %arg4[%c0_11, %c0_12], %27 {strides = array<i32>} : memref<16x32xf32, #tpu.memory_space<vmem>>, vector<16x32xf32>,
    return
  }
}

module attributes {stable_mosaic.version = 11 : i64} {
  func.func @_encoder_layer_kernel(%arg0: memref<16x32xf32, #tpu.memory_space<vmem>>, %arg1: memref<2x8xf32, #tpu.memory_space<vmem>>, %arg2: memref<1x32xf32, #tpu.memory_space<vmem>>, %arg3: memref<1x32xf32, #tpu.memory_space<vmem>>, %arg4: memref<32x64xf32, #tpu.memory_space<vmem>>, %arg5: memref<1x64xf32, #tpu.memory_space<vmem>>, %arg6: memref<32x32xf32, #tpu.memory_space<vmem>>, %arg7: memref<1x32xf32, #tpu.memory_space<vmem>>, %arg8: memref<1x32xf32, #tpu.memory_space<vmem>>, %arg9: memref<1x32xf32, #tpu.memory_space<vmem>>, %arg10: memref<32x64xf32, #tpu.memory_space<vmem>>, %arg11: memref<1x64xf32, #tpu.memory_space<vmem>>, %arg12: memref<64x32xf32, #tpu.memory_space<vmem>>, %arg13: memref<1x32xf32, #tpu.memory_space<vmem>>, %arg14: memref<16x32xf32, #tpu.memory_space<vmem>>) attributes {dimension_semantics = [], scalar_prefetch = 0 : i64, scratch_operands = 0 : i64, tpu.core_type = #tpu.core_type<tc>} {
    %c0 = arith.constant 0 : index
    %c0_0 = arith.constant 0 : index
    %0 = vector.load %arg0[%c0, %c0_0] : memref<16x32xf32, #tpu.memory_space<vmem>>, vector<16x32xf32>
    %cst = arith.constant dense<0.000000e+00> : vector<16xf32>
    %1 = vector.multi_reduction <add>, %0, %cst [1] : vector<16x32xf32> to vector<16xf32>
    %2 = vector.shape_cast %1 : vector<16xf32> to vector<16x1xf32>
    %cst_1 = arith.constant 3.200000e+01 : f32
    %3 = vector.broadcast %cst_1 : f32 to vector<16x1xf32>
    %4 = arith.divf %2, %3 : vector<16x1xf32>
    %5 = vector.broadcast %4 : vector<16x1xf32> to vector<16x32xf32>
    %6 = arith.subf %0, %5 : vector<16x32xf32>
    %7 = arith.mulf %6, %6 : vector<16x32xf32>
    %cst_2 = arith.constant dense<0.000000e+00> : vector<16xf32>
    %8 = vector.multi_reduction <add>, %7, %cst_2 [1] : vector<16x32xf32> to vector<16xf32>
    %9 = vector.shape_cast %8 : vector<16xf32> to vector<16x1xf32>
    %cst_3 = arith.constant 3.200000e+01 : f32
    %10 = vector.broadcast %cst_3 : f32 to vector<16x1xf32>
    %11 = arith.divf %9, %10 : vector<16x1xf32>
    %12 = vector.broadcast %4 : vector<16x1xf32> to vector<16x32xf32>
    %13 = arith.subf %0, %12 : vector<16x32xf32>
    %cst_4 = arith.constant 9.99999974E-6 : f32
    %14 = vector.broadcast %cst_4 : f32 to vector<16x1xf32>
    %15 = arith.addf %11, %14 : vector<16x1xf32>
    %16 = math.rsqrt %15 : vector<16x1xf32>
    %17 = vector.broadcast %16 : vector<16x1xf32> to vector<16x32xf32>
    %18 = arith.mulf %13, %17 : vector<16x32xf32>
    %c0_5 = arith.constant 0 : index
    %c0_6 = arith.constant 0 : index
    %19 = vector.load %arg2[%c0_5, %c0_6] : memref<1x32xf32, #tpu.memory_space<vmem>>, vector<1x32xf32>
    %20 = vector.broadcast %19 : vector<1x32xf32> to vector<16x32xf32>
    %21 = arith.mulf %18, %20 : vector<16x32xf32>
    %c0_7 = arith.constant 0 : index
    %c0_8 = arith.constant 0 : index
    %22 = vector.load %arg3[%c0_7, %c0_8] : memref<1x32xf32, #tpu.memory_space<vmem>>, vector<1x32xf32>
    %23 = vector.broadcast %22 : vector<1x32xf32> to vector<16x32xf32>
    %24 = arith.addf %21, %23 : vector<16x32xf32>
    %c0_9 = arith.constant 0 : index
    %c0_10 = arith.constant 0 : index
    %25 = vector.load %arg4[%c0_9, %c0_10] : memref<32x64xf32, #tpu.memory_space<vmem>>, vector<32x64xf32>
    %cst_11 = arith.constant dense<0.000000e+00> : vector<16x64xf32>
    %26 = tpu.matmul %24, %25, %cst_11 {dimension_numbers = #tpu.dot_dimension_numbers<[1], [0], [0], [1], [0, 0, 1, 1], [], []>} : vector<16x32xf32>, vector<32x64xf32>, vector<16x64xf32> -> vector<16x64xf32>
    %c0_12 = arith.constant 0 : index
    %c0_13 = arith.constant 0 : index
    %27 = vector.load %arg5[%c0_12, %c0_13] : memref<1x64xf32, #tpu.memory_space<vmem>>, vector<1x64xf32>
    %28 = vector.broadcast %27 : vector<1x64xf32> to vector<16x64xf32>
    %29 = arith.addf %26, %28 : vector<16x64xf32>
    %30 = vector.extract_strided_slice %29 {offsets = [0, 0], sizes = [16, 32], strides = [1, 1]} : vector<16x64xf32> to vector<16x32xf32>
    %31 = vector.extract_strided_slice %29 {offsets = [0, 32], sizes = [16, 32], strides = [1, 1]} : vector<16x64xf32> to vector<16x32xf32>
    %c0_14 = arith.constant 0 : index
    %c0_15 = arith.constant 0 : index
    %32 = vector.load %arg1[%c0_14, %c0_15] : memref<2x8xf32, #tpu.memory_space<vmem>>, vector<2x8xf32>
    %33 = vector.extract_strided_slice %30 {offsets = [0, 0], sizes = [8, 32], strides = [1, 1]} : vector<16x32xf32> to vector<8x32xf32>
    %34 = vector.extract_strided_slice %31 {offsets = [0, 0], sizes = [8, 32], strides = [1, 1]} : vector<16x32xf32> to vector<8x32xf32>
    %35 = vector.extract_strided_slice %32 {offsets = [0, 0], sizes = [1, 8], strides = [1, 1]} : vector<2x8xf32> to vector<1x8xf32>
    %36 = vector.extract_strided_slice %33 {offsets = [0, 0], sizes = [8, 8], strides = [1, 1]} : vector<8x32xf32> to vector<8x8xf32>
    %37 = vector.extract_strided_slice %34 {offsets = [0, 0], sizes = [8, 8], strides = [1, 1]} : vector<8x32xf32> to vector<8x8xf32>
    %cst_16 = arith.constant dense<0.000000e+00> : vector<8x8xf32>
    %38 = tpu.matmul %36, %37, %cst_16 {dimension_numbers = #tpu.dot_dimension_numbers<[1], [1], [0], [0], [0, 0, 1, 0], [], []>} : vector<8x8xf32>, vector<8x8xf32>, vector<8x8xf32> -> vector<8x8xf32>
    %cst_17 = arith.constant 0.353553385 : f32
    %39 = vector.broadcast %cst_17 : f32 to vector<8x8xf32>
    %40 = arith.mulf %38, %39 : vector<8x8xf32>
    %41 = vector.broadcast %35 : vector<1x8xf32> to vector<8x8xf32>
    %42 = arith.addf %40, %41 : vector<8x8xf32>
    %cst_18 = arith.constant dense<0xFF800000> : vector<8xf32>
    %43 = vector.multi_reduction <maximumf>, %42, %cst_18 [1] : vector<8x8xf32> to vector<8xf32>
    %44 = vector.shape_cast %43 : vector<8xf32> to vector<8x1xf32>
    %45 = vector.broadcast %44 : vector<8x1xf32> to vector<8x8xf32>
    %46 = arith.subf %42, %45 : vector<8x8xf32>
    %47 = math.exp %46 : vector<8x8xf32>
    %cst_19 = arith.constant dense<0.000000e+00> : vector<8xf32>
    %48 = vector.multi_reduction <add>, %47, %cst_19 [1] : vector<8x8xf32> to vector<8xf32>
    %49 = vector.shape_cast %48 : vector<8xf32> to vector<8x1xf32>
    %50 = tpu.reciprocal %49 {approx = true} : vector<8x1xf32> -> vector<8x1xf32>
    %51 = vector.broadcast %50 : vector<8x1xf32> to vector<8x8xf32>
    %52 = arith.mulf %47, %51 : vector<8x8xf32>
    %cst_20 = arith.constant dense<0.000000e+00> : vector<8x8xf32>
    %53 = tpu.matmul %52, %36, %cst_20 {dimension_numbers = #tpu.dot_dimension_numbers<[1], [0], [0], [1], [0, 0, 1, 1], [], []>} : vector<8x8xf32>, vector<8x8xf32>, vector<8x8xf32> -> vector<8x8xf32>
    %54 = vector.extract_strided_slice %33 {offsets = [0, 8], sizes = [8, 8], strides = [1, 1]} : vector<8x32xf32> to vector<8x8xf32>
    %55 = vector.extract_strided_slice %34 {offsets = [0, 8], sizes = [8, 8], strides = [1, 1]} : vector<8x32xf32> to vector<8x8xf32>
    %cst_21 = arith.constant dense<0.000000e+00> : vector<8x8xf32>
    %56 = tpu.matmul %54, %55, %cst_21 {dimension_numbers = #tpu.dot_dimension_numbers<[1], [1], [0], [0], [0, 0, 1, 0], [], []>} : vector<8x8xf32>, vector<8x8xf32>, vector<8x8xf32> -> vector<8x8xf32>
    %cst_22 = arith.constant 0.353553385 : f32
    %57 = vector.broadcast %cst_22 : f32 to vector<8x8xf32>
    %58 = arith.mulf %56, %57 : vector<8x8xf32>
    %59 = vector.broadcast %35 : vector<1x8xf32> to vector<8x8xf32>
    %60 = arith.addf %58, %59 : vector<8x8xf32>
    %cst_23 = arith.constant dense<0xFF800000> : vector<8xf32>
    %61 = vector.multi_reduction <maximumf>, %60, %cst_23 [1] : vector<8x8xf32> to vector<8xf32>
    %62 = vector.shape_cast %61 : vector<8xf32> to vector<8x1xf32>
    %63 = vector.broadcast %62 : vector<8x1xf32> to vector<8x8xf32>
    %64 = arith.subf %60, %63 : vector<8x8xf32>
    %65 = math.exp %64 : vector<8x8xf32>
    %cst_24 = arith.constant dense<0.000000e+00> : vector<8xf32>
    %66 = vector.multi_reduction <add>, %65, %cst_24 [1] : vector<8x8xf32> to vector<8xf32>
    %67 = vector.shape_cast %66 : vector<8xf32> to vector<8x1xf32>
    %68 = tpu.reciprocal %67 {approx = true} : vector<8x1xf32> -> vector<8x1xf32>
    %69 = vector.broadcast %68 : vector<8x1xf32> to vector<8x8xf32>
    %70 = arith.mulf %65, %69 : vector<8x8xf32>
    %cst_25 = arith.constant dense<0.000000e+00> : vector<8x8xf32>
    %71 = tpu.matmul %70, %54, %cst_25 {dimension_numbers = #tpu.dot_dimension_numbers<[1], [0], [0], [1], [0, 0, 1, 1], [], []>} : vector<8x8xf32>, vector<8x8xf32>, vector<8x8xf32> -> vector<8x8xf32>
    %72 = vector.extract_strided_slice %33 {offsets = [0, 16], sizes = [8, 8], strides = [1, 1]} : vector<8x32xf32> to vector<8x8xf32>
    %73 = vector.extract_strided_slice %34 {offsets = [0, 16], sizes = [8, 8], strides = [1, 1]} : vector<8x32xf32> to vector<8x8xf32>
    %cst_26 = arith.constant dense<0.000000e+00> : vector<8x8xf32>
    %74 = tpu.matmul %72, %73, %cst_26 {dimension_numbers = #tpu.dot_dimension_numbers<[1], [1], [0], [0], [0, 0, 1, 0], [], []>} : vector<8x8xf32>, vector<8x8xf32>, vector<8x8xf32> -> vector<8x8xf32>
    %cst_27 = arith.constant 0.353553385 : f32
    %75 = vector.broadcast %cst_27 : f32 to vector<8x8xf32>
    %76 = arith.mulf %74, %75 : vector<8x8xf32>
    %77 = vector.broadcast %35 : vector<1x8xf32> to vector<8x8xf32>
    %78 = arith.addf %76, %77 : vector<8x8xf32>
    %cst_28 = arith.constant dense<0xFF800000> : vector<8xf32>
    %79 = vector.multi_reduction <maximumf>, %78, %cst_28 [1] : vector<8x8xf32> to vector<8xf32>
    %80 = vector.shape_cast %79 : vector<8xf32> to vector<8x1xf32>
    %81 = vector.broadcast %80 : vector<8x1xf32> to vector<8x8xf32>
    %82 = arith.subf %78, %81 : vector<8x8xf32>
    %83 = math.exp %82 : vector<8x8xf32>
    %cst_29 = arith.constant dense<0.000000e+00> : vector<8xf32>
    %84 = vector.multi_reduction <add>, %83, %cst_29 [1] : vector<8x8xf32> to vector<8xf32>
    %85 = vector.shape_cast %84 : vector<8xf32> to vector<8x1xf32>
    %86 = tpu.reciprocal %85 {approx = true} : vector<8x1xf32> -> vector<8x1xf32>
    %87 = vector.broadcast %86 : vector<8x1xf32> to vector<8x8xf32>
    %88 = arith.mulf %83, %87 : vector<8x8xf32>
    %cst_30 = arith.constant dense<0.000000e+00> : vector<8x8xf32>
    %89 = tpu.matmul %88, %72, %cst_30 {dimension_numbers = #tpu.dot_dimension_numbers<[1], [0], [0], [1], [0, 0, 1, 1], [], []>} : vector<8x8xf32>, vector<8x8xf32>, vector<8x8xf32> -> vector<8x8xf32>
    %90 = vector.extract_strided_slice %33 {offsets = [0, 24], sizes = [8, 8], strides = [1, 1]} : vector<8x32xf32> to vector<8x8xf32>
    %91 = vector.extract_strided_slice %34 {offsets = [0, 24], sizes = [8, 8], strides = [1, 1]} : vector<8x32xf32> to vector<8x8xf32>
    %cst_31 = arith.constant dense<0.000000e+00> : vector<8x8xf32>
    %92 = tpu.matmul %90, %91, %cst_31 {dimension_numbers = #tpu.dot_dimension_numbers<[1], [1], [0], [0], [0, 0, 1, 0], [], []>} : vector<8x8xf32>, vector<8x8xf32>, vector<8x8xf32> -> vector<8x8xf32>
    %cst_32 = arith.constant 0.353553385 : f32
    %93 = vector.broadcast %cst_32 : f32 to vector<8x8xf32>
    %94 = arith.mulf %92, %93 : vector<8x8xf32>
    %95 = vector.broadcast %35 : vector<1x8xf32> to vector<8x8xf32>
    %96 = arith.addf %94, %95 : vector<8x8xf32>
    %cst_33 = arith.constant dense<0xFF800000> : vector<8xf32>
    %97 = vector.multi_reduction <maximumf>, %96, %cst_33 [1] : vector<8x8xf32> to vector<8xf32>
    %98 = vector.shape_cast %97 : vector<8xf32> to vector<8x1xf32>
    %99 = vector.broadcast %98 : vector<8x1xf32> to vector<8x8xf32>
    %100 = arith.subf %96, %99 : vector<8x8xf32>
    %101 = math.exp %100 : vector<8x8xf32>
    %cst_34 = arith.constant dense<0.000000e+00> : vector<8xf32>
    %102 = vector.multi_reduction <add>, %101, %cst_34 [1] : vector<8x8xf32> to vector<8xf32>
    %103 = vector.shape_cast %102 : vector<8xf32> to vector<8x1xf32>
    %104 = tpu.reciprocal %103 {approx = true} : vector<8x1xf32> -> vector<8x1xf32>
    %105 = vector.broadcast %104 : vector<8x1xf32> to vector<8x8xf32>
    %106 = arith.mulf %101, %105 : vector<8x8xf32>
    %cst_35 = arith.constant dense<0.000000e+00> : vector<8x8xf32>
    %107 = tpu.matmul %106, %90, %cst_35 {dimension_numbers = #tpu.dot_dimension_numbers<[1], [0], [0], [1], [0, 0, 1, 1], [], []>} : vector<8x8xf32>, vector<8x8xf32>, vector<8x8xf32> -> vector<8x8xf32>
    %108 = tpu.concatenate %53, %71, %89, %107 in 1 : vector<8x8xf32>, vector<8x8xf32>, vector<8x8xf32>, vector<8x8xf32> -> vector<8x32xf32>
    %109 = vector.extract_strided_slice %30 {offsets = [8, 0], sizes = [8, 32], strides = [1, 1]} : vector<16x32xf32> to vector<8x32xf32>
    %110 = vector.extract_strided_slice %31 {offsets = [8, 0], sizes = [8, 32], strides = [1, 1]} : vector<16x32xf32> to vector<8x32xf32>
    %111 = vector.extract_strided_slice %32 {offsets = [1, 0], sizes = [1, 8], strides = [1, 1]} : vector<2x8xf32> to vector<1x8xf32>
    %112 = vector.extract_strided_slice %109 {offsets = [0, 0], sizes = [8, 8], strides = [1, 1]} : vector<8x32xf32> to vector<8x8xf32>
    %113 = vector.extract_strided_slice %110 {offsets = [0, 0], sizes = [8, 8], strides = [1, 1]} : vector<8x32xf32> to vector<8x8xf32>
    %cst_36 = arith.constant dense<0.000000e+00> : vector<8x8xf32>
    %114 = tpu.matmul %112, %113, %cst_36 {dimension_numbers = #tpu.dot_dimension_numbers<[1], [1], [0], [0], [0, 0, 1, 0], [], []>} : vector<8x8xf32>, vector<8x8xf32>, vector<8x8xf32> -> vector<8x8xf32>
    %cst_37 = arith.constant 0.353553385 : f32
    %115 = vector.broadcast %cst_37 : f32 to vector<8x8xf32>
    %116 = arith.mulf %114, %115 : vector<8x8xf32>
    %117 = vector.broadcast %111 : vector<1x8xf32> to vector<8x8xf32>
    %118 = arith.addf %116, %117 : vector<8x8xf32>
    %cst_38 = arith.constant dense<0xFF800000> : vector<8xf32>
    %119 = vector.multi_reduction <maximumf>, %118, %cst_38 [1] : vector<8x8xf32> to vector<8xf32>
    %120 = vector.shape_cast %119 : vector<8xf32> to vector<8x1xf32>
    %121 = vector.broadcast %120 : vector<8x1xf32> to vector<8x8xf32>
    %122 = arith.subf %118, %121 : vector<8x8xf32>
    %123 = math.exp %122 : vector<8x8xf32>
    %cst_39 = arith.constant dense<0.000000e+00> : vector<8xf32>
    %124 = vector.multi_reduction <add>, %123, %cst_39 [1] : vector<8x8xf32> to vector<8xf32>
    %125 = vector.shape_cast %124 : vector<8xf32> to vector<8x1xf32>
    %126 = tpu.reciprocal %125 {approx = true} : vector<8x1xf32> -> vector<8x1xf32>
    %127 = vector.broadcast %126 : vector<8x1xf32> to vector<8x8xf32>
    %128 = arith.mulf %123, %127 : vector<8x8xf32>
    %cst_40 = arith.constant dense<0.000000e+00> : vector<8x8xf32>
    %129 = tpu.matmul %128, %112, %cst_40 {dimension_numbers = #tpu.dot_dimension_numbers<[1], [0], [0], [1], [0, 0, 1, 1], [], []>} : vector<8x8xf32>, vector<8x8xf32>, vector<8x8xf32> -> vector<8x8xf32>
    %130 = vector.extract_strided_slice %109 {offsets = [0, 8], sizes = [8, 8], strides = [1, 1]} : vector<8x32xf32> to vector<8x8xf32>
    %131 = vector.extract_strided_slice %110 {offsets = [0, 8], sizes = [8, 8], strides = [1, 1]} : vector<8x32xf32> to vector<8x8xf32>
    %cst_41 = arith.constant dense<0.000000e+00> : vector<8x8xf32>
    %132 = tpu.matmul %130, %131, %cst_41 {dimension_numbers = #tpu.dot_dimension_numbers<[1], [1], [0], [0], [0, 0, 1, 0], [], []>} : vector<8x8xf32>, vector<8x8xf32>, vector<8x8xf32> -> vector<8x8xf32>
    %cst_42 = arith.constant 0.353553385 : f32
    %133 = vector.broadcast %cst_42 : f32 to vector<8x8xf32>
    %134 = arith.mulf %132, %133 : vector<8x8xf32>
    %135 = vector.broadcast %111 : vector<1x8xf32> to vector<8x8xf32>
    %136 = arith.addf %134, %135 : vector<8x8xf32>
    %cst_43 = arith.constant dense<0xFF800000> : vector<8xf32>
    %137 = vector.multi_reduction <maximumf>, %136, %cst_43 [1] : vector<8x8xf32> to vector<8xf32>
    %138 = vector.shape_cast %137 : vector<8xf32> to vector<8x1xf32>
    %139 = vector.broadcast %138 : vector<8x1xf32> to vector<8x8xf32>
    %140 = arith.subf %136, %139 : vector<8x8xf32>
    %141 = math.exp %140 : vector<8x8xf32>
    %cst_44 = arith.constant dense<0.000000e+00> : vector<8xf32>
    %142 = vector.multi_reduction <add>, %141, %cst_44 [1] : vector<8x8xf32> to vector<8xf32>
    %143 = vector.shape_cast %142 : vector<8xf32> to vector<8x1xf32>
    %144 = tpu.reciprocal %143 {approx = true} : vector<8x1xf32> -> vector<8x1xf32>
    %145 = vector.broadcast %144 : vector<8x1xf32> to vector<8x8xf32>
    %146 = arith.mulf %141, %145 : vector<8x8xf32>
    %cst_45 = arith.constant dense<0.000000e+00> : vector<8x8xf32>
    %147 = tpu.matmul %146, %130, %cst_45 {dimension_numbers = #tpu.dot_dimension_numbers<[1], [0], [0], [1], [0, 0, 1, 1], [], []>} : vector<8x8xf32>, vector<8x8xf32>, vector<8x8xf32> -> vector<8x8xf32>
    %148 = vector.extract_strided_slice %109 {offsets = [0, 16], sizes = [8, 8], strides = [1, 1]} : vector<8x32xf32> to vector<8x8xf32>
    %149 = vector.extract_strided_slice %110 {offsets = [0, 16], sizes = [8, 8], strides = [1, 1]} : vector<8x32xf32> to vector<8x8xf32>
    %cst_46 = arith.constant dense<0.000000e+00> : vector<8x8xf32>
    %150 = tpu.matmul %148, %149, %cst_46 {dimension_numbers = #tpu.dot_dimension_numbers<[1], [1], [0], [0], [0, 0, 1, 0], [], []>} : vector<8x8xf32>, vector<8x8xf32>, vector<8x8xf32> -> vector<8x8xf32>
    %cst_47 = arith.constant 0.353553385 : f32
    %151 = vector.broadcast %cst_47 : f32 to vector<8x8xf32>
    %152 = arith.mulf %150, %151 : vector<8x8xf32>
    %153 = vector.broadcast %111 : vector<1x8xf32> to vector<8x8xf32>
    %154 = arith.addf %152, %153 : vector<8x8xf32>
    %cst_48 = arith.constant dense<0xFF800000> : vector<8xf32>
    %155 = vector.multi_reduction <maximumf>, %154, %cst_48 [1] : vector<8x8xf32> to vector<8xf32>
    %156 = vector.shape_cast %155 : vector<8xf32> to vector<8x1xf32>
    %157 = vector.broadcast %156 : vector<8x1xf32> to vector<8x8xf32>
    %158 = arith.subf %154, %157 : vector<8x8xf32>
    %159 = math.exp %158 : vector<8x8xf32>
    %cst_49 = arith.constant dense<0.000000e+00> : vector<8xf32>
    %160 = vector.multi_reduction <add>, %159, %cst_49 [1] : vector<8x8xf32> to vector<8xf32>
    %161 = vector.shape_cast %160 : vector<8xf32> to vector<8x1xf32>
    %162 = tpu.reciprocal %161 {approx = true} : vector<8x1xf32> -> vector<8x1xf32>
    %163 = vector.broadcast %162 : vector<8x1xf32> to vector<8x8xf32>
    %164 = arith.mulf %159, %163 : vector<8x8xf32>
    %cst_50 = arith.constant dense<0.000000e+00> : vector<8x8xf32>
    %165 = tpu.matmul %164, %148, %cst_50 {dimension_numbers = #tpu.dot_dimension_numbers<[1], [0], [0], [1], [0, 0, 1, 1], [], []>} : vector<8x8xf32>, vector<8x8xf32>, vector<8x8xf32> -> vector<8x8xf32>
    %166 = vector.extract_strided_slice %109 {offsets = [0, 24], sizes = [8, 8], strides = [1, 1]} : vector<8x32xf32> to vector<8x8xf32>
    %167 = vector.extract_strided_slice %110 {offsets = [0, 24], sizes = [8, 8], strides = [1, 1]} : vector<8x32xf32> to vector<8x8xf32>
    %cst_51 = arith.constant dense<0.000000e+00> : vector<8x8xf32>
    %168 = tpu.matmul %166, %167, %cst_51 {dimension_numbers = #tpu.dot_dimension_numbers<[1], [1], [0], [0], [0, 0, 1, 0], [], []>} : vector<8x8xf32>, vector<8x8xf32>, vector<8x8xf32> -> vector<8x8xf32>
    %cst_52 = arith.constant 0.353553385 : f32
    %169 = vector.broadcast %cst_52 : f32 to vector<8x8xf32>
    %170 = arith.mulf %168, %169 : vector<8x8xf32>
    %171 = vector.broadcast %111 : vector<1x8xf32> to vector<8x8xf32>
    %172 = arith.addf %170, %171 : vector<8x8xf32>
    %cst_53 = arith.constant dense<0xFF800000> : vector<8xf32>
    %173 = vector.multi_reduction <maximumf>, %172, %cst_53 [1] : vector<8x8xf32> to vector<8xf32>
    %174 = vector.shape_cast %173 : vector<8xf32> to vector<8x1xf32>
    %175 = vector.broadcast %174 : vector<8x1xf32> to vector<8x8xf32>
    %176 = arith.subf %172, %175 : vector<8x8xf32>
    %177 = math.exp %176 : vector<8x8xf32>
    %cst_54 = arith.constant dense<0.000000e+00> : vector<8xf32>
    %178 = vector.multi_reduction <add>, %177, %cst_54 [1] : vector<8x8xf32> to vector<8xf32>
    %179 = vector.shape_cast %178 : vector<8xf32> to vector<8x1xf32>
    %180 = tpu.reciprocal %179 {approx = true} : vector<8x1xf32> -> vector<8x1xf32>
    %181 = vector.broadcast %180 : vector<8x1xf32> to vector<8x8xf32>
    %182 = arith.mulf %177, %181 : vector<8x8xf32>
    %cst_55 = arith.constant dense<0.000000e+00> : vector<8x8xf32>
    %183 = tpu.matmul %182, %166, %cst_55 {dimension_numbers = #tpu.dot_dimension_numbers<[1], [0], [0], [1], [0, 0, 1, 1], [], []>} : vector<8x8xf32>, vector<8x8xf32>, vector<8x8xf32> -> vector<8x8xf32>
    %184 = tpu.concatenate %129, %147, %165, %183 in 1 : vector<8x8xf32>, vector<8x8xf32>, vector<8x8xf32>, vector<8x8xf32> -> vector<8x32xf32>
    %185 = tpu.concatenate %108, %184 in 0 : vector<8x32xf32>, vector<8x32xf32> -> vector<16x32xf32>
    %c0_56 = arith.constant 0 : index
    %c0_57 = arith.constant 0 : index
    %186 = vector.load %arg6[%c0_56, %c0_57] : memref<32x32xf32, #tpu.memory_space<vmem>>, vector<32x32xf32>
    %cst_58 = arith.constant dense<0.000000e+00> : vector<16x32xf32>
    %187 = tpu.matmul %185, %186, %cst_58 {dimension_numbers = #tpu.dot_dimension_numbers<[1], [0], [0], [1], [0, 0, 1, 1], [], []>} : vector<16x32xf32>, vector<32x32xf32>, vector<16x32xf32> -> vector<16x32xf32>
    %c0_59 = arith.constant 0 : index
    %c0_60 = arith.constant 0 : index
    %188 = vector.load %arg7[%c0_59, %c0_60] : memref<1x32xf32, #tpu.memory_space<vmem>>, vector<1x32xf32>
    %189 = vector.broadcast %188 : vector<1x32xf32> to vector<16x32xf32>
    %190 = arith.addf %187, %189 : vector<16x32xf32>
    %191 = arith.addf %24, %190 : vector<16x32xf32>
    %cst_61 = arith.constant dense<0.000000e+00> : vector<16xf32>
    %192 = vector.multi_reduction <add>, %191, %cst_61 [1] : vector<16x32xf32> to vector<16xf32>
    %193 = vector.shape_cast %192 : vector<16xf32> to vector<16x1xf32>
    %cst_62 = arith.constant 3.200000e+01 : f32
    %194 = vector.broadcast %cst_62 : f32 to vector<16x1xf32>
    %195 = arith.divf %193, %194 : vector<16x1xf32>
    %196 = vector.broadcast %195 : vector<16x1xf32> to vector<16x32xf32>
    %197 = arith.subf %191, %196 : vector<16x32xf32>
    %198 = arith.mulf %197, %197 : vector<16x32xf32>
    %cst_63 = arith.constant dense<0.000000e+00> : vector<16xf32>
    %199 = vector.multi_reduction <add>, %198, %cst_63 [1] : vector<16x32xf32> to vector<16xf32>
    %200 = vector.shape_cast %199 : vector<16xf32> to vector<16x1xf32>
    %cst_64 = arith.constant 3.200000e+01 : f32
    %201 = vector.broadcast %cst_64 : f32 to vector<16x1xf32>
    %202 = arith.divf %200, %201 : vector<16x1xf32>
    %203 = vector.broadcast %195 : vector<16x1xf32> to vector<16x32xf32>
    %204 = arith.subf %191, %203 : vector<16x32xf32>
    %cst_65 = arith.constant 9.99999974E-6 : f32
    %205 = vector.broadcast %cst_65 : f32 to vector<16x1xf32>
    %206 = arith.addf %202, %205 : vector<16x1xf32>
    %207 = math.rsqrt %206 : vector<16x1xf32>
    %208 = vector.broadcast %207 : vector<16x1xf32> to vector<16x32xf32>
    %209 = arith.mulf %204, %208 : vector<16x32xf32>
    %c0_66 = arith.constant 0 : index
    %c0_67 = arith.constant 0 : index
    %210 = vector.load %arg8[%c0_66, %c0_67] : memref<1x32xf32, #tpu.memory_space<vmem>>, vector<1x32xf32>
    %211 = vector.broadcast %210 : vector<1x32xf32> to vector<16x32xf32>
    %212 = arith.mulf %209, %211 : vector<16x32xf32>
    %c0_68 = arith.constant 0 : index
    %c0_69 = arith.constant 0 : index
    %213 = vector.load %arg9[%c0_68, %c0_69] : memref<1x32xf32, #tpu.memory_space<vmem>>, vector<1x32xf32>
    %214 = vector.broadcast %213 : vector<1x32xf32> to vector<16x32xf32>
    %215 = arith.addf %212, %214 : vector<16x32xf32>
    %c0_70 = arith.constant 0 : index
    %c0_71 = arith.constant 0 : index
    %216 = vector.load %arg10[%c0_70, %c0_71] : memref<32x64xf32, #tpu.memory_space<vmem>>, vector<32x64xf32>
    %cst_72 = arith.constant dense<0.000000e+00> : vector<16x64xf32>
    %217 = tpu.matmul %215, %216, %cst_72 {dimension_numbers = #tpu.dot_dimension_numbers<[1], [0], [0], [1], [0, 0, 1, 1], [], []>} : vector<16x32xf32>, vector<32x64xf32>, vector<16x64xf32> -> vector<16x64xf32>
    %c0_73 = arith.constant 0 : index
    %c0_74 = arith.constant 0 : index
    %218 = vector.load %arg11[%c0_73, %c0_74] : memref<1x64xf32, #tpu.memory_space<vmem>>, vector<1x64xf32>
    %219 = vector.broadcast %218 : vector<1x64xf32> to vector<16x64xf32>
    %220 = arith.addf %217, %219 : vector<16x64xf32>
    %cst_75 = arith.constant 5.000000e-01 : f32
    %221 = vector.broadcast %cst_75 : f32 to vector<16x64xf32>
    %222 = arith.mulf %221, %220 : vector<16x64xf32>
    %cst_76 = arith.constant 2.000000e+00 : f32
    %223 = math.sqrt %cst_76 : f32
    %224 = vector.broadcast %223 : f32 to vector<16x64xf32>
    %225 = arith.divf %220, %224 : vector<16x64xf32>
    %226 = math.erf %225 : vector<16x64xf32>
    %cst_77 = arith.constant 1.000000e+00 : f32
    %227 = vector.broadcast %cst_77 : f32 to vector<16x64xf32>
    %228 = arith.addf %227, %226 : vector<16x64xf32>
    %229 = arith.mulf %222, %228 : vector<16x64xf32>
    %c0_78 = arith.constant 0 : index
    %c0_79 = arith.constant 0 : index
    %230 = vector.load %arg12[%c0_78, %c0_79] : memref<64x32xf32, #tpu.memory_space<vmem>>, vector<64x32xf32>
    %cst_80 = arith.constant dense<0.000000e+00> : vector<16x32xf32>
    %231 = tpu.matmul %229, %230, %cst_80 {dimension_numbers = #tpu.dot_dimension_numbers<[1], [0], [0], [1], [0, 0, 1, 1], [], []>} : vector<16x64xf32>, vector<64x32xf32>, vector<16x32xf32> -> vector<16x32xf32>
    %c0_81 = arith.constant 0 : index
    %c0_82 = arith.constant 0 : index
    %232 = vector.load %arg13[%c0_81, %c0_82] : memref<1x32xf32, #tpu.memory_space<vmem>>, vector<1x32xf32>
    %233 = vector.broadcast %232 : vector<1x32xf32> to vector<16x32xf32>
    %234 = arith.addf %231, %233 : vector<16x32xf32>
    %235 = arith.addf %215, %234 : vector<16x32xf32>
    %c0_83 = arith.constant 0 : index
    %c0_84 = arith.constant 0 : index
    %236 = vector.load %arg14[%c0_83, %c0_84] : memref<16x32xf32, #tpu.memory_space<vmem>>, vector<16x32xf32>
    tpu.vector_store %arg14[%c0_83, %c0_84], %235 {strides = array<i32>} : memref<16x32xf32, #tpu.memory_space<vmem>>, vector<16x32xf32>,
    return
  }
}

module attributes {stable_mosaic.version = 11 : i64} {
  func.func @_encoder_layer_kernel(%arg0: memref<16x32xf32, #tpu.memory_space<vmem>>, %arg1: memref<2x8xf32, #tpu.memory_space<vmem>>, %arg2: memref<1x32xf32, #tpu.memory_space<vmem>>, %arg3: memref<1x32xf32, #tpu.memory_space<vmem>>, %arg4: memref<32x64xf32, #tpu.memory_space<vmem>>, %arg5: memref<1x64xf32, #tpu.memory_space<vmem>>, %arg6: memref<32x32xf32, #tpu.memory_space<vmem>>, %arg7: memref<1x32xf32, #tpu.memory_space<vmem>>, %arg8: memref<1x32xf32, #tpu.memory_space<vmem>>, %arg9: memref<1x32xf32, #tpu.memory_space<vmem>>, %arg10: memref<32x64xf32, #tpu.memory_space<vmem>>, %arg11: memref<1x64xf32, #tpu.memory_space<vmem>>, %arg12: memref<64x32xf32, #tpu.memory_space<vmem>>, %arg13: memref<1x32xf32, #tpu.memory_space<vmem>>, %arg14: memref<16x32xf32, #tpu.memory_space<vmem>>) attributes {dimension_semantics = [], scalar_prefetch = 0 : i64, scratch_operands = 0 : i64, tpu.core_type = #tpu.core_type<tc>} {
    %c0 = arith.constant 0 : index
    %c0_0 = arith.constant 0 : index
    %0 = vector.load %arg0[%c0, %c0_0] : memref<16x32xf32, #tpu.memory_space<vmem>>, vector<16x32xf32>
    %cst = arith.constant dense<0.000000e+00> : vector<16xf32>
    %1 = vector.multi_reduction <add>, %0, %cst [1] : vector<16x32xf32> to vector<16xf32>
    %2 = vector.shape_cast %1 : vector<16xf32> to vector<16x1xf32>
    %cst_1 = arith.constant 3.200000e+01 : f32
    %3 = vector.broadcast %cst_1 : f32 to vector<16x1xf32>
    %4 = arith.divf %2, %3 : vector<16x1xf32>
    %5 = vector.broadcast %4 : vector<16x1xf32> to vector<16x32xf32>
    %6 = arith.subf %0, %5 : vector<16x32xf32>
    %7 = arith.mulf %6, %6 : vector<16x32xf32>
    %cst_2 = arith.constant dense<0.000000e+00> : vector<16xf32>
    %8 = vector.multi_reduction <add>, %7, %cst_2 [1] : vector<16x32xf32> to vector<16xf32>
    %9 = vector.shape_cast %8 : vector<16xf32> to vector<16x1xf32>
    %cst_3 = arith.constant 3.200000e+01 : f32
    %10 = vector.broadcast %cst_3 : f32 to vector<16x1xf32>
    %11 = arith.divf %9, %10 : vector<16x1xf32>
    %12 = vector.broadcast %4 : vector<16x1xf32> to vector<16x32xf32>
    %13 = arith.subf %0, %12 : vector<16x32xf32>
    %cst_4 = arith.constant 9.99999974E-6 : f32
    %14 = vector.broadcast %cst_4 : f32 to vector<16x1xf32>
    %15 = arith.addf %11, %14 : vector<16x1xf32>
    %16 = math.rsqrt %15 : vector<16x1xf32>
    %17 = vector.broadcast %16 : vector<16x1xf32> to vector<16x32xf32>
    %18 = arith.mulf %13, %17 : vector<16x32xf32>
    %c0_5 = arith.constant 0 : index
    %c0_6 = arith.constant 0 : index
    %19 = vector.load %arg2[%c0_5, %c0_6] : memref<1x32xf32, #tpu.memory_space<vmem>>, vector<1x32xf32>
    %20 = vector.broadcast %19 : vector<1x32xf32> to vector<16x32xf32>
    %21 = arith.mulf %18, %20 : vector<16x32xf32>
    %c0_7 = arith.constant 0 : index
    %c0_8 = arith.constant 0 : index
    %22 = vector.load %arg3[%c0_7, %c0_8] : memref<1x32xf32, #tpu.memory_space<vmem>>, vector<1x32xf32>
    %23 = vector.broadcast %22 : vector<1x32xf32> to vector<16x32xf32>
    %24 = arith.addf %21, %23 : vector<16x32xf32>
    %c0_9 = arith.constant 0 : index
    %c0_10 = arith.constant 0 : index
    %25 = vector.load %arg4[%c0_9, %c0_10] : memref<32x64xf32, #tpu.memory_space<vmem>>, vector<32x64xf32>
    %cst_11 = arith.constant dense<0.000000e+00> : vector<16x64xf32>
    %26 = tpu.matmul %24, %25, %cst_11 {dimension_numbers = #tpu.dot_dimension_numbers<[1], [0], [0], [1], [0, 0, 1, 1], [], []>} : vector<16x32xf32>, vector<32x64xf32>, vector<16x64xf32> -> vector<16x64xf32>
    %c0_12 = arith.constant 0 : index
    %c0_13 = arith.constant 0 : index
    %27 = vector.load %arg5[%c0_12, %c0_13] : memref<1x64xf32, #tpu.memory_space<vmem>>, vector<1x64xf32>
    %28 = vector.broadcast %27 : vector<1x64xf32> to vector<16x64xf32>
    %29 = arith.addf %26, %28 : vector<16x64xf32>
    %30 = vector.extract_strided_slice %29 {offsets = [0, 0], sizes = [16, 32], strides = [1, 1]} : vector<16x64xf32> to vector<16x32xf32>
    %31 = vector.extract_strided_slice %29 {offsets = [0, 32], sizes = [16, 32], strides = [1, 1]} : vector<16x64xf32> to vector<16x32xf32>
    %c0_14 = arith.constant 0 : index
    %c0_15 = arith.constant 0 : index
    %32 = vector.load %arg1[%c0_14, %c0_15] : memref<2x8xf32, #tpu.memory_space<vmem>>, vector<2x8xf32>
    %33 = vector.extract_strided_slice %30 {offsets = [0, 0], sizes = [8, 32], strides = [1, 1]} : vector<16x32xf32> to vector<8x32xf32>
    %34 = vector.extract_strided_slice %31 {offsets = [0, 0], sizes = [8, 32], strides = [1, 1]} : vector<16x32xf32> to vector<8x32xf32>
    %35 = vector.extract_strided_slice %32 {offsets = [0, 0], sizes = [1, 8], strides = [1, 1]} : vector<2x8xf32> to vector<1x8xf32>
    %36 = vector.extract_strided_slice %33 {offsets = [0, 0], sizes = [8, 8], strides = [1, 1]} : vector<8x32xf32> to vector<8x8xf32>
    %37 = vector.extract_strided_slice %34 {offsets = [0, 0], sizes = [8, 8], strides = [1, 1]} : vector<8x32xf32> to vector<8x8xf32>
    %cst_16 = arith.constant dense<0.000000e+00> : vector<8x8xf32>
    %38 = tpu.matmul %36, %37, %cst_16 {dimension_numbers = #tpu.dot_dimension_numbers<[1], [1], [0], [0], [0, 0, 1, 0], [], []>} : vector<8x8xf32>, vector<8x8xf32>, vector<8x8xf32> -> vector<8x8xf32>
    %cst_17 = arith.constant 0.353553385 : f32
    %39 = vector.broadcast %cst_17 : f32 to vector<8x8xf32>
    %40 = arith.mulf %38, %39 : vector<8x8xf32>
    %41 = vector.broadcast %35 : vector<1x8xf32> to vector<8x8xf32>
    %42 = arith.addf %40, %41 : vector<8x8xf32>
    %cst_18 = arith.constant dense<0xFF800000> : vector<8xf32>
    %43 = vector.multi_reduction <maximumf>, %42, %cst_18 [1] : vector<8x8xf32> to vector<8xf32>
    %44 = vector.shape_cast %43 : vector<8xf32> to vector<8x1xf32>
    %45 = vector.broadcast %44 : vector<8x1xf32> to vector<8x8xf32>
    %46 = arith.subf %42, %45 : vector<8x8xf32>
    %47 = math.exp %46 : vector<8x8xf32>
    %cst_19 = arith.constant dense<0.000000e+00> : vector<8xf32>
    %48 = vector.multi_reduction <add>, %47, %cst_19 [1] : vector<8x8xf32> to vector<8xf32>
    %49 = vector.shape_cast %48 : vector<8xf32> to vector<8x1xf32>
    %50 = tpu.reciprocal %49 {approx = true} : vector<8x1xf32> -> vector<8x1xf32>
    %51 = vector.broadcast %50 : vector<8x1xf32> to vector<8x8xf32>
    %52 = arith.mulf %47, %51 : vector<8x8xf32>
    %cst_20 = arith.constant dense<0.000000e+00> : vector<8x8xf32>
    %53 = tpu.matmul %52, %36, %cst_20 {dimension_numbers = #tpu.dot_dimension_numbers<[1], [0], [0], [1], [0, 0, 1, 1], [], []>} : vector<8x8xf32>, vector<8x8xf32>, vector<8x8xf32> -> vector<8x8xf32>
    %54 = vector.extract_strided_slice %33 {offsets = [0, 8], sizes = [8, 8], strides = [1, 1]} : vector<8x32xf32> to vector<8x8xf32>
    %55 = vector.extract_strided_slice %34 {offsets = [0, 8], sizes = [8, 8], strides = [1, 1]} : vector<8x32xf32> to vector<8x8xf32>
    %cst_21 = arith.constant dense<0.000000e+00> : vector<8x8xf32>
    %56 = tpu.matmul %54, %55, %cst_21 {dimension_numbers = #tpu.dot_dimension_numbers<[1], [1], [0], [0], [0, 0, 1, 0], [], []>} : vector<8x8xf32>, vector<8x8xf32>, vector<8x8xf32> -> vector<8x8xf32>
    %cst_22 = arith.constant 0.353553385 : f32
    %57 = vector.broadcast %cst_22 : f32 to vector<8x8xf32>
    %58 = arith.mulf %56, %57 : vector<8x8xf32>
    %59 = vector.broadcast %35 : vector<1x8xf32> to vector<8x8xf32>
    %60 = arith.addf %58, %59 : vector<8x8xf32>
    %cst_23 = arith.constant dense<0xFF800000> : vector<8xf32>
    %61 = vector.multi_reduction <maximumf>, %60, %cst_23 [1] : vector<8x8xf32> to vector<8xf32>
    %62 = vector.shape_cast %61 : vector<8xf32> to vector<8x1xf32>
    %63 = vector.broadcast %62 : vector<8x1xf32> to vector<8x8xf32>
    %64 = arith.subf %60, %63 : vector<8x8xf32>
    %65 = math.exp %64 : vector<8x8xf32>
    %cst_24 = arith.constant dense<0.000000e+00> : vector<8xf32>
    %66 = vector.multi_reduction <add>, %65, %cst_24 [1] : vector<8x8xf32> to vector<8xf32>
    %67 = vector.shape_cast %66 : vector<8xf32> to vector<8x1xf32>
    %68 = tpu.reciprocal %67 {approx = true} : vector<8x1xf32> -> vector<8x1xf32>
    %69 = vector.broadcast %68 : vector<8x1xf32> to vector<8x8xf32>
    %70 = arith.mulf %65, %69 : vector<8x8xf32>
    %cst_25 = arith.constant dense<0.000000e+00> : vector<8x8xf32>
    %71 = tpu.matmul %70, %54, %cst_25 {dimension_numbers = #tpu.dot_dimension_numbers<[1], [0], [0], [1], [0, 0, 1, 1], [], []>} : vector<8x8xf32>, vector<8x8xf32>, vector<8x8xf32> -> vector<8x8xf32>
    %72 = vector.extract_strided_slice %33 {offsets = [0, 16], sizes = [8, 8], strides = [1, 1]} : vector<8x32xf32> to vector<8x8xf32>
    %73 = vector.extract_strided_slice %34 {offsets = [0, 16], sizes = [8, 8], strides = [1, 1]} : vector<8x32xf32> to vector<8x8xf32>
    %cst_26 = arith.constant dense<0.000000e+00> : vector<8x8xf32>
    %74 = tpu.matmul %72, %73, %cst_26 {dimension_numbers = #tpu.dot_dimension_numbers<[1], [1], [0], [0], [0, 0, 1, 0], [], []>} : vector<8x8xf32>, vector<8x8xf32>, vector<8x8xf32> -> vector<8x8xf32>
    %cst_27 = arith.constant 0.353553385 : f32
    %75 = vector.broadcast %cst_27 : f32 to vector<8x8xf32>
    %76 = arith.mulf %74, %75 : vector<8x8xf32>
    %77 = vector.broadcast %35 : vector<1x8xf32> to vector<8x8xf32>
    %78 = arith.addf %76, %77 : vector<8x8xf32>
    %cst_28 = arith.constant dense<0xFF800000> : vector<8xf32>
    %79 = vector.multi_reduction <maximumf>, %78, %cst_28 [1] : vector<8x8xf32> to vector<8xf32>
    %80 = vector.shape_cast %79 : vector<8xf32> to vector<8x1xf32>
    %81 = vector.broadcast %80 : vector<8x1xf32> to vector<8x8xf32>
    %82 = arith.subf %78, %81 : vector<8x8xf32>
    %83 = math.exp %82 : vector<8x8xf32>
    %cst_29 = arith.constant dense<0.000000e+00> : vector<8xf32>
    %84 = vector.multi_reduction <add>, %83, %cst_29 [1] : vector<8x8xf32> to vector<8xf32>
    %85 = vector.shape_cast %84 : vector<8xf32> to vector<8x1xf32>
    %86 = tpu.reciprocal %85 {approx = true} : vector<8x1xf32> -> vector<8x1xf32>
    %87 = vector.broadcast %86 : vector<8x1xf32> to vector<8x8xf32>
    %88 = arith.mulf %83, %87 : vector<8x8xf32>
    %cst_30 = arith.constant dense<0.000000e+00> : vector<8x8xf32>
    %89 = tpu.matmul %88, %72, %cst_30 {dimension_numbers = #tpu.dot_dimension_numbers<[1], [0], [0], [1], [0, 0, 1, 1], [], []>} : vector<8x8xf32>, vector<8x8xf32>, vector<8x8xf32> -> vector<8x8xf32>
    %90 = vector.extract_strided_slice %33 {offsets = [0, 24], sizes = [8, 8], strides = [1, 1]} : vector<8x32xf32> to vector<8x8xf32>
    %91 = vector.extract_strided_slice %34 {offsets = [0, 24], sizes = [8, 8], strides = [1, 1]} : vector<8x32xf32> to vector<8x8xf32>
    %cst_31 = arith.constant dense<0.000000e+00> : vector<8x8xf32>
    %92 = tpu.matmul %90, %91, %cst_31 {dimension_numbers = #tpu.dot_dimension_numbers<[1], [1], [0], [0], [0, 0, 1, 0], [], []>} : vector<8x8xf32>, vector<8x8xf32>, vector<8x8xf32> -> vector<8x8xf32>
    %cst_32 = arith.constant 0.353553385 : f32
    %93 = vector.broadcast %cst_32 : f32 to vector<8x8xf32>
    %94 = arith.mulf %92, %93 : vector<8x8xf32>
    %95 = vector.broadcast %35 : vector<1x8xf32> to vector<8x8xf32>
    %96 = arith.addf %94, %95 : vector<8x8xf32>
    %cst_33 = arith.constant dense<0xFF800000> : vector<8xf32>
    %97 = vector.multi_reduction <maximumf>, %96, %cst_33 [1] : vector<8x8xf32> to vector<8xf32>
    %98 = vector.shape_cast %97 : vector<8xf32> to vector<8x1xf32>
    %99 = vector.broadcast %98 : vector<8x1xf32> to vector<8x8xf32>
    %100 = arith.subf %96, %99 : vector<8x8xf32>
    %101 = math.exp %100 : vector<8x8xf32>
    %cst_34 = arith.constant dense<0.000000e+00> : vector<8xf32>
    %102 = vector.multi_reduction <add>, %101, %cst_34 [1] : vector<8x8xf32> to vector<8xf32>
    %103 = vector.shape_cast %102 : vector<8xf32> to vector<8x1xf32>
    %104 = tpu.reciprocal %103 {approx = true} : vector<8x1xf32> -> vector<8x1xf32>
    %105 = vector.broadcast %104 : vector<8x1xf32> to vector<8x8xf32>
    %106 = arith.mulf %101, %105 : vector<8x8xf32>
    %cst_35 = arith.constant dense<0.000000e+00> : vector<8x8xf32>
    %107 = tpu.matmul %106, %90, %cst_35 {dimension_numbers = #tpu.dot_dimension_numbers<[1], [0], [0], [1], [0, 0, 1, 1], [], []>} : vector<8x8xf32>, vector<8x8xf32>, vector<8x8xf32> -> vector<8x8xf32>
    %108 = tpu.concatenate %53, %71, %89, %107 in 1 : vector<8x8xf32>, vector<8x8xf32>, vector<8x8xf32>, vector<8x8xf32> -> vector<8x32xf32>
    %109 = vector.extract_strided_slice %30 {offsets = [8, 0], sizes = [8, 32], strides = [1, 1]} : vector<16x32xf32> to vector<8x32xf32>
    %110 = vector.extract_strided_slice %31 {offsets = [8, 0], sizes = [8, 32], strides = [1, 1]} : vector<16x32xf32> to vector<8x32xf32>
    %111 = vector.extract_strided_slice %32 {offsets = [1, 0], sizes = [1, 8], strides = [1, 1]} : vector<2x8xf32> to vector<1x8xf32>
    %112 = vector.extract_strided_slice %109 {offsets = [0, 0], sizes = [8, 8], strides = [1, 1]} : vector<8x32xf32> to vector<8x8xf32>
    %113 = vector.extract_strided_slice %110 {offsets = [0, 0], sizes = [8, 8], strides = [1, 1]} : vector<8x32xf32> to vector<8x8xf32>
    %cst_36 = arith.constant dense<0.000000e+00> : vector<8x8xf32>
    %114 = tpu.matmul %112, %113, %cst_36 {dimension_numbers = #tpu.dot_dimension_numbers<[1], [1], [0], [0], [0, 0, 1, 0], [], []>} : vector<8x8xf32>, vector<8x8xf32>, vector<8x8xf32> -> vector<8x8xf32>
    %cst_37 = arith.constant 0.353553385 : f32
    %115 = vector.broadcast %cst_37 : f32 to vector<8x8xf32>
    %116 = arith.mulf %114, %115 : vector<8x8xf32>
    %117 = vector.broadcast %111 : vector<1x8xf32> to vector<8x8xf32>
    %118 = arith.addf %116, %117 : vector<8x8xf32>
    %cst_38 = arith.constant dense<0xFF800000> : vector<8xf32>
    %119 = vector.multi_reduction <maximumf>, %118, %cst_38 [1] : vector<8x8xf32> to vector<8xf32>
    %120 = vector.shape_cast %119 : vector<8xf32> to vector<8x1xf32>
    %121 = vector.broadcast %120 : vector<8x1xf32> to vector<8x8xf32>
    %122 = arith.subf %118, %121 : vector<8x8xf32>
    %123 = math.exp %122 : vector<8x8xf32>
    %cst_39 = arith.constant dense<0.000000e+00> : vector<8xf32>
    %124 = vector.multi_reduction <add>, %123, %cst_39 [1] : vector<8x8xf32> to vector<8xf32>
    %125 = vector.shape_cast %124 : vector<8xf32> to vector<8x1xf32>
    %126 = tpu.reciprocal %125 {approx = true} : vector<8x1xf32> -> vector<8x1xf32>
    %127 = vector.broadcast %126 : vector<8x1xf32> to vector<8x8xf32>
    %128 = arith.mulf %123, %127 : vector<8x8xf32>
    %cst_40 = arith.constant dense<0.000000e+00> : vector<8x8xf32>
    %129 = tpu.matmul %128, %112, %cst_40 {dimension_numbers = #tpu.dot_dimension_numbers<[1], [0], [0], [1], [0, 0, 1, 1], [], []>} : vector<8x8xf32>, vector<8x8xf32>, vector<8x8xf32> -> vector<8x8xf32>
    %130 = vector.extract_strided_slice %109 {offsets = [0, 8], sizes = [8, 8], strides = [1, 1]} : vector<8x32xf32> to vector<8x8xf32>
    %131 = vector.extract_strided_slice %110 {offsets = [0, 8], sizes = [8, 8], strides = [1, 1]} : vector<8x32xf32> to vector<8x8xf32>
    %cst_41 = arith.constant dense<0.000000e+00> : vector<8x8xf32>
    %132 = tpu.matmul %130, %131, %cst_41 {dimension_numbers = #tpu.dot_dimension_numbers<[1], [1], [0], [0], [0, 0, 1, 0], [], []>} : vector<8x8xf32>, vector<8x8xf32>, vector<8x8xf32> -> vector<8x8xf32>
    %cst_42 = arith.constant 0.353553385 : f32
    %133 = vector.broadcast %cst_42 : f32 to vector<8x8xf32>
    %134 = arith.mulf %132, %133 : vector<8x8xf32>
    %135 = vector.broadcast %111 : vector<1x8xf32> to vector<8x8xf32>
    %136 = arith.addf %134, %135 : vector<8x8xf32>
    %cst_43 = arith.constant dense<0xFF800000> : vector<8xf32>
    %137 = vector.multi_reduction <maximumf>, %136, %cst_43 [1] : vector<8x8xf32> to vector<8xf32>
    %138 = vector.shape_cast %137 : vector<8xf32> to vector<8x1xf32>
    %139 = vector.broadcast %138 : vector<8x1xf32> to vector<8x8xf32>
    %140 = arith.subf %136, %139 : vector<8x8xf32>
    %141 = math.exp %140 : vector<8x8xf32>
    %cst_44 = arith.constant dense<0.000000e+00> : vector<8xf32>
    %142 = vector.multi_reduction <add>, %141, %cst_44 [1] : vector<8x8xf32> to vector<8xf32>
    %143 = vector.shape_cast %142 : vector<8xf32> to vector<8x1xf32>
    %144 = tpu.reciprocal %143 {approx = true} : vector<8x1xf32> -> vector<8x1xf32>
    %145 = vector.broadcast %144 : vector<8x1xf32> to vector<8x8xf32>
    %146 = arith.mulf %141, %145 : vector<8x8xf32>
    %cst_45 = arith.constant dense<0.000000e+00> : vector<8x8xf32>
    %147 = tpu.matmul %146, %130, %cst_45 {dimension_numbers = #tpu.dot_dimension_numbers<[1], [0], [0], [1], [0, 0, 1, 1], [], []>} : vector<8x8xf32>, vector<8x8xf32>, vector<8x8xf32> -> vector<8x8xf32>
    %148 = vector.extract_strided_slice %109 {offsets = [0, 16], sizes = [8, 8], strides = [1, 1]} : vector<8x32xf32> to vector<8x8xf32>
    %149 = vector.extract_strided_slice %110 {offsets = [0, 16], sizes = [8, 8], strides = [1, 1]} : vector<8x32xf32> to vector<8x8xf32>
    %cst_46 = arith.constant dense<0.000000e+00> : vector<8x8xf32>
    %150 = tpu.matmul %148, %149, %cst_46 {dimension_numbers = #tpu.dot_dimension_numbers<[1], [1], [0], [0], [0, 0, 1, 0], [], []>} : vector<8x8xf32>, vector<8x8xf32>, vector<8x8xf32> -> vector<8x8xf32>
    %cst_47 = arith.constant 0.353553385 : f32
    %151 = vector.broadcast %cst_47 : f32 to vector<8x8xf32>
    %152 = arith.mulf %150, %151 : vector<8x8xf32>
    %153 = vector.broadcast %111 : vector<1x8xf32> to vector<8x8xf32>
    %154 = arith.addf %152, %153 : vector<8x8xf32>
    %cst_48 = arith.constant dense<0xFF800000> : vector<8xf32>
    %155 = vector.multi_reduction <maximumf>, %154, %cst_48 [1] : vector<8x8xf32> to vector<8xf32>
    %156 = vector.shape_cast %155 : vector<8xf32> to vector<8x1xf32>
    %157 = vector.broadcast %156 : vector<8x1xf32> to vector<8x8xf32>
    %158 = arith.subf %154, %157 : vector<8x8xf32>
    %159 = math.exp %158 : vector<8x8xf32>
    %cst_49 = arith.constant dense<0.000000e+00> : vector<8xf32>
    %160 = vector.multi_reduction <add>, %159, %cst_49 [1] : vector<8x8xf32> to vector<8xf32>
    %161 = vector.shape_cast %160 : vector<8xf32> to vector<8x1xf32>
    %162 = tpu.reciprocal %161 {approx = true} : vector<8x1xf32> -> vector<8x1xf32>
    %163 = vector.broadcast %162 : vector<8x1xf32> to vector<8x8xf32>
    %164 = arith.mulf %159, %163 : vector<8x8xf32>
    %cst_50 = arith.constant dense<0.000000e+00> : vector<8x8xf32>
    %165 = tpu.matmul %164, %148, %cst_50 {dimension_numbers = #tpu.dot_dimension_numbers<[1], [0], [0], [1], [0, 0, 1, 1], [], []>} : vector<8x8xf32>, vector<8x8xf32>, vector<8x8xf32> -> vector<8x8xf32>
    %166 = vector.extract_strided_slice %109 {offsets = [0, 24], sizes = [8, 8], strides = [1, 1]} : vector<8x32xf32> to vector<8x8xf32>
    %167 = vector.extract_strided_slice %110 {offsets = [0, 24], sizes = [8, 8], strides = [1, 1]} : vector<8x32xf32> to vector<8x8xf32>
    %cst_51 = arith.constant dense<0.000000e+00> : vector<8x8xf32>
    %168 = tpu.matmul %166, %167, %cst_51 {dimension_numbers = #tpu.dot_dimension_numbers<[1], [1], [0], [0], [0, 0, 1, 0], [], []>} : vector<8x8xf32>, vector<8x8xf32>, vector<8x8xf32> -> vector<8x8xf32>
    %cst_52 = arith.constant 0.353553385 : f32
    %169 = vector.broadcast %cst_52 : f32 to vector<8x8xf32>
    %170 = arith.mulf %168, %169 : vector<8x8xf32>
    %171 = vector.broadcast %111 : vector<1x8xf32> to vector<8x8xf32>
    %172 = arith.addf %170, %171 : vector<8x8xf32>
    %cst_53 = arith.constant dense<0xFF800000> : vector<8xf32>
    %173 = vector.multi_reduction <maximumf>, %172, %cst_53 [1] : vector<8x8xf32> to vector<8xf32>
    %174 = vector.shape_cast %173 : vector<8xf32> to vector<8x1xf32>
    %175 = vector.broadcast %174 : vector<8x1xf32> to vector<8x8xf32>
    %176 = arith.subf %172, %175 : vector<8x8xf32>
    %177 = math.exp %176 : vector<8x8xf32>
    %cst_54 = arith.constant dense<0.000000e+00> : vector<8xf32>
    %178 = vector.multi_reduction <add>, %177, %cst_54 [1] : vector<8x8xf32> to vector<8xf32>
    %179 = vector.shape_cast %178 : vector<8xf32> to vector<8x1xf32>
    %180 = tpu.reciprocal %179 {approx = true} : vector<8x1xf32> -> vector<8x1xf32>
    %181 = vector.broadcast %180 : vector<8x1xf32> to vector<8x8xf32>
    %182 = arith.mulf %177, %181 : vector<8x8xf32>
    %cst_55 = arith.constant dense<0.000000e+00> : vector<8x8xf32>
    %183 = tpu.matmul %182, %166, %cst_55 {dimension_numbers = #tpu.dot_dimension_numbers<[1], [0], [0], [1], [0, 0, 1, 1], [], []>} : vector<8x8xf32>, vector<8x8xf32>, vector<8x8xf32> -> vector<8x8xf32>
    %184 = tpu.concatenate %129, %147, %165, %183 in 1 : vector<8x8xf32>, vector<8x8xf32>, vector<8x8xf32>, vector<8x8xf32> -> vector<8x32xf32>
    %185 = tpu.concatenate %108, %184 in 0 : vector<8x32xf32>, vector<8x32xf32> -> vector<16x32xf32>
    %c0_56 = arith.constant 0 : index
    %c0_57 = arith.constant 0 : index
    %186 = vector.load %arg6[%c0_56, %c0_57] : memref<32x32xf32, #tpu.memory_space<vmem>>, vector<32x32xf32>
    %cst_58 = arith.constant dense<0.000000e+00> : vector<16x32xf32>
    %187 = tpu.matmul %185, %186, %cst_58 {dimension_numbers = #tpu.dot_dimension_numbers<[1], [0], [0], [1], [0, 0, 1, 1], [], []>} : vector<16x32xf32>, vector<32x32xf32>, vector<16x32xf32> -> vector<16x32xf32>
    %c0_59 = arith.constant 0 : index
    %c0_60 = arith.constant 0 : index
    %188 = vector.load %arg7[%c0_59, %c0_60] : memref<1x32xf32, #tpu.memory_space<vmem>>, vector<1x32xf32>
    %189 = vector.broadcast %188 : vector<1x32xf32> to vector<16x32xf32>
    %190 = arith.addf %187, %189 : vector<16x32xf32>
    %191 = arith.addf %24, %190 : vector<16x32xf32>
    %cst_61 = arith.constant dense<0.000000e+00> : vector<16xf32>
    %192 = vector.multi_reduction <add>, %191, %cst_61 [1] : vector<16x32xf32> to vector<16xf32>
    %193 = vector.shape_cast %192 : vector<16xf32> to vector<16x1xf32>
    %cst_62 = arith.constant 3.200000e+01 : f32
    %194 = vector.broadcast %cst_62 : f32 to vector<16x1xf32>
    %195 = arith.divf %193, %194 : vector<16x1xf32>
    %196 = vector.broadcast %195 : vector<16x1xf32> to vector<16x32xf32>
    %197 = arith.subf %191, %196 : vector<16x32xf32>
    %198 = arith.mulf %197, %197 : vector<16x32xf32>
    %cst_63 = arith.constant dense<0.000000e+00> : vector<16xf32>
    %199 = vector.multi_reduction <add>, %198, %cst_63 [1] : vector<16x32xf32> to vector<16xf32>
    %200 = vector.shape_cast %199 : vector<16xf32> to vector<16x1xf32>
    %cst_64 = arith.constant 3.200000e+01 : f32
    %201 = vector.broadcast %cst_64 : f32 to vector<16x1xf32>
    %202 = arith.divf %200, %201 : vector<16x1xf32>
    %203 = vector.broadcast %195 : vector<16x1xf32> to vector<16x32xf32>
    %204 = arith.subf %191, %203 : vector<16x32xf32>
    %cst_65 = arith.constant 9.99999974E-6 : f32
    %205 = vector.broadcast %cst_65 : f32 to vector<16x1xf32>
    %206 = arith.addf %202, %205 : vector<16x1xf32>
    %207 = math.rsqrt %206 : vector<16x1xf32>
    %208 = vector.broadcast %207 : vector<16x1xf32> to vector<16x32xf32>
    %209 = arith.mulf %204, %208 : vector<16x32xf32>
    %c0_66 = arith.constant 0 : index
    %c0_67 = arith.constant 0 : index
    %210 = vector.load %arg8[%c0_66, %c0_67] : memref<1x32xf32, #tpu.memory_space<vmem>>, vector<1x32xf32>
    %211 = vector.broadcast %210 : vector<1x32xf32> to vector<16x32xf32>
    %212 = arith.mulf %209, %211 : vector<16x32xf32>
    %c0_68 = arith.constant 0 : index
    %c0_69 = arith.constant 0 : index
    %213 = vector.load %arg9[%c0_68, %c0_69] : memref<1x32xf32, #tpu.memory_space<vmem>>, vector<1x32xf32>
    %214 = vector.broadcast %213 : vector<1x32xf32> to vector<16x32xf32>
    %215 = arith.addf %212, %214 : vector<16x32xf32>
    %c0_70 = arith.constant 0 : index
    %c0_71 = arith.constant 0 : index
    %216 = vector.load %arg10[%c0_70, %c0_71] : memref<32x64xf32, #tpu.memory_space<vmem>>, vector<32x64xf32>
    %cst_72 = arith.constant dense<0.000000e+00> : vector<16x64xf32>
    %217 = tpu.matmul %215, %216, %cst_72 {dimension_numbers = #tpu.dot_dimension_numbers<[1], [0], [0], [1], [0, 0, 1, 1], [], []>} : vector<16x32xf32>, vector<32x64xf32>, vector<16x64xf32> -> vector<16x64xf32>
    %c0_73 = arith.constant 0 : index
    %c0_74 = arith.constant 0 : index
    %218 = vector.load %arg11[%c0_73, %c0_74] : memref<1x64xf32, #tpu.memory_space<vmem>>, vector<1x64xf32>
    %219 = vector.broadcast %218 : vector<1x64xf32> to vector<16x64xf32>
    %220 = arith.addf %217, %219 : vector<16x64xf32>
    %cst_75 = arith.constant 5.000000e-01 : f32
    %221 = vector.broadcast %cst_75 : f32 to vector<16x64xf32>
    %222 = arith.mulf %221, %220 : vector<16x64xf32>
    %cst_76 = arith.constant 2.000000e+00 : f32
    %223 = math.sqrt %cst_76 : f32
    %224 = vector.broadcast %223 : f32 to vector<16x64xf32>
    %225 = arith.divf %220, %224 : vector<16x64xf32>
    %226 = math.erf %225 : vector<16x64xf32>
    %cst_77 = arith.constant 1.000000e+00 : f32
    %227 = vector.broadcast %cst_77 : f32 to vector<16x64xf32>
    %228 = arith.addf %227, %226 : vector<16x64xf32>
    %229 = arith.mulf %222, %228 : vector<16x64xf32>
    %c0_78 = arith.constant 0 : index
    %c0_79 = arith.constant 0 : index
    %230 = vector.load %arg12[%c0_78, %c0_79] : memref<64x32xf32, #tpu.memory_space<vmem>>, vector<64x32xf32>
    %cst_80 = arith.constant dense<0.000000e+00> : vector<16x32xf32>
    %231 = tpu.matmul %229, %230, %cst_80 {dimension_numbers = #tpu.dot_dimension_numbers<[1], [0], [0], [1], [0, 0, 1, 1], [], []>} : vector<16x64xf32>, vector<64x32xf32>, vector<16x32xf32> -> vector<16x32xf32>
    %c0_81 = arith.constant 0 : index
    %c0_82 = arith.constant 0 : index
    %232 = vector.load %arg13[%c0_81, %c0_82] : memref<1x32xf32, #tpu.memory_space<vmem>>, vector<1x32xf32>
    %233 = vector.broadcast %232 : vector<1x32xf32> to vector<16x32xf32>
    %234 = arith.addf %231, %233 : vector<16x32xf32>
    %235 = arith.addf %215, %234 : vector<16x32xf32>
    %c0_83 = arith.constant 0 : index
    %c0_84 = arith.constant 0 : index
    %236 = vector.load %arg14[%c0_83, %c0_84] : memref<16x32xf32, #tpu.memory_space<vmem>>, vector<16x32xf32>
    tpu.vector_store %arg14[%c0_83, %c0_84], %235 {strides = array<i32>} : memref<16x32xf32, #tpu.memory_space<vmem>>, vector<16x32xf32>,
    return
  }
}

</mosaic_0001>

<llo_original>
// kernel: bert_forward.3
$region0: #{bert_forward.3}
  #allocation0 [shape = 'u32[]', space=smem, size = 0x4, offset = 0x4, fixed_abs, tag = 'smem constant byte address 0x4 - core index']
  #allocation1 [shape = 'u32[144,128]{1,0:T(1,128)}', space=vmem, size = 0x12000, scoped, tag = 'internal scratch']
  %s0 = inlined_call_operand.vmem [shape: f32[16,32], index: 0, kind: input, shape index: {}]
  %s1 = inlined_call_operand.vmem [shape: f32[8,32], index: 1, kind: input, shape index: {}]
  %s2 = inlined_call_operand.vmem [shape: f32[1,32], index: 2, kind: input, shape index: {}]
  %s3 = inlined_call_operand.vmem [shape: f32[1,32], index: 3, kind: input, shape index: {}]
  %s4 = inlined_call_operand.vmem [shape: f32[16,32], index: 4, kind: output, shape index: {}]
  %s5 = sld [smem:[#allocation0]]
  $region26: #{bert_forward.3} parent=0
    _
  %s7 = ssub.s32 1, %s5
  %s8 = scalar_select 0, %s7, %s5
  // Predicated region
  $region2: #{bert_forward.3} parent=0 // pred_check
    _
  $region3: #{bert_forward.3} parent=0 // pred_check_branch
    %10 = sbr.rel (0) target = $region5
  $region4: #{bert_forward.3} parent=0 // pred_region
    _
  $region5: #{bert_forward.3} parent=0 // pred_fallthru
    _
  // Predicated region
  $region6: #{bert_forward.3} parent=0 // pred_check
    _
  $region7: #{bert_forward.3} parent=0 // pred_check_branch
    %12 = sbr.rel (0) target = $region9
  $region8: #{bert_forward.3} parent=0 // pred_region
    _
  $region9: #{bert_forward.3} parent=0 // pred_fallthru
    _
  // Predicated region
  $region10: #{bert_forward.3} parent=0 // pred_check
    _
  $region11: #{bert_forward.3} parent=0 // pred_check_branch
    %14 = sbr.rel (0) target = $region13
  $region12: #{bert_forward.3} parent=0 // pred_region
    _
  $region13: #{bert_forward.3} parent=0 // pred_fallthru
    _
  // Predicated region
  $region14: #{bert_forward.3} parent=0 // pred_check
    _
  $region15: #{bert_forward.3} parent=0 // pred_check_branch
    %16 = sbr.rel (0) target = $region17
  $region16: #{bert_forward.3} parent=0 // pred_region
    _
  $region17: #{bert_forward.3} parent=0 // pred_fallthru
    _
  %v17 = vld [vmem:[%s1] sm:$0xff]
  %v18 = vld [vmem:[%s0] sm:$0xff]
  %v19 = vld [vmem:[%s0 + $0x8] sm:$0xff]
  %v20 = vadd.f32 %v18, %v17
  %v21 = vadd.f32 %v19, %v17
  %vm22 = vcmask 261120
  %v23 = vsel %vm22, %v20, 0.0
  %24 = vadd.xlane.f32.xlu0 %v23
  %v25 = vpop.xlane.xlu0 %24
  %v26 = vsel %vm22, %v21, 0.0
  %27 = vadd.xlane.f32.xlu0 %v26
  %v28 = vpop.xlane.xlu0 %27
  %v29 = vrcp.pop 32.0
  %v30 = vmul.f32 %v25, %v29
  %v31 = vmul.f32 %v28, %v29
  %v32 = vsub.f32 %v20, %v30
  %v33 = vsub.f32 %v21, %v31
  %v34 = vmul.f32 %v32, %v32
  %v35 = vmul.f32 %v33, %v33
  %v36 = vsel %vm22, %v34, 0.0
  %37 = vadd.xlane.f32.xlu0 %v36
  %v38 = vpop.xlane.xlu0 %37
  %v39 = vsel %vm22, %v35, 0.0
  %40 = vadd.xlane.f32.xlu0 %v39
  %v41 = vpop.xlane.xlu0 %40
  %v42 = vmul.f32 %v38, %v29
  %v43 = vmul.f32 %v41, %v29
  %v44 = vadd.f32 %v42, 1e-12
  %v45 = vadd.f32 %v43, 1e-12
  %v46 = vrsqrt.pop %v44
  %v47 = vrsqrt.pop %v45
  %v48 = vmul.f32 %v32, %v46
  %v49 = vmul.f32 %v33, %v47
  %v50 = vld [vmem:[%s2] sm:$0x1]
  %v52 = vlaneseq
  %v53 = vshrl.u32 %v52, 7
  %v54 = vsub.s32 0, %v53
  %v55 = vrot.slane %v50, %v54
  %v57 = vmul.f32 %v48, %v55
  %v58 = vmul.f32 %v49, %v55
  %v59 = vld [vmem:[%s3] sm:$0x1]
  %v61 = vlaneseq
  %v62 = vshrl.u32 %v61, 7
  %v63 = vsub.s32 0, %v62
  %v64 = vrot.slane %v59, %v63
  %v66 = vadd.f32 %v57, %v64
  %v67 = vadd.f32 %v58, %v64
  %68 = vst.msk [vmem:[%s4] sm:$0xff] %vm22, %v66
  %69 = vst.msk [vmem:[%s4 + $0x8] sm:$0xff] %vm22, %v67
  // Predicated region
  $region18: #{bert_forward.3} parent=0 // pred_check
    _
  $region19: #{bert_forward.3} parent=0 // pred_check_branch
    %71 = sbr.rel (0) target = $region21
  $region20: #{bert_forward.3} parent=0 // pred_region
    _
  $region21: #{bert_forward.3} parent=0 // pred_fallthru
    _
  // Predicated region
  $region22: #{bert_forward.3} parent=0 // pred_check
    _
  $region23: #{bert_forward.3} parent=0 // pred_check_branch
    %73 = sbr.rel (0) target = $region25
  $region24: #{bert_forward.3} parent=0 // pred_region
    _
  $region25: #{bert_forward.3} parent=0 // pred_fallthru
    _

// kernel: bert_forward.5
$region0: #{bert_forward.5}
  #allocation0 [shape = 'u32[]', space=smem, size = 0x4, offset = 0x4, fixed_abs, tag = 'smem constant byte address 0x4 - core index']
  #allocation1 [shape = 'u32[144,128]{1,0:T(1,128)}', space=vmem, size = 0x12000, scoped, tag = 'internal scratch']
  %s0 = inlined_call_operand.vmem [shape: f32[16,32], index: 0, kind: input, shape index: {}]
  %s1 = inlined_call_operand.vmem [shape: f32[2,8], index: 1, kind: input, shape index: {}]
  %s2 = inlined_call_operand.vmem [shape: f32[1,32], index: 2, kind: input, shape index: {}]
  %s3 = inlined_call_operand.vmem [shape: f32[1,32], index: 3, kind: input, shape index: {}]
  %s4 = inlined_call_operand.vmem [shape: f32[32,64], index: 4, kind: input, shape index: {}]
  %s5 = inlined_call_operand.vmem [shape: f32[1,64], index: 5, kind: input, shape index: {}]
  %s6 = inlined_call_operand.vmem [shape: f32[32,32], index: 6, kind: input, shape index: {}]
  %s7 = inlined_call_operand.vmem [shape: f32[1,32], index: 7, kind: input, shape index: {}]
  %s8 = inlined_call_operand.vmem [shape: f32[1,32], index: 8, kind: input, shape index: {}]
  %s9 = inlined_call_operand.vmem [shape: f32[1,32], index: 9, kind: input, shape index: {}]
  %s10 = inlined_call_operand.vmem [shape: f32[32,64], index: 10, kind: input, shape index: {}]
  %s11 = inlined_call_operand.vmem [shape: f32[1,64], index: 11, kind: input, shape index: {}]
  %s12 = inlined_call_operand.vmem [shape: f32[64,32], index: 12, kind: input, shape index: {}]
  %s13 = inlined_call_operand.vmem [shape: f32[1,32], index: 13, kind: input, shape index: {}]
  %s14 = inlined_call_operand.hbm [shape: f32[16,32], index: 14, kind: output, shape index: {}]
  %s15 = sld [smem:[#allocation0]]
  $region66: #{bert_forward.5} parent=0
    _
  %s17 = ssub.s32 1, %s15
  %s18 = scalar_select 0, %s17, %s15
  $region1: #{bert_forward.5} parent=0
    #allocation2 [shape = 'u8[8192]{0}', space=vmem, size = 0x2000, scoped, tag = 'output window, operand 0, single buffered']
    #allocation3 [shape = 's32[1]{0}', space=sflag, size = 0x4, scoped, tag = 'scoped memory for bert_forward.5']
    %19 = vsyncpa [#allocation3], 0
    // Predicated region
    $region2: #{bert_forward.5} parent=1 // pred_check
      _
    $region3: #{bert_forward.5} parent=1 // pred_check_branch
      %21 = sbr.rel (0) target = $region5
    $region4: #{bert_forward.5} parent=1 // pred_region
      _
    $region5: #{bert_forward.5} parent=1 // pred_fallthru
      _
    // Predicated region
    $region6: #{bert_forward.5} parent=1 // pred_check
      _
    $region7: #{bert_forward.5} parent=1 // pred_check_branch
      %23 = sbr.rel (0) target = $region9
    $region8: #{bert_forward.5} parent=1 // pred_region
      _
    $region9: #{bert_forward.5} parent=1 // pred_fallthru
      _
    // Predicated region
    $region10: #{bert_forward.5} parent=1 // pred_check
      _
    $region11: #{bert_forward.5} parent=1 // pred_check_branch
      %25 = sbr.rel (0) target = $region13
    $region12: #{bert_forward.5} parent=1 // pred_region
      _
    $region13: #{bert_forward.5} parent=1 // pred_fallthru
      _
    // Predicated region
    $region14: #{bert_forward.5} parent=1 // pred_check
      _
    $region15: #{bert_forward.5} parent=1 // pred_check_branch
      %27 = sbr.rel (0) target = $region17
    $region16: #{bert_forward.5} parent=1 // pred_region
      _
    $region17: #{bert_forward.5} parent=1 // pred_fallthru
      _
    // Predicated region
    $region18: #{bert_forward.5} parent=1 // pred_check
      _
    $region19: #{bert_forward.5} parent=1 // pred_check_branch
      %29 = sbr.rel (0) target = $region21
    $region20: #{bert_forward.5} parent=1 // pred_region
      _
    $region21: #{bert_forward.5} parent=1 // pred_fallthru
      _
    // Predicated region
    $region22: #{bert_forward.5} parent=1 // pred_check
      _
    $region23: #{bert_forward.5} parent=1 // pred_check_branch
      %31 = sbr.rel (0) target = $region25
    $region24: #{bert_forward.5} parent=1 // pred_region
      _
    $region25: #{bert_forward.5} parent=1 // pred_fallthru
      _
    // Predicated region
    $region26: #{bert_forward.5} parent=1 // pred_check
      _
    $region27: #{bert_forward.5} parent=1 // pred_check_branch
      %33 = sbr.rel (0) target = $region29
    $region28: #{bert_forward.5} parent=1 // pred_region
      _
    $region29: #{bert_forward.5} parent=1 // pred_fallthru
      _
    // Predicated region
    $region30: #{bert_forward.5} parent=1 // pred_check
      _
    $region31: #{bert_forward.5} parent=1 // pred_check_branch
      %35 = sbr.rel (0) target = $region33
    $region32: #{bert_forward.5} parent=1 // pred_region
      _
    $region33: #{bert_forward.5} parent=1 // pred_fallthru
      _
    // Predicated region
    $region34: #{bert_forward.5} parent=1 // pred_check
      _
    $region35: #{bert_forward.5} parent=1 // pred_check_branch
      %37 = sbr.rel (0) target = $region37
    $region36: #{bert_forward.5} parent=1 // pred_region
      _
    $region37: #{bert_forward.5} parent=1 // pred_fallthru
      _
    // Predicated region
    $region38: #{bert_forward.5} parent=1 // pred_check
      _
    $region39: #{bert_forward.5} parent=1 // pred_check_branch
      %39 = sbr.rel (0) target = $region41
    $region40: #{bert_forward.5} parent=1 // pred_region
      _
    $region41: #{bert_forward.5} parent=1 // pred_fallthru
      _
    // Predicated region
    $region42: #{bert_forward.5} parent=1 // pred_check
      _
    $region43: #{bert_forward.5} parent=1 // pred_check_branch
      %41 = sbr.rel (0) target = $region45
    $region44: #{bert_forward.5} parent=1 // pred_region
      _
    $region45: #{bert_forward.5} parent=1 // pred_fallthru
      _
    // Predicated region
    $region46: #{bert_forward.5} parent=1 // pred_check
      _
    $region47: #{bert_forward.5} parent=1 // pred_check_branch
      %43 = sbr.rel (0) target = $region49
    $region48: #{bert_forward.5} parent=1 // pred_region
      _
    $region49: #{bert_forward.5} parent=1 // pred_fallthru
      _
    // Predicated region
    $region50: #{bert_forward.5} parent=1 // pred_check
      _
    $region51: #{bert_forward.5} parent=1 // pred_check_branch
      %45 = sbr.rel (0) target = $region53
    $region52: #{bert_forward.5} parent=1 // pred_region
      _
    $region53: #{bert_forward.5} parent=1 // pred_fallthru
      _
    // Predicated region
    $region54: #{bert_forward.5} parent=1 // pred_check
      _
    $region55: #{bert_forward.5} parent=1 // pred_check_branch
      %47 = sbr.rel (0) target = $region57
    $region56: #{bert_forward.5} parent=1 // pred_region
      _
    $region57: #{bert_forward.5} parent=1 // pred_fallthru
      _
    %v48 = vld [vmem:[%s0] sm:$0xff]
    %v49 = vld [vmem:[%s0 + $0x8] sm:$0xff]
    %vm50 = vcmask 261120
    %v51 = vsel %vm50, %v48, 0.0
    %52 = vadd.xlane.f32.xlu0 %v51
    %v53 = vpop.xlane.xlu0 %52
    %v54 = vsel %vm50, %v49, 0.0
    %55 = vadd.xlane.f32.xlu0 %v54
    %v56 = vpop.xlane.xlu0 %55
    %v57 = vrcp.pop 32.0
    %v58 = vmul.f32 %v53, %v57
    %v59 = vmul.f32 %v56, %v57
    %v60 = vsub.f32 %v48, %v58
    %v61 = vsub.f32 %v49, %v59
    %v62 = vmul.f32 %v60, %v60
    %v63 = vmul.f32 %v61, %v61
    %v64 = vsel %vm50, %v62, 0.0
    %65 = vadd.xlane.f32.xlu0 %v64
    %v66 = vpop.xlane.xlu0 %65
    %v67 = vsel %vm50, %v63, 0.0
    %68 = vadd.xlane.f32.xlu0 %v67
    %v69 = vpop.xlane.xlu0 %68
    %v70 = vmul.f32 %v66, %v57
    %v71 = vmul.f32 %v69, %v57
    %v72 = vadd.f32 %v70, 1e-05
    %v73 = vadd.f32 %v71, 1e-05
    %v74 = vrsqrt.pop %v72
    %v75 = vrsqrt.pop %v73
    %v76 = vmul.f32 %v60, %v74
    %v77 = vmul.f32 %v61, %v75
    %v78 = vld [vmem:[%s2] sm:$0x1]
    %v80 = vlaneseq
    %v81 = vshrl.u32 %v80, 7
    %v82 = vsub.s32 0, %v81
    %v83 = vrot.slane %v78, %v82
    %v85 = vmul.f32 %v76, %v83
    %v86 = vmul.f32 %v77, %v83
    %v87 = vld [vmem:[%s3] sm:$0x1]
    %v89 = vlaneseq
    %v90 = vshrl.u32 %v89, 7
    %v91 = vsub.s32 0, %v90
    %v92 = vrot.slane %v87, %v91
    %v94 = vadd.f32 %v85, %v92
    %v95 = vadd.f32 %v86, %v92
    %v96 = vld [vmem:[%s4] sm:$0xff]
    %v97 = vld [vmem:[%s4 + $0x8] sm:$0xff]
    %v98 = vld [vmem:[%s4 + $0x10] sm:$0xff]
    %v99 = vld [vmem:[%s4 + $0x18] sm:$0xff]
    %v100 = vld [vmem:[%s5] sm:$0x1]
    %v102 = vlaneseq
    %v103 = vshrl.u32 %v102, 7
    %v104 = vsub.s32 0, %v103
    %v105 = vrot.slane %v100, %v104
    %v108 = vsel %vm50, %v94, 0
    %v111 = vsel %vm50, %v95, 0
    %113 = vmatprep.subr.mxu0 0.0
    %114 = vmatpush1.msra.mxu0 0.0
    %115 = vmatprep.subr.mxu0 0.0
    %116 = vmatpush1.msra.mxu0 0.0
    %117 = vmatprep.subr.mxu0 0.0
    %118 = vmatpush1.msra.mxu0 0.0
    %119 = vmatprep.subr.mxu0 0.0
    %120 = vmatpush1.msra.mxu0 0.0
    %121 = vmatprep.subr.mxu0 0.0
    %122 = vmatpush1.msra.mxu0 0.0
    %123 = vmatprep.subr.mxu0 0.0
    %124 = vmatpush1.msra.mxu0 0.0
    %125 = vmatprep.subr.mxu0 0.0
    %126 = vmatpush1.msra.mxu0 0.0
    %127 = vmatprep.subr.mxu0 0.0
    %128 = vmatpush1.msra.mxu0 0.0
    %129 = vmatprep.subr.mxu0 0.0
    %130 = vmatpush1.msra.mxu0 0.0
    %131 = vmatprep.subr.mxu0 0.0
    %132 = vmatpush1.msra.mxu0 0.0
    %133 = vmatprep.subr.mxu0 0.0
    %134 = vmatpush1.msra.mxu0 0.0
    %135 = vmatprep.subr.mxu0 0.0
    %136 = vmatpush1.msra.mxu0 0.0
    %137 = vmatprep.subr.mxu0 0.0
    %138 = vmatpush1.msra.mxu0 %v99
    %139 = vmatprep.subr.mxu0 0.0
    %140 = vmatpush1.msra.mxu0 %v98
    %141 = vmatprep.subr.mxu0 0.0
    %142 = vmatpush1.msra.mxu0 %v97
    %143 = vmatprep.subr.mxu0 0.0
    %144 = vmatpush1.msra.mxu0 %v96
    %145 = vmatprep.subr.mxu0 0.0
    %146 = vmatpush2.msra.mxu0 0.0
    %147 = vmatprep.subr.mxu0 0.0
    %148 = vmatpush2.msra.mxu0 0.0
    %149 = vmatprep.subr.mxu0 0.0
    %150 = vmatpush2.msra.mxu0 0.0
    %151 = vmatprep.subr.mxu0 0.0
    %152 = vmatpush2.msra.mxu0 0.0
    %153 = vmatprep.subr.mxu0 0.0
    %154 = vmatpush2.msra.mxu0 0.0
    %155 = vmatprep.subr.mxu0 0.0
    %156 = vmatpush2.msra.mxu0 0.0
    %157 = vmatprep.subr.mxu0 0.0
    %158 = vmatpush2.msra.mxu0 0.0
    %159 = vmatprep.subr.mxu0 0.0
    %160 = vmatpush2.msra.mxu0 0.0
    %161 = vmatprep.subr.mxu0 0.0
    %162 = vmatpush2.msra.mxu0 0.0
    %163 = vmatprep.subr.mxu0 0.0
    %164 = vmatpush2.msra.mxu0 0.0
    %165 = vmatprep.subr.mxu0 0.0
    %166 = vmatpush2.msra.mxu0 0.0
    %167 = vmatprep.subr.mxu0 0.0
    %168 = vmatpush2.msra.mxu0 0.0
    %169 = vmatprep.subr.mxu0 0.0
    %170 = vmatpush2.msra.mxu0 0.0
    %171 = vmatprep.subr.mxu0 0.0
    %172 = vmatpush2.msra.mxu0 0.0
    %173 = vmatprep.subr.mxu0 0.0
    %174 = vmatpush2.msra.mxu0 0.0
    %175 = vmatprep.subr.mxu0 0.0
    %176 = vmatpush2.msra.mxu0 0.0
    %177 = vmatprep.mubr.f32.mxu0 0.0
    %178 = vmatmul.mubr.f32.gmra.mxu0 %v108
    %v179 = vpop.f32.mrf.mxu0
    %v180 = vadd.f32 %v105, %v179
    %v181 = vpop.f32.mrf.mxu0
    %182 = vmatprep.mubr.f32.mxu0 0.0
    %183 = vmatmul.mubr.f32.gmra.mxu0 %v111
    %v184 = vpop.f32.mrf.mxu0
    %v185 = vadd.f32 %v105, %v184
    %v186 = vpop.f32.mrf.mxu0
    %187 = vdwg.mxu0
    %v188 = vld [vmem:[%s1] sm:$0x3]
    %190 = vrot.lane.b32.xlu0 %v180, 96
    %v191 = vpop.permute.xlu0 %190
    %vm192 = vcmask 64512
    %v193 = vsel %vm192, %v180, 0
    %v195 = vsel %vm192, %v191, 0
    %197 = vmatprep.subr.mxu0 0.0
    %198 = vmatpush1.xpose.msra.mxu0 0.0
    %199 = vmatprep.subr.mxu0 0.0
    %200 = vmatpush1.xpose.msra.mxu0 0.0
    %201 = vmatprep.subr.mxu0 0.0
    %202 = vmatpush1.xpose.msra.mxu0 0.0
    %203 = vmatprep.subr.mxu0 0.0
    %204 = vmatpush1.xpose.msra.mxu0 0.0
    %205 = vmatprep.subr.mxu0 0.0
    %206 = vmatpush1.xpose.msra.mxu0 0.0
    %207 = vmatprep.subr.mxu0 0.0
    %208 = vmatpush1.xpose.msra.mxu0 0.0
    %209 = vmatprep.subr.mxu0 0.0
    %210 = vmatpush1.xpose.msra.mxu0 0.0
    %211 = vmatprep.subr.mxu0 0.0
    %212 = vmatpush1.xpose.msra.mxu0 0.0
    %213 = vmatprep.subr.mxu0 0.0
    %214 = vmatpush1.xpose.msra.mxu0 0.0
    %215 = vmatprep.subr.mxu0 0.0
    %216 = vmatpush1.xpose.msra.mxu0 0.0
    %217 = vmatprep.subr.mxu0 0.0
    %218 = vmatpush1.xpose.msra.mxu0 0.0
    %219 = vmatprep.subr.mxu0 0.0
    %220 = vmatpush1.xpose.msra.mxu0 0.0
    %221 = vmatprep.subr.mxu0 0.0
    %222 = vmatpush1.xpose.msra.mxu0 0.0
    %223 = vmatprep.subr.mxu0 0.0
    %224 = vmatpush1.xpose.msra.mxu0 0.0
    %225 = vmatprep.subr.mxu0 0.0
    %226 = vmatpush1.xpose.msra.mxu0 0.0
    %227 = vmatprep.subr.mxu0 0.0
    %228 = vmatpush1.xpose.msra.mxu0 %v195
    %229 = vmatprep.subr.mxu0 0.0
    %230 = vmatpush2.xpose.msra.mxu0 0.0
    %231 = vmatprep.subr.mxu0 0.0
    %232 = vmatpush2.xpose.msra.mxu0 0.0
    %233 = vmatprep.subr.mxu0 0.0
    %234 = vmatpush2.xpose.msra.mxu0 0.0
    %235 = vmatprep.subr.mxu0 0.0
    %236 = vmatpush2.xpose.msra.mxu0 0.0
    %237 = vmatprep.subr.mxu0 0.0
    %238 = vmatpush2.xpose.msra.mxu0 0.0
    %239 = vmatprep.subr.mxu0 0.0
    %240 = vmatpush2.xpose.msra.mxu0 0.0
    %241 = vmatprep.subr.mxu0 0.0
    %242 = vmatpush2.xpose.msra.mxu0 0.0
    %243 = vmatprep.subr.mxu0 0.0
    %244 = vmatpush2.xpose.msra.mxu0 0.0
    %245 = vmatprep.subr.mxu0 0.0
    %246 = vmatpush2.xpose.msra.mxu0 0.0
    %247 = vmatprep.subr.mxu0 0.0
    %248 = vmatpush2.xpose.msra.mxu0 0.0
    %249 = vmatprep.subr.mxu0 0.0
    %250 = vmatpush2.xpose.msra.mxu0 0.0
    %251 = vmatprep.subr.mxu0 0.0
    %252 = vmatpush2.xpose.msra.mxu0 0.0
    %253 = vmatprep.subr.mxu0 0.0
    %254 = vmatpush2.xpose.msra.mxu0 0.0
    %255 = vmatprep.subr.mxu0 0.0
    %256 = vmatpush2.xpose.msra.mxu0 0.0
    %257 = vmatprep.subr.mxu0 0.0
    %258 = vmatpush2.xpose.msra.mxu0 0.0
    %259 = vmatprep.subr.mxu0 0.0
    %260 = vmatpush2.xpose.msra.mxu0 0.0
    %261 = vmatprep.mubr.f32.mxu0 0.0
    %262 = vmatmul.mubr.f32.gmra.mxu0 %v193
    %v263 = vpop.f32.mrf.mxu0
    %v264 = vadd.f32 0.0, %v263
    %v265 = vpop.f32.mrf.mxu0
    %266 = vdwg.mxu0
    %v267 = vmul.f32 %v264, 0.35355338
    %v268 = vlaneseq
    %v269 = vshrl.u32 %v268, 7
    %v270 = vsub.s32 0, %v269
    %v271 = vrot.slane %v188, %v270
    %v272 = vadd.f32 %v267, %v271
    %v273 = vsel %vm192, %v272, -inf
    %274 = vmax.xlane.f32.xlu0 %v273
    %v275 = vpop.xlane.xlu0 %274
    %v276 = vsub.f32 %v272, %v275
    %v277 = vmul.f32 %v276, 1.442695
    %v278 = vpow.pop %v277
    %v279 = vsel %vm192, %v278, 0.0
    %280 = vadd.xlane.f32.xlu0 %v279
    %v281 = vpop.xlane.xlu0 %280
    %v282 = vrcp.pop %v281
    %v283 = vmul.f32 %v278, %v282
    %v285 = vsel %vm192, %v283, 0
    %287 = vmatprep.subr.mxu0 0.0
    %288 = vmatpush1.msra.mxu0 0.0
    %289 = vmatprep.subr.mxu0 0.0
    %290 = vmatpush1.msra.mxu0 0.0
    %291 = vmatprep.subr.mxu0 0.0
    %292 = vmatpush1.msra.mxu0 0.0
    %293 = vmatprep.subr.mxu0 0.0
    %294 = vmatpush1.msra.mxu0 0.0
    %295 = vmatprep.subr.mxu0 0.0
    %296 = vmatpush1.msra.mxu0 0.0
    %297 = vmatprep.subr.mxu0 0.0
    %298 = vmatpush1.msra.mxu0 0.0
    %299 = vmatprep.subr.mxu0 0.0
    %300 = vmatpush1.msra.mxu0 0.0
    %301 = vmatprep.subr.mxu0 0.0
    %302 = vmatpush1.msra.mxu0 0.0
    %303 = vmatprep.subr.mxu0 0.0
    %304 = vmatpush1.msra.mxu0 0.0
    %305 = vmatprep.subr.mxu0 0.0
    %306 = vmatpush1.msra.mxu0 0.0
    %307 = vmatprep.subr.mxu0 0.0
    %308 = vmatpush1.msra.mxu0 0.0
    %309 = vmatprep.subr.mxu0 0.0
    %310 = vmatpush1.msra.mxu0 0.0
    %311 = vmatprep.subr.mxu0 0.0
    %312 = vmatpush1.msra.mxu0 0.0
    %313 = vmatprep.subr.mxu0 0.0
    %314 = vmatpush1.msra.mxu0 0.0
    %315 = vmatprep.subr.mxu0 0.0
    %316 = vmatpush1.msra.mxu0 0.0
    %317 = vmatprep.subr.mxu0 0.0
    %318 = vmatpush1.msra.mxu0 %v180
    %319 = vmatprep.subr.mxu0 0.0
    %320 = vmatpush2.msra.mxu0 0.0
    %321 = vmatprep.subr.mxu0 0.0
    %322 = vmatpush2.msra.mxu0 0.0
    %323 = vmatprep.subr.mxu0 0.0
    %324 = vmatpush2.msra.mxu0 0.0
    %325 = vmatprep.subr.mxu0 0.0
    %326 = vmatpush2.msra.mxu0 0.0
    %327 = vmatprep.subr.mxu0 0.0
    %328 = vmatpush2.msra.mxu0 0.0
    %329 = vmatprep.subr.mxu0 0.0
    %330 = vmatpush2.msra.mxu0 0.0
    %331 = vmatprep.subr.mxu0 0.0
    %332 = vmatpush2.msra.mxu0 0.0
    %333 = vmatprep.subr.mxu0 0.0
    %334 = vmatpush2.msra.mxu0 0.0
    %335 = vmatprep.subr.mxu0 0.0
    %336 = vmatpush2.msra.mxu0 0.0
    %337 = vmatprep.subr.mxu0 0.0
    %338 = vmatpush2.msra.mxu0 0.0
    %339 = vmatprep.subr.mxu0 0.0
    %340 = vmatpush2.msra.mxu0 0.0
    %341 = vmatprep.subr.mxu0 0.0
    %342 = vmatpush2.msra.mxu0 0.0
    %343 = vmatprep.subr.mxu0 0.0
    %344 = vmatpush2.msra.mxu0 0.0
    %345 = vmatprep.subr.mxu0 0.0
    %346 = vmatpush2.msra.mxu0 0.0
    %347 = vmatprep.subr.mxu0 0.0
    %348 = vmatpush2.msra.mxu0 0.0
    %349 = vmatprep.subr.mxu0 0.0
    %350 = vmatpush2.msra.mxu0 0.0
    %351 = vmatprep.mubr.f32.mxu0 0.0
    %352 = vmatmul.mubr.f32.gmra.mxu0 %v285
    %v353 = vpop.f32.mrf.mxu0
    %v354 = vadd.f32 0.0, %v353
    %v355 = vpop.f32.mrf.mxu0
    %356 = vdwg.mxu0
    %357 = vrot.lane.b32.xlu0 %v180, 120
    %v358 = vpop.permute.xlu0 %357
    %359 = vrot.lane.b32.xlu0 %v180, 88
    %v360 = vpop.permute.xlu0 %359
    %v361 = vsel %vm192, %v358, 0
    %v363 = vsel %vm192, %v360, 0
    %365 = vmatprep.subr.mxu0 0.0
    %366 = vmatpush1.xpose.msra.mxu0 0.0
    %367 = vmatprep.subr.mxu0 0.0
    %368 = vmatpush1.xpose.msra.mxu0 0.0
    %369 = vmatprep.subr.mxu0 0.0
    %370 = vmatpush1.xpose.msra.mxu0 0.0
    %371 = vmatprep.subr.mxu0 0.0
    %372 = vmatpush1.xpose.msra.mxu0 0.0
    %373 = vmatprep.subr.mxu0 0.0
    %374 = vmatpush1.xpose.msra.mxu0 0.0
    %375 = vmatprep.subr.mxu0 0.0
    %376 = vmatpush1.xpose.msra.mxu0 0.0
    %377 = vmatprep.subr.mxu0 0.0
    %378 = vmatpush1.xpose.msra.mxu0 0.0
    %379 = vmatprep.subr.mxu0 0.0
    %380 = vmatpush1.xpose.msra.mxu0 0.0
    %381 = vmatprep.subr.mxu0 0.0
    %382 = vmatpush1.xpose.msra.mxu0 0.0
    %383 = vmatprep.subr.mxu0 0.0
    %384 = vmatpush1.xpose.msra.mxu0 0.0
    %385 = vmatprep.subr.mxu0 0.0
    %386 = vmatpush1.xpose.msra.mxu0 0.0
    %387 = vmatprep.subr.mxu0 0.0
    %388 = vmatpush1.xpose.msra.mxu0 0.0
    %389 = vmatprep.subr.mxu0 0.0
    %390 = vmatpush1.xpose.msra.mxu0 0.0
    %391 = vmatprep.subr.mxu0 0.0
    %392 = vmatpush1.xpose.msra.mxu0 0.0
    %393 = vmatprep.subr.mxu0 0.0
    %394 = vmatpush1.xpose.msra.mxu0 0.0
    %395 = vmatprep.subr.mxu0 0.0
    %396 = vmatpush1.xpose.msra.mxu0 %v363
    %397 = vmatprep.subr.mxu0 0.0
    %398 = vmatpush2.xpose.msra.mxu0 0.0
    %399 = vmatprep.subr.mxu0 0.0
    %400 = vmatpush2.xpose.msra.mxu0 0.0
    %401 = vmatprep.subr.mxu0 0.0
    %402 = vmatpush2.xpose.msra.mxu0 0.0
    %403 = vmatprep.subr.mxu0 0.0
    %404 = vmatpush2.xpose.msra.mxu0 0.0
    %405 = vmatprep.subr.mxu0 0.0
    %406 = vmatpush2.xpose.msra.mxu0 0.0
    %407 = vmatprep.subr.mxu0 0.0
    %408 = vmatpush2.xpose.msra.mxu0 0.0
    %409 = vmatprep.subr.mxu0 0.0
    %410 = vmatpush2.xpose.msra.mxu0 0.0
    %411 = vmatprep.subr.mxu0 0.0
    %412 = vmatpush2.xpose.msra.mxu0 0.0
    %413 = vmatprep.subr.mxu0 0.0
    %414 = vmatpush2.xpose.msra.mxu0 0.0
    %415 = vmatprep.subr.mxu0 0.0
    %416 = vmatpush2.xpose.msra.mxu0 0.0
    %417 = vmatprep.subr.mxu0 0.0
    %418 = vmatpush2.xpose.msra.mxu0 0.0
    %419 = vmatprep.subr.mxu0 0.0
    %420 = vmatpush2.xpose.msra.mxu0 0.0
    %421 = vmatprep.subr.mxu0 0.0
    %422 = vmatpush2.xpose.msra.mxu0 0.0
    %423 = vmatprep.subr.mxu0 0.0
    %424 = vmatpush2.xpose.msra.mxu0 0.0
    %425 = vmatprep.subr.mxu0 0.0
    %426 = vmatpush2.xpose.msra.mxu0 0.0
    %427 = vmatprep.subr.mxu0 0.0
    %428 = vmatpush2.xpose.msra.mxu0 0.0
    %429 = vmatprep.mubr.f32.mxu0 0.0
    %430 = vmatmul.mubr.f32.gmra.mxu0 %v361
    %v431 = vpop.f32.mrf.mxu0
    %v432 = vadd.f32 0.0, %v431
    %v433 = vpop.f32.mrf.mxu0
    %434 = vdwg.mxu0
    %v435 = vmul.f32 %v432, 0.35355338
    %v436 = vadd.f32 %v435, %v271
    %v437 = vsel %vm192, %v436, -inf
    %438 = vmax.xlane.f32.xlu0 %v437
    %v439 = vpop.xlane.xlu0 %438
    %v440 = vsub.f32 %v436, %v439
    %v441 = vmul.f32 %v440, 1.442695
    %v442 = vpow.pop %v441
    %v443 = vsel %vm192, %v442, 0.0
    %444 = vadd.xlane.f32.xlu0 %v443
    %v445 = vpop.xlane.xlu0 %444
    %v446 = vrcp.pop %v445
    %v447 = vmul.f32 %v442, %v446
    %v450 = vsel %vm192, %v447, 0
    %452 = vmatprep.subr.mxu0 0.0
    %453 = vmatpush1.msra.mxu0 0.0
    %454 = vmatprep.subr.mxu0 0.0
    %455 = vmatpush1.msra.mxu0 0.0
    %456 = vmatprep.subr.mxu0 0.0
    %457 = vmatpush1.msra.mxu0 0.0
    %458 = vmatprep.subr.mxu0 0.0
    %459 = vmatpush1.msra.mxu0 0.0
    %460 = vmatprep.subr.mxu0 0.0
    %461 = vmatpush1.msra.mxu0 0.0
    %462 = vmatprep.subr.mxu0 0.0
    %463 = vmatpush1.msra.mxu0 0.0
    %464 = vmatprep.subr.mxu0 0.0
    %465 = vmatpush1.msra.mxu0 0.0
    %466 = vmatprep.subr.mxu0 0.0
    %467 = vmatpush1.msra.mxu0 0.0
    %468 = vmatprep.subr.mxu0 0.0
    %469 = vmatpush1.msra.mxu0 0.0
    %470 = vmatprep.subr.mxu0 0.0
    %471 = vmatpush1.msra.mxu0 0.0
    %472 = vmatprep.subr.mxu0 0.0
    %473 = vmatpush1.msra.mxu0 0.0
    %474 = vmatprep.subr.mxu0 0.0
    %475 = vmatpush1.msra.mxu0 0.0
    %476 = vmatprep.subr.mxu0 0.0
    %477 = vmatpush1.msra.mxu0 0.0
    %478 = vmatprep.subr.mxu0 0.0
    %479 = vmatpush1.msra.mxu0 0.0
    %480 = vmatprep.subr.mxu0 0.0
    %481 = vmatpush1.msra.mxu0 0.0
    %482 = vmatprep.subr.mxu0 0.0
    %483 = vmatpush1.msra.mxu0 %v358
    %484 = vmatprep.subr.mxu0 0.0
    %485 = vmatpush2.msra.mxu0 0.0
    %486 = vmatprep.subr.mxu0 0.0
    %487 = vmatpush2.msra.mxu0 0.0
    %488 = vmatprep.subr.mxu0 0.0
    %489 = vmatpush2.msra.mxu0 0.0
    %490 = vmatprep.subr.mxu0 0.0
    %491 = vmatpush2.msra.mxu0 0.0
    %492 = vmatprep.subr.mxu0 0.0
    %493 = vmatpush2.msra.mxu0 0.0
    %494 = vmatprep.subr.mxu0 0.0
    %495 = vmatpush2.msra.mxu0 0.0
    %496 = vmatprep.subr.mxu0 0.0
    %497 = vmatpush2.msra.mxu0 0.0
    %498 = vmatprep.subr.mxu0 0.0
    %499 = vmatpush2.msra.mxu0 0.0
    %500 = vmatprep.subr.mxu0 0.0
    %501 = vmatpush2.msra.mxu0 0.0
    %502 = vmatprep.subr.mxu0 0.0
    %503 = vmatpush2.msra.mxu0 0.0
    %504 = vmatprep.subr.mxu0 0.0
    %505 = vmatpush2.msra.mxu0 0.0
    %506 = vmatprep.subr.mxu0 0.0
    %507 = vmatpush2.msra.mxu0 0.0
    %508 = vmatprep.subr.mxu0 0.0
    %509 = vmatpush2.msra.mxu0 0.0
    %510 = vmatprep.subr.mxu0 0.0
    %511 = vmatpush2.msra.mxu0 0.0
    %512 = vmatprep.subr.mxu0 0.0
    %513 = vmatpush2.msra.mxu0 0.0
    %514 = vmatprep.subr.mxu0 0.0
    %515 = vmatpush2.msra.mxu0 0.0
    %516 = vmatprep.mubr.f32.mxu0 0.0
    %517 = vmatmul.mubr.f32.gmra.mxu0 %v450
    %v518 = vpop.f32.mrf.mxu0
    %v519 = vadd.f32 0.0, %v518
    %v520 = vpop.f32.mrf.mxu0
    %521 = vdwg.mxu0
    %522 = vrot.lane.b32.xlu0 %v180, 112
    %v523 = vpop.permute.xlu0 %522
    %524 = vrot.lane.b32.xlu0 %v180, 80
    %v525 = vpop.permute.xlu0 %524
    %v526 = vsel %vm192, %v523, 0
    %v528 = vsel %vm192, %v525, 0
    %530 = vmatprep.subr.mxu0 0.0
    %531 = vmatpush1.xpose.msra.mxu0 0.0
    %532 = vmatprep.subr.mxu0 0.0
    %533 = vmatpush1.xpose.msra.mxu0 0.0
    %534 = vmatprep.subr.mxu0 0.0
    %535 = vmatpush1.xpose.msra.mxu0 0.0
    %536 = vmatprep.subr.mxu0 0.0
    %537 = vmatpush1.xpose.msra.mxu0 0.0
    %538 = vmatprep.subr.mxu0 0.0
    %539 = vmatpush1.xpose.msra.mxu0 0.0
    %540 = vmatprep.subr.mxu0 0.0
    %541 = vmatpush1.xpose.msra.mxu0 0.0
    %542 = vmatprep.subr.mxu0 0.0
    %543 = vmatpush1.xpose.msra.mxu0 0.0
    %544 = vmatprep.subr.mxu0 0.0
    %545 = vmatpush1.xpose.msra.mxu0 0.0
    %546 = vmatprep.subr.mxu0 0.0
    %547 = vmatpush1.xpose.msra.mxu0 0.0
    %548 = vmatprep.subr.mxu0 0.0
    %549 = vmatpush1.xpose.msra.mxu0 0.0
    %550 = vmatprep.subr.mxu0 0.0
    %551 = vmatpush1.xpose.msra.mxu0 0.0
    %552 = vmatprep.subr.mxu0 0.0
    %553 = vmatpush1.xpose.msra.mxu0 0.0
    %554 = vmatprep.subr.mxu0 0.0
    %555 = vmatpush1.xpose.msra.mxu0 0.0
    %556 = vmatprep.subr.mxu0 0.0
    %557 = vmatpush1.xpose.msra.mxu0 0.0
    %558 = vmatprep.subr.mxu0 0.0
    %559 = vmatpush1.xpose.msra.mxu0 0.0
    %560 = vmatprep.subr.mxu0 0.0
    %561 = vmatpush1.xpose.msra.mxu0 %v528
    %562 = vmatprep.subr.mxu0 0.0
    %563 = vmatpush2.xpose.msra.mxu0 0.0
    %564 = vmatprep.subr.mxu0 0.0
    %565 = vmatpush2.xpose.msra.mxu0 0.0
    %566 = vmatprep.subr.mxu0 0.0
    %567 = vmatpush2.xpose.msra.mxu0 0.0
    %568 = vmatprep.subr.mxu0 0.0
    %569 = vmatpush2.xpose.msra.mxu0 0.0
    %570 = vmatprep.subr.mxu0 0.0
    %571 = vmatpush2.xpose.msra.mxu0 0.0
    %572 = vmatprep.subr.mxu0 0.0
    %573 = vmatpush2.xpose.msra.mxu0 0.0
    %574 = vmatprep.subr.mxu0 0.0
    %575 = vmatpush2.xpose.msra.mxu0 0.0
    %576 = vmatprep.subr.mxu0 0.0
    %577 = vmatpush2.xpose.msra.mxu0 0.0
    %578 = vmatprep.subr.mxu0 0.0
    %579 = vmatpush2.xpose.msra.mxu0 0.0
    %580 = vmatprep.subr.mxu0 0.0
    %581 = vmatpush2.xpose.msra.mxu0 0.0
    %582 = vmatprep.subr.mxu0 0.0
    %583 = vmatpush2.xpose.msra.mxu0 0.0
    %584 = vmatprep.subr.mxu0 0.0
    %585 = vmatpush2.xpose.msra.mxu0 0.0
    %586 = vmatprep.subr.mxu0 0.0
    %587 = vmatpush2.xpose.msra.mxu0 0.0
    %588 = vmatprep.subr.mxu0 0.0
    %589 = vmatpush2.xpose.msra.mxu0 0.0
    %590 = vmatprep.subr.mxu0 0.0
    %591 = vmatpush2.xpose.msra.mxu0 0.0
    %592 = vmatprep.subr.mxu0 0.0
    %593 = vmatpush2.xpose.msra.mxu0 0.0
    %594 = vmatprep.mubr.f32.mxu0 0.0
    %595 = vmatmul.mubr.f32.gmra.mxu0 %v526
    %v596 = vpop.f32.mrf.mxu0
    %v597 = vadd.f32 0.0, %v596
    %v598 = vpop.f32.mrf.mxu0
    %599 = vdwg.mxu0
    %v600 = vmul.f32 %v597, 0.35355338
    %v601 = vadd.f32 %v600, %v271
    %v602 = vsel %vm192, %v601, -inf
    %603 = vmax.xlane.f32.xlu0 %v602
    %v604 = vpop.xlane.xlu0 %603
    %v605 = vsub.f32 %v601, %v604
    %v606 = vmul.f32 %v605, 1.442695
    %v607 = vpow.pop %v606
    %v608 = vsel %vm192, %v607, 0.0
    %609 = vadd.xlane.f32.xlu0 %v608
    %v610 = vpop.xlane.xlu0 %609
    %v611 = vrcp.pop %v610
    %v612 = vmul.f32 %v607, %v611
    %v615 = vsel %vm192, %v612, 0
    %617 = vmatprep.subr.mxu0 0.0
    %618 = vmatpush1.msra.mxu0 0.0
    %619 = vmatprep.subr.mxu0 0.0
    %620 = vmatpush1.msra.mxu0 0.0
    %621 = vmatprep.subr.mxu0 0.0
    %622 = vmatpush1.msra.mxu0 0.0
    %623 = vmatprep.subr.mxu0 0.0
    %624 = vmatpush1.msra.mxu0 0.0
    %625 = vmatprep.subr.mxu0 0.0
    %626 = vmatpush1.msra.mxu0 0.0
    %627 = vmatprep.subr.mxu0 0.0
    %628 = vmatpush1.msra.mxu0 0.0
    %629 = vmatprep.subr.mxu0 0.0
    %630 = vmatpush1.msra.mxu0 0.0
    %631 = vmatprep.subr.mxu0 0.0
    %632 = vmatpush1.msra.mxu0 0.0
    %633 = vmatprep.subr.mxu0 0.0
    %634 = vmatpush1.msra.mxu0 0.0
    %635 = vmatprep.subr.mxu0 0.0
    %636 = vmatpush1.msra.mxu0 0.0
    %637 = vmatprep.subr.mxu0 0.0
    %638 = vmatpush1.msra.mxu0 0.0
    %639 = vmatprep.subr.mxu0 0.0
    %640 = vmatpush1.msra.mxu0 0.0
    %641 = vmatprep.subr.mxu0 0.0
    %642 = vmatpush1.msra.mxu0 0.0
    %643 = vmatprep.subr.mxu0 0.0
    %644 = vmatpush1.msra.mxu0 0.0
    %645 = vmatprep.subr.mxu0 0.0
    %646 = vmatpush1.msra.mxu0 0.0
    %647 = vmatprep.subr.mxu0 0.0
    %648 = vmatpush1.msra.mxu0 %v523
    %649 = vmatprep.subr.mxu0 0.0
    %650 = vmatpush2.msra.mxu0 0.0
    %651 = vmatprep.subr.mxu0 0.0
    %652 = vmatpush2.msra.mxu0 0.0
    %653 = vmatprep.subr.mxu0 0.0
    %654 = vmatpush2.msra.mxu0 0.0
    %655 = vmatprep.subr.mxu0 0.0
    %656 = vmatpush2.msra.mxu0 0.0
    %657 = vmatprep.subr.mxu0 0.0
    %658 = vmatpush2.msra.mxu0 0.0
    %659 = vmatprep.subr.mxu0 0.0
    %660 = vmatpush2.msra.mxu0 0.0
    %661 = vmatprep.subr.mxu0 0.0
    %662 = vmatpush2.msra.mxu0 0.0
    %663 = vmatprep.subr.mxu0 0.0
    %664 = vmatpush2.msra.mxu0 0.0
    %665 = vmatprep.subr.mxu0 0.0
    %666 = vmatpush2.msra.mxu0 0.0
    %667 = vmatprep.subr.mxu0 0.0
    %668 = vmatpush2.msra.mxu0 0.0
    %669 = vmatprep.subr.mxu0 0.0
    %670 = vmatpush2.msra.mxu0 0.0
    %671 = vmatprep.subr.mxu0 0.0
    %672 = vmatpush2.msra.mxu0 0.0
    %673 = vmatprep.subr.mxu0 0.0
    %674 = vmatpush2.msra.mxu0 0.0
    %675 = vmatprep.subr.mxu0 0.0
    %676 = vmatpush2.msra.mxu0 0.0
    %677 = vmatprep.subr.mxu0 0.0
    %678 = vmatpush2.msra.mxu0 0.0
    %679 = vmatprep.subr.mxu0 0.0
    %680 = vmatpush2.msra.mxu0 0.0
    %681 = vmatprep.mubr.f32.mxu0 0.0
    %682 = vmatmul.mubr.f32.gmra.mxu0 %v615
    %v683 = vpop.f32.mrf.mxu0
    %v684 = vadd.f32 0.0, %v683
    %v685 = vpop.f32.mrf.mxu0
    %686 = vdwg.mxu0
    %687 = vrot.lane.b32.xlu0 %v180, 104
    %v688 = vpop.permute.xlu0 %687
    %689 = vrot.lane.b32.xlu0 %v180, 72
    %v690 = vpop.permute.xlu0 %689
    %v691 = vsel %vm192, %v688, 0
    %v693 = vsel %vm192, %v690, 0
    %695 = vmatprep.subr.mxu0 0.0
    %696 = vmatpush1.xpose.msra.mxu0 0.0
    %697 = vmatprep.subr.mxu0 0.0
    %698 = vmatpush1.xpose.msra.mxu0 0.0
    %699 = vmatprep.subr.mxu0 0.0
    %700 = vmatpush1.xpose.msra.mxu0 0.0
    %701 = vmatprep.subr.mxu0 0.0
    %702 = vmatpush1.xpose.msra.mxu0 0.0
    %703 = vmatprep.subr.mxu0 0.0
    %704 = vmatpush1.xpose.msra.mxu0 0.0
    %705 = vmatprep.subr.mxu0 0.0
    %706 = vmatpush1.xpose.msra.mxu0 0.0
    %707 = vmatprep.subr.mxu0 0.0
    %708 = vmatpush1.xpose.msra.mxu0 0.0
    %709 = vmatprep.subr.mxu0 0.0
    %710 = vmatpush1.xpose.msra.mxu0 0.0
    %711 = vmatprep.subr.mxu0 0.0
    %712 = vmatpush1.xpose.msra.mxu0 0.0
    %713 = vmatprep.subr.mxu0 0.0
    %714 = vmatpush1.xpose.msra.mxu0 0.0
    %715 = vmatprep.subr.mxu0 0.0
    %716 = vmatpush1.xpose.msra.mxu0 0.0
    %717 = vmatprep.subr.mxu0 0.0
    %718 = vmatpush1.xpose.msra.mxu0 0.0
    %719 = vmatprep.subr.mxu0 0.0
    %720 = vmatpush1.xpose.msra.mxu0 0.0
    %721 = vmatprep.subr.mxu0 0.0
    %722 = vmatpush1.xpose.msra.mxu0 0.0
    %723 = vmatprep.subr.mxu0 0.0
    %724 = vmatpush1.xpose.msra.mxu0 0.0
    %725 = vmatprep.subr.mxu0 0.0
    %726 = vmatpush1.xpose.msra.mxu0 %v693
    %727 = vmatprep.subr.mxu0 0.0
    %728 = vmatpush2.xpose.msra.mxu0 0.0
    %729 = vmatprep.subr.mxu0 0.0
    %730 = vmatpush2.xpose.msra.mxu0 0.0
    %731 = vmatprep.subr.mxu0 0.0
    %732 = vmatpush2.xpose.msra.mxu0 0.0
    %733 = vmatprep.subr.mxu0 0.0
    %734 = vmatpush2.xpose.msra.mxu0 0.0
    %735 = vmatprep.subr.mxu0 0.0
    %736 = vmatpush2.xpose.msra.mxu0 0.0
    %737 = vmatprep.subr.mxu0 0.0
    %738 = vmatpush2.xpose.msra.mxu0 0.0
    %739 = vmatprep.subr.mxu0 0.0
    %740 = vmatpush2.xpose.msra.mxu0 0.0
    %741 = vmatprep.subr.mxu0 0.0
    %742 = vmatpush2.xpose.msra.mxu0 0.0
    %743 = vmatprep.subr.mxu0 0.0
    %744 = vmatpush2.xpose.msra.mxu0 0.0
    %745 = vmatprep.subr.mxu0 0.0
    %746 = vmatpush2.xpose.msra.mxu0 0.0
    %747 = vmatprep.subr.mxu0 0.0
    %748 = vmatpush2.xpose.msra.mxu0 0.0
    %749 = vmatprep.subr.mxu0 0.0
    %750 = vmatpush2.xpose.msra.mxu0 0.0
    %751 = vmatprep.subr.mxu0 0.0
    %752 = vmatpush2.xpose.msra.mxu0 0.0
    %753 = vmatprep.subr.mxu0 0.0
    %754 = vmatpush2.xpose.msra.mxu0 0.0
    %755 = vmatprep.subr.mxu0 0.0
    %756 = vmatpush2.xpose.msra.mxu0 0.0
    %757 = vmatprep.subr.mxu0 0.0
    %758 = vmatpush2.xpose.msra.mxu0 0.0
    %759 = vmatprep.mubr.f32.mxu0 0.0
    %760 = vmatmul.mubr.f32.gmra.mxu0 %v691
    %v761 = vpop.f32.mrf.mxu0
    %v762 = vadd.f32 0.0, %v761
    %v763 = vpop.f32.mrf.mxu0
    %764 = vdwg.mxu0
    %v765 = vmul.f32 %v762, 0.35355338
    %v766 = vadd.f32 %v765, %v271
    %v767 = vsel %vm192, %v766, -inf
    %768 = vmax.xlane.f32.xlu0 %v767
    %v769 = vpop.xlane.xlu0 %768
    %v770 = vsub.f32 %v766, %v769
    %v771 = vmul.f32 %v770, 1.442695
    %v772 = vpow.pop %v771
    %v773 = vsel %vm192, %v772, 0.0
    %774 = vadd.xlane.f32.xlu0 %v773
    %v775 = vpop.xlane.xlu0 %774
    %v776 = vrcp.pop %v775
    %v777 = vmul.f32 %v772, %v776
    %v780 = vsel %vm192, %v777, 0
    %782 = vmatprep.subr.mxu0 0.0
    %783 = vmatpush1.msra.mxu0 0.0
    %784 = vmatprep.subr.mxu0 0.0
    %785 = vmatpush1.msra.mxu0 0.0
    %786 = vmatprep.subr.mxu0 0.0
    %787 = vmatpush1.msra.mxu0 0.0
    %788 = vmatprep.subr.mxu0 0.0
    %789 = vmatpush1.msra.mxu0 0.0
    %790 = vmatprep.subr.mxu0 0.0
    %791 = vmatpush1.msra.mxu0 0.0
    %792 = vmatprep.subr.mxu0 0.0
    %793 = vmatpush1.msra.mxu0 0.0
    %794 = vmatprep.subr.mxu0 0.0
    %795 = vmatpush1.msra.mxu0 0.0
    %796 = vmatprep.subr.mxu0 0.0
    %797 = vmatpush1.msra.mxu0 0.0
    %798 = vmatprep.subr.mxu0 0.0
    %799 = vmatpush1.msra.mxu0 0.0
    %800 = vmatprep.subr.mxu0 0.0
    %801 = vmatpush1.msra.mxu0 0.0
    %802 = vmatprep.subr.mxu0 0.0
    %803 = vmatpush1.msra.mxu0 0.0
    %804 = vmatprep.subr.mxu0 0.0
    %805 = vmatpush1.msra.mxu0 0.0
    %806 = vmatprep.subr.mxu0 0.0
    %807 = vmatpush1.msra.mxu0 0.0
    %808 = vmatprep.subr.mxu0 0.0
    %809 = vmatpush1.msra.mxu0 0.0
    %810 = vmatprep.subr.mxu0 0.0
    %811 = vmatpush1.msra.mxu0 0.0
    %812 = vmatprep.subr.mxu0 0.0
    %813 = vmatpush1.msra.mxu0 %v688
    %814 = vmatprep.subr.mxu0 0.0
    %815 = vmatpush2.msra.mxu0 0.0
    %816 = vmatprep.subr.mxu0 0.0
    %817 = vmatpush2.msra.mxu0 0.0
    %818 = vmatprep.subr.mxu0 0.0
    %819 = vmatpush2.msra.mxu0 0.0
    %820 = vmatprep.subr.mxu0 0.0
    %821 = vmatpush2.msra.mxu0 0.0
    %822 = vmatprep.subr.mxu0 0.0
    %823 = vmatpush2.msra.mxu0 0.0
    %824 = vmatprep.subr.mxu0 0.0
    %825 = vmatpush2.msra.mxu0 0.0
    %826 = vmatprep.subr.mxu0 0.0
    %827 = vmatpush2.msra.mxu0 0.0
    %828 = vmatprep.subr.mxu0 0.0
    %829 = vmatpush2.msra.mxu0 0.0
    %830 = vmatprep.subr.mxu0 0.0
    %831 = vmatpush2.msra.mxu0 0.0
    %832 = vmatprep.subr.mxu0 0.0
    %833 = vmatpush2.msra.mxu0 0.0
    %834 = vmatprep.subr.mxu0 0.0
    %835 = vmatpush2.msra.mxu0 0.0
    %836 = vmatprep.subr.mxu0 0.0
    %837 = vmatpush2.msra.mxu0 0.0
    %838 = vmatprep.subr.mxu0 0.0
    %839 = vmatpush2.msra.mxu0 0.0
    %840 = vmatprep.subr.mxu0 0.0
    %841 = vmatpush2.msra.mxu0 0.0
    %842 = vmatprep.subr.mxu0 0.0
    %843 = vmatpush2.msra.mxu0 0.0
    %844 = vmatprep.subr.mxu0 0.0
    %845 = vmatpush2.msra.mxu0 0.0
    %846 = vmatprep.mubr.f32.mxu0 0.0
    %847 = vmatmul.mubr.f32.gmra.mxu0 %v780
    %v848 = vpop.f32.mrf.mxu0
    %v849 = vadd.f32 0.0, %v848
    %v850 = vpop.f32.mrf.mxu0
    %851 = vdwg.mxu0
    %853 = vrot.lane.b32.xlu0 %v519, 8
    %v854 = vpop.permute.xlu0 %853
    %857 = vrot.lane.b32.xlu0 %v684, 16
    %v858 = vpop.permute.xlu0 %857
    %861 = vrot.lane.b32.xlu0 %v849, 24
    %v862 = vpop.permute.xlu0 %861
    %v864 = vsel %vm192, %v354, %v854
    %vm865 = vcmask 130048
    %v866 = vsel %vm865, %v864, %v858
    %vm867 = vcmask 195584
    %v868 = vsel %vm867, %v866, %v862
    %870 = vrot.lane.b32.xlu0 %v185, 96
    %v871 = vpop.permute.xlu0 %870
    %v872 = vsel %vm192, %v185, 0
    %v874 = vsel %vm192, %v871, 0
    %876 = vmatprep.subr.mxu0 0.0
    %877 = vmatpush1.xpose.msra.mxu0 0.0
    %878 = vmatprep.subr.mxu0 0.0
    %879 = vmatpush1.xpose.msra.mxu0 0.0
    %880 = vmatprep.subr.mxu0 0.0
    %881 = vmatpush1.xpose.msra.mxu0 0.0
    %882 = vmatprep.subr.mxu0 0.0
    %883 = vmatpush1.xpose.msra.mxu0 0.0
    %884 = vmatprep.subr.mxu0 0.0
    %885 = vmatpush1.xpose.msra.mxu0 0.0
    %886 = vmatprep.subr.mxu0 0.0
    %887 = vmatpush1.xpose.msra.mxu0 0.0
    %888 = vmatprep.subr.mxu0 0.0
    %889 = vmatpush1.xpose.msra.mxu0 0.0
    %890 = vmatprep.subr.mxu0 0.0
    %891 = vmatpush1.xpose.msra.mxu0 0.0
    %892 = vmatprep.subr.mxu0 0.0
    %893 = vmatpush1.xpose.msra.mxu0 0.0
    %894 = vmatprep.subr.mxu0 0.0
    %895 = vmatpush1.xpose.msra.mxu0 0.0
    %896 = vmatprep.subr.mxu0 0.0
    %897 = vmatpush1.xpose.msra.mxu0 0.0
    %898 = vmatprep.subr.mxu0 0.0
    %899 = vmatpush1.xpose.msra.mxu0 0.0
    %900 = vmatprep.subr.mxu0 0.0
    %901 = vmatpush1.xpose.msra.mxu0 0.0
    %902 = vmatprep.subr.mxu0 0.0
    %903 = vmatpush1.xpose.msra.mxu0 0.0
    %904 = vmatprep.subr.mxu0 0.0
    %905 = vmatpush1.xpose.msra.mxu0 0.0
    %906 = vmatprep.subr.mxu0 0.0
    %907 = vmatpush1.xpose.msra.mxu0 %v874
    %908 = vmatprep.subr.mxu0 0.0
    %909 = vmatpush2.xpose.msra.mxu0 0.0
    %910 = vmatprep.subr.mxu0 0.0
    %911 = vmatpush2.xpose.msra.mxu0 0.0
    %912 = vmatprep.subr.mxu0 0.0
    %913 = vmatpush2.xpose.msra.mxu0 0.0
    %914 = vmatprep.subr.mxu0 0.0
    %915 = vmatpush2.xpose.msra.mxu0 0.0
    %916 = vmatprep.subr.mxu0 0.0
    %917 = vmatpush2.xpose.msra.mxu0 0.0
    %918 = vmatprep.subr.mxu0 0.0
    %919 = vmatpush2.xpose.msra.mxu0 0.0
    %920 = vmatprep.subr.mxu0 0.0
    %921 = vmatpush2.xpose.msra.mxu0 0.0
    %922 = vmatprep.subr.mxu0 0.0
    %923 = vmatpush2.xpose.msra.mxu0 0.0
    %924 = vmatprep.subr.mxu0 0.0
    %925 = vmatpush2.xpose.msra.mxu0 0.0
    %926 = vmatprep.subr.mxu0 0.0
    %927 = vmatpush2.xpose.msra.mxu0 0.0
    %928 = vmatprep.subr.mxu0 0.0
    %929 = vmatpush2.xpose.msra.mxu0 0.0
    %930 = vmatprep.subr.mxu0 0.0
    %931 = vmatpush2.xpose.msra.mxu0 0.0
    %932 = vmatprep.subr.mxu0 0.0
    %933 = vmatpush2.xpose.msra.mxu0 0.0
    %934 = vmatprep.subr.mxu0 0.0
    %935 = vmatpush2.xpose.msra.mxu0 0.0
    %936 = vmatprep.subr.mxu0 0.0
    %937 = vmatpush2.xpose.msra.mxu0 0.0
    %938 = vmatprep.subr.mxu0 0.0
    %939 = vmatpush2.xpose.msra.mxu0 0.0
    %940 = vmatprep.mubr.f32.mxu0 0.0
    %941 = vmatmul.mubr.f32.gmra.mxu0 %v872
    %v942 = vpop.f32.mrf.mxu0
    %v943 = vadd.f32 0.0, %v942
    %v944 = vpop.f32.mrf.mxu0
    %945 = vdwg.mxu0
    %v946 = vmul.f32 %v943, 0.35355338
    %v947 = vlaneseq
    %v948 = vshrl.u32 %v947, 7
    %v949 = vsub.s32 1, %v948
    %v950 = vrot.slane %v188, %v949
    %v951 = vadd.f32 %v946, %v950
    %v952 = vsel %vm192, %v951, -inf
    %953 = vmax.xlane.f32.xlu0 %v952
    %v954 = vpop.xlane.xlu0 %953
    %v955 = vsub.f32 %v951, %v954
    %v956 = vmul.f32 %v955, 1.442695
    %v957 = vpow.pop %v956
    %v958 = vsel %vm192, %v957, 0.0
    %959 = vadd.xlane.f32.xlu0 %v958
    %v960 = vpop.xlane.xlu0 %959
    %v961 = vrcp.pop %v960
    %v962 = vmul.f32 %v957, %v961
    %v964 = vsel %vm192, %v962, 0
    %966 = vmatprep.subr.mxu0 0.0
    %967 = vmatpush1.msra.mxu0 0.0
    %968 = vmatprep.subr.mxu0 0.0
    %969 = vmatpush1.msra.mxu0 0.0
    %970 = vmatprep.subr.mxu0 0.0
    %971 = vmatpush1.msra.mxu0 0.0
    %972 = vmatprep.subr.mxu0 0.0
    %973 = vmatpush1.msra.mxu0 0.0
    %974 = vmatprep.subr.mxu0 0.0
    %975 = vmatpush1.msra.mxu0 0.0
    %976 = vmatprep.subr.mxu0 0.0
    %977 = vmatpush1.msra.mxu0 0.0
    %978 = vmatprep.subr.mxu0 0.0
    %979 = vmatpush1.msra.mxu0 0.0
    %980 = vmatprep.subr.mxu0 0.0
    %981 = vmatpush1.msra.mxu0 0.0
    %982 = vmatprep.subr.mxu0 0.0
    %983 = vmatpush1.msra.mxu0 0.0
    %984 = vmatprep.subr.mxu0 0.0
    %985 = vmatpush1.msra.mxu0 0.0
    %986 = vmatprep.subr.mxu0 0.0
    %987 = vmatpush1.msra.mxu0 0.0
    %988 = vmatprep.subr.mxu0 0.0
    %989 = vmatpush1.msra.mxu0 0.0
    %990 = vmatprep.subr.mxu0 0.0
    %991 = vmatpush1.msra.mxu0 0.0
    %992 = vmatprep.subr.mxu0 0.0
    %993 = vmatpush1.msra.mxu0 0.0
    %994 = vmatprep.subr.mxu0 0.0
    %995 = vmatpush1.msra.mxu0 0.0
    %996 = vmatprep.subr.mxu0 0.0
    %997 = vmatpush1.msra.mxu0 %v185
    %998 = vmatprep.subr.mxu0 0.0
    %999 = vmatpush2.msra.mxu0 0.0
    %1000 = vmatprep.subr.mxu0 0.0
    %1001 = vmatpush2.msra.mxu0 0.0
    %1002 = vmatprep.subr.mxu0 0.0
    %1003 = vmatpush2.msra.mxu0 0.0
    %1004 = vmatprep.subr.mxu0 0.0
    %1005 = vmatpush2.msra.mxu0 0.0
    %1006 = vmatprep.subr.mxu0 0.0
    %1007 = vmatpush2.msra.mxu0 0.0
    %1008 = vmatprep.subr.mxu0 0.0
    %1009 = vmatpush2.msra.mxu0 0.0
    %1010 = vmatprep.subr.mxu0 0.0
    %1011 = vmatpush2.msra.mxu0 0.0
    %1012 = vmatprep.subr.mxu0 0.0
    %1013 = vmatpush2.msra.mxu0 0.0
    %1014 = vmatprep.subr.mxu0 0.0
    %1015 = vmatpush2.msra.mxu0 0.0
    %1016 = vmatprep.subr.mxu0 0.0
    %1017 = vmatpush2.msra.mxu0 0.0
    %1018 = vmatprep.subr.mxu0 0.0
    %1019 = vmatpush2.msra.mxu0 0.0
    %1020 = vmatprep.subr.mxu0 0.0
    %1021 = vmatpush2.msra.mxu0 0.0
    %1022 = vmatprep.subr.mxu0 0.0
    %1023 = vmatpush2.msra.mxu0 0.0
    %1024 = vmatprep.subr.mxu0 0.0
    %1025 = vmatpush2.msra.mxu0 0.0
    %1026 = vmatprep.subr.mxu0 0.0
    %1027 = vmatpush2.msra.mxu0 0.0
    %1028 = vmatprep.subr.mxu0 0.0
    %1029 = vmatpush2.msra.mxu0 0.0
    %1030 = vmatprep.mubr.f32.mxu0 0.0
    %1031 = vmatmul.mubr.f32.gmra.mxu0 %v964
    %v1032 = vpop.f32.mrf.mxu0
    %v1033 = vadd.f32 0.0, %v1032
    %v1034 = vpop.f32.mrf.mxu0
    %1035 = vdwg.mxu0
    %1036 = vrot.lane.b32.xlu0 %v185, 120
    %v1037 = vpop.permute.xlu0 %1036
    %1038 = vrot.lane.b32.xlu0 %v185, 88
    %v1039 = vpop.permute.xlu0 %1038
    %v1040 = vsel %vm192, %v1037, 0
    %v1042 = vsel %vm192, %v1039, 0
    %1044 = vmatprep.subr.mxu0 0.0
    %1045 = vmatpush1.xpose.msra.mxu0 0.0
    %1046 = vmatprep.subr.mxu0 0.0
    %1047 = vmatpush1.xpose.msra.mxu0 0.0
    %1048 = vmatprep.subr.mxu0 0.0
    %1049 = vmatpush1.xpose.msra.mxu0 0.0
    %1050 = vmatprep.subr.mxu0 0.0
    %1051 = vmatpush1.xpose.msra.mxu0 0.0
    %1052 = vmatprep.subr.mxu0 0.0
    %1053 = vmatpush1.xpose.msra.mxu0 0.0
    %1054 = vmatprep.subr.mxu0 0.0
    %1055 = vmatpush1.xpose.msra.mxu0 0.0
    %1056 = vmatprep.subr.mxu0 0.0
    %1057 = vmatpush1.xpose.msra.mxu0 0.0
    %1058 = vmatprep.subr.mxu0 0.0
    %1059 = vmatpush1.xpose.msra.mxu0 0.0
    %1060 = vmatprep.subr.mxu0 0.0
    %1061 = vmatpush1.xpose.msra.mxu0 0.0
    %1062 = vmatprep.subr.mxu0 0.0
    %1063 = vmatpush1.xpose.msra.mxu0 0.0
    %1064 = vmatprep.subr.mxu0 0.0
    %1065 = vmatpush1.xpose.msra.mxu0 0.0
    %1066 = vmatprep.subr.mxu0 0.0
    %1067 = vmatpush1.xpose.msra.mxu0 0.0
    %1068 = vmatprep.subr.mxu0 0.0
    %1069 = vmatpush1.xpose.msra.mxu0 0.0
    %1070 = vmatprep.subr.mxu0 0.0
    %1071 = vmatpush1.xpose.msra.mxu0 0.0
    %1072 = vmatprep.subr.mxu0 0.0
    %1073 = vmatpush1.xpose.msra.mxu0 0.0
    %1074 = vmatprep.subr.mxu0 0.0
    %1075 = vmatpush1.xpose.msra.mxu0 %v1042
    %1076 = vmatprep.subr.mxu0 0.0
    %1077 = vmatpush2.xpose.msra.mxu0 0.0
    %1078 = vmatprep.subr.mxu0 0.0
    %1079 = vmatpush2.xpose.msra.mxu0 0.0
    %1080 = vmatprep.subr.mxu0 0.0
    %1081 = vmatpush2.xpose.msra.mxu0 0.0
    %1082 = vmatprep.subr.mxu0 0.0
    %1083 = vmatpush2.xpose.msra.mxu0 0.0
    %1084 = vmatprep.subr.mxu0 0.0
    %1085 = vmatpush2.xpose.msra.mxu0 0.0
    %1086 = vmatprep.subr.mxu0 0.0
    %1087 = vmatpush2.xpose.msra.mxu0 0.0
    %1088 = vmatprep.subr.mxu0 0.0
    %1089 = vmatpush2.xpose.msra.mxu0 0.0
    %1090 = vmatprep.subr.mxu0 0.0
    %1091 = vmatpush2.xpose.msra.mxu0 0.0
    %1092 = vmatprep.subr.mxu0 0.0
    %1093 = vmatpush2.xpose.msra.mxu0 0.0
    %1094 = vmatprep.subr.mxu0 0.0
    %1095 = vmatpush2.xpose.msra.mxu0 0.0
    %1096 = vmatprep.subr.mxu0 0.0
    %1097 = vmatpush2.xpose.msra.mxu0 0.0
    %1098 = vmatprep.subr.mxu0 0.0
    %1099 = vmatpush2.xpose.msra.mxu0 0.0
    %1100 = vmatprep.subr.mxu0 0.0
    %1101 = vmatpush2.xpose.msra.mxu0 0.0
    %1102 = vmatprep.subr.mxu0 0.0
    %1103 = vmatpush2.xpose.msra.mxu0 0.0
    %1104 = vmatprep.subr.mxu0 0.0
    %1105 = vmatpush2.xpose.msra.mxu0 0.0
    %1106 = vmatprep.subr.mxu0 0.0
    %1107 = vmatpush2.xpose.msra.mxu0 0.0
    %1108 = vmatprep.mubr.f32.mxu0 0.0
    %1109 = vmatmul.mubr.f32.gmra.mxu0 %v1040
    %v1110 = vpop.f32.mrf.mxu0
    %v1111 = vadd.f32 0.0, %v1110
    %v1112 = vpop.f32.mrf.mxu0
    %1113 = vdwg.mxu0
    %v1114 = vmul.f32 %v1111, 0.35355338
    %v1115 = vadd.f32 %v1114, %v950
    %v1116 = vsel %vm192, %v1115, -inf
    %1117 = vmax.xlane.f32.xlu0 %v1116
    %v1118 = vpop.xlane.xlu0 %1117
    %v1119 = vsub.f32 %v1115, %v1118
    %v1120 = vmul.f32 %v1119, 1.442695
    %v1121 = vpow.pop %v1120
    %v1122 = vsel %vm192, %v1121, 0.0
    %1123 = vadd.xlane.f32.xlu0 %v1122
    %v1124 = vpop.xlane.xlu0 %1123
    %v1125 = vrcp.pop %v1124
    %v1126 = vmul.f32 %v1121, %v1125
    %v1129 = vsel %vm192, %v1126, 0
    %1131 = vmatprep.subr.mxu0 0.0
    %1132 = vmatpush1.msra.mxu0 0.0
    %1133 = vmatprep.subr.mxu0 0.0
    %1134 = vmatpush1.msra.mxu0 0.0
    %1135 = vmatprep.subr.mxu0 0.0
    %1136 = vmatpush1.msra.mxu0 0.0
    %1137 = vmatprep.subr.mxu0 0.0
    %1138 = vmatpush1.msra.mxu0 0.0
    %1139 = vmatprep.subr.mxu0 0.0
    %1140 = vmatpush1.msra.mxu0 0.0
    %1141 = vmatprep.subr.mxu0 0.0
    %1142 = vmatpush1.msra.mxu0 0.0
    %1143 = vmatprep.subr.mxu0 0.0
    %1144 = vmatpush1.msra.mxu0 0.0
    %1145 = vmatprep.subr.mxu0 0.0
    %1146 = vmatpush1.msra.mxu0 0.0
    %1147 = vmatprep.subr.mxu0 0.0
    %1148 = vmatpush1.msra.mxu0 0.0
    %1149 = vmatprep.subr.mxu0 0.0
    %1150 = vmatpush1.msra.mxu0 0.0
    %1151 = vmatprep.subr.mxu0 0.0
    %1152 = vmatpush1.msra.mxu0 0.0
    %1153 = vmatprep.subr.mxu0 0.0
    %1154 = vmatpush1.msra.mxu0 0.0
    %1155 = vmatprep.subr.mxu0 0.0
    %1156 = vmatpush1.msra.mxu0 0.0
    %1157 = vmatprep.subr.mxu0 0.0
    %1158 = vmatpush1.msra.mxu0 0.0
    %1159 = vmatprep.subr.mxu0 0.0
    %1160 = vmatpush1.msra.mxu0 0.0
    %1161 = vmatprep.subr.mxu0 0.0
    %1162 = vmatpush1.msra.mxu0 %v1037
    %1163 = vmatprep.subr.mxu0 0.0
    %1164 = vmatpush2.msra.mxu0 0.0
    %1165 = vmatprep.subr.mxu0 0.0
    %1166 = vmatpush2.msra.mxu0 0.0
    %1167 = vmatprep.subr.mxu0 0.0
    %1168 = vmatpush2.msra.mxu0 0.0
    %1169 = vmatprep.subr.mxu0 0.0
    %1170 = vmatpush2.msra.mxu0 0.0
    %1171 = vmatprep.subr.mxu0 0.0
    %1172 = vmatpush2.msra.mxu0 0.0
    %1173 = vmatprep.subr.mxu0 0.0
    %1174 = vmatpush2.msra.mxu0 0.0
    %1175 = vmatprep.subr.mxu0 0.0
    %1176 = vmatpush2.msra.mxu0 0.0
    %1177 = vmatprep.subr.mxu0 0.0
    %1178 = vmatpush2.msra.mxu0 0.0
    %1179 = vmatprep.subr.mxu0 0.0
    %1180 = vmatpush2.msra.mxu0 0.0
    %1181 = vmatprep.subr.mxu0 0.0
    %1182 = vmatpush2.msra.mxu0 0.0
    %1183 = vmatprep.subr.mxu0 0.0
    %1184 = vmatpush2.msra.mxu0 0.0
    %1185 = vmatprep.subr.mxu0 0.0
    %1186 = vmatpush2.msra.mxu0 0.0
    %1187 = vmatprep.subr.mxu0 0.0
    %1188 = vmatpush2.msra.mxu0 0.0
    %1189 = vmatprep.subr.mxu0 0.0
    %1190 = vmatpush2.msra.mxu0 0.0
    %1191 = vmatprep.subr.mxu0 0.0
    %1192 = vmatpush2.msra.mxu0 0.0
    %1193 = vmatprep.subr.mxu0 0.0
    %1194 = vmatpush2.msra.mxu0 0.0
    %1195 = vmatprep.mubr.f32.mxu0 0.0
    %1196 = vmatmul.mubr.f32.gmra.mxu0 %v1129
    %v1197 = vpop.f32.mrf.mxu0
    %v1198 = vadd.f32 0.0, %v1197
    %v1199 = vpop.f32.mrf.mxu0
    %1200 = vdwg.mxu0
    %1201 = vrot.lane.b32.xlu0 %v185, 112
    %v1202 = vpop.permute.xlu0 %1201
    %1203 = vrot.lane.b32.xlu0 %v185, 80
    %v1204 = vpop.permute.xlu0 %1203
    %v1205 = vsel %vm192, %v1202, 0
    %v1207 = vsel %vm192, %v1204, 0
    %1209 = vmatprep.subr.mxu0 0.0
    %1210 = vmatpush1.xpose.msra.mxu0 0.0
    %1211 = vmatprep.subr.mxu0 0.0
    %1212 = vmatpush1.xpose.msra.mxu0 0.0
    %1213 = vmatprep.subr.mxu0 0.0
    %1214 = vmatpush1.xpose.msra.mxu0 0.0
    %1215 = vmatprep.subr.mxu0 0.0
    %1216 = vmatpush1.xpose.msra.mxu0 0.0
    %1217 = vmatprep.subr.mxu0 0.0
    %1218 = vmatpush1.xpose.msra.mxu0 0.0
    %1219 = vmatprep.subr.mxu0 0.0
    %1220 = vmatpush1.xpose.msra.mxu0 0.0
    %1221 = vmatprep.subr.mxu0 0.0
    %1222 = vmatpush1.xpose.msra.mxu0 0.0
    %1223 = vmatprep.subr.mxu0 0.0
    %1224 = vmatpush1.xpose.msra.mxu0 0.0
    %1225 = vmatprep.subr.mxu0 0.0
    %1226 = vmatpush1.xpose.msra.mxu0 0.0
    %1227 = vmatprep.subr.mxu0 0.0
    %1228 = vmatpush1.xpose.msra.mxu0 0.0
    %1229 = vmatprep.subr.mxu0 0.0
    %1230 = vmatpush1.xpose.msra.mxu0 0.0
    %1231 = vmatprep.subr.mxu0 0.0
    %1232 = vmatpush1.xpose.msra.mxu0 0.0
    %1233 = vmatprep.subr.mxu0 0.0
    %1234 = vmatpush1.xpose.msra.mxu0 0.0
    %1235 = vmatprep.subr.mxu0 0.0
    %1236 = vmatpush1.xpose.msra.mxu0 0.0
    %1237 = vmatprep.subr.mxu0 0.0
    %1238 = vmatpush1.xpose.msra.mxu0 0.0
    %1239 = vmatprep.subr.mxu0 0.0
    %1240 = vmatpush1.xpose.msra.mxu0 %v1207
    %1241 = vmatprep.subr.mxu0 0.0
    %1242 = vmatpush2.xpose.msra.mxu0 0.0
    %1243 = vmatprep.subr.mxu0 0.0
    %1244 = vmatpush2.xpose.msra.mxu0 0.0
    %1245 = vmatprep.subr.mxu0 0.0
    %1246 = vmatpush2.xpose.msra.mxu0 0.0
    %1247 = vmatprep.subr.mxu0 0.0
    %1248 = vmatpush2.xpose.msra.mxu0 0.0
    %1249 = vmatprep.subr.mxu0 0.0
    %1250 = vmatpush2.xpose.msra.mxu0 0.0
    %1251 = vmatprep.subr.mxu0 0.0
    %1252 = vmatpush2.xpose.msra.mxu0 0.0
    %1253 = vmatprep.subr.mxu0 0.0
    %1254 = vmatpush2.xpose.msra.mxu0 0.0
    %1255 = vmatprep.subr.mxu0 0.0
    %1256 = vmatpush2.xpose.msra.mxu0 0.0
    %1257 = vmatprep.subr.mxu0 0.0
    %1258 = vmatpush2.xpose.msra.mxu0 0.0
    %1259 = vmatprep.subr.mxu0 0.0
    %1260 = vmatpush2.xpose.msra.mxu0 0.0
    %1261 = vmatprep.subr.mxu0 0.0
    %1262 = vmatpush2.xpose.msra.mxu0 0.0
    %1263 = vmatprep.subr.mxu0 0.0
    %1264 = vmatpush2.xpose.msra.mxu0 0.0
    %1265 = vmatprep.subr.mxu0 0.0
    %1266 = vmatpush2.xpose.msra.mxu0 0.0
    %1267 = vmatprep.subr.mxu0 0.0
    %1268 = vmatpush2.xpose.msra.mxu0 0.0
    %1269 = vmatprep.subr.mxu0 0.0
    %1270 = vmatpush2.xpose.msra.mxu0 0.0
    %1271 = vmatprep.subr.mxu0 0.0
    %1272 = vmatpush2.xpose.msra.mxu0 0.0
    %1273 = vmatprep.mubr.f32.mxu0 0.0
    %1274 = vmatmul.mubr.f32.gmra.mxu0 %v1205
    %v1275 = vpop.f32.mrf.mxu0
    %v1276 = vadd.f32 0.0, %v1275
    %v1277 = vpop.f32.mrf.mxu0
    %1278 = vdwg.mxu0
    %v1279 = vmul.f32 %v1276, 0.35355338
    %v1280 = vadd.f32 %v1279, %v950
    %v1281 = vsel %vm192, %v1280, -inf
    %1282 = vmax.xlane.f32.xlu0 %v1281
    %v1283 = vpop.xlane.xlu0 %1282
    %v1284 = vsub.f32 %v1280, %v1283
    %v1285 = vmul.f32 %v1284, 1.442695
    %v1286 = vpow.pop %v1285
    %v1287 = vsel %vm192, %v1286, 0.0
    %1288 = vadd.xlane.f32.xlu0 %v1287
    %v1289 = vpop.xlane.xlu0 %1288
    %v1290 = vrcp.pop %v1289
    %v1291 = vmul.f32 %v1286, %v1290
    %v1294 = vsel %vm192, %v1291, 0
    %1296 = vmatprep.subr.mxu0 0.0
    %1297 = vmatpush1.msra.mxu0 0.0
    %1298 = vmatprep.subr.mxu0 0.0
    %1299 = vmatpush1.msra.mxu0 0.0
    %1300 = vmatprep.subr.mxu0 0.0
    %1301 = vmatpush1.msra.mxu0 0.0
    %1302 = vmatprep.subr.mxu0 0.0
    %1303 = vmatpush1.msra.mxu0 0.0
    %1304 = vmatprep.subr.mxu0 0.0
    %1305 = vmatpush1.msra.mxu0 0.0
    %1306 = vmatprep.subr.mxu0 0.0
    %1307 = vmatpush1.msra.mxu0 0.0
    %1308 = vmatprep.subr.mxu0 0.0
    %1309 = vmatpush1.msra.mxu0 0.0
    %1310 = vmatprep.subr.mxu0 0.0
    %1311 = vmatpush1.msra.mxu0 0.0
    %1312 = vmatprep.subr.mxu0 0.0
    %1313 = vmatpush1.msra.mxu0 0.0
    %1314 = vmatprep.subr.mxu0 0.0
    %1315 = vmatpush1.msra.mxu0 0.0
    %1316 = vmatprep.subr.mxu0 0.0
    %1317 = vmatpush1.msra.mxu0 0.0
    %1318 = vmatprep.subr.mxu0 0.0
    %1319 = vmatpush1.msra.mxu0 0.0
    %1320 = vmatprep.subr.mxu0 0.0
    %1321 = vmatpush1.msra.mxu0 0.0
    %1322 = vmatprep.subr.mxu0 0.0
    %1323 = vmatpush1.msra.mxu0 0.0
    %1324 = vmatprep.subr.mxu0 0.0
    %1325 = vmatpush1.msra.mxu0 0.0
    %1326 = vmatprep.subr.mxu0 0.0
    %1327 = vmatpush1.msra.mxu0 %v1202
    %1328 = vmatprep.subr.mxu0 0.0
    %1329 = vmatpush2.msra.mxu0 0.0
    %1330 = vmatprep.subr.mxu0 0.0
    %1331 = vmatpush2.msra.mxu0 0.0
    %1332 = vmatprep.subr.mxu0 0.0
    %1333 = vmatpush2.msra.mxu0 0.0
    %1334 = vmatprep.subr.mxu0 0.0
    %1335 = vmatpush2.msra.mxu0 0.0
    %1336 = vmatprep.subr.mxu0 0.0
    %1337 = vmatpush2.msra.mxu0 0.0
    %1338 = vmatprep.subr.mxu0 0.0
    %1339 = vmatpush2.msra.mxu0 0.0
    %1340 = vmatprep.subr.mxu0 0.0
    %1341 = vmatpush2.msra.mxu0 0.0
    %1342 = vmatprep.subr.mxu0 0.0
    %1343 = vmatpush2.msra.mxu0 0.0
    %1344 = vmatprep.subr.mxu0 0.0
    %1345 = vmatpush2.msra.mxu0 0.0
    %1346 = vmatprep.subr.mxu0 0.0
    %1347 = vmatpush2.msra.mxu0 0.0
    %1348 = vmatprep.subr.mxu0 0.0
    %1349 = vmatpush2.msra.mxu0 0.0
    %1350 = vmatprep.subr.mxu0 0.0
    %1351 = vmatpush2.msra.mxu0 0.0
    %1352 = vmatprep.subr.mxu0 0.0
    %1353 = vmatpush2.msra.mxu0 0.0
    %1354 = vmatprep.subr.mxu0 0.0
    %1355 = vmatpush2.msra.mxu0 0.0
    %1356 = vmatprep.subr.mxu0 0.0
    %1357 = vmatpush2.msra.mxu0 0.0
    %1358 = vmatprep.subr.mxu0 0.0
    %1359 = vmatpush2.msra.mxu0 0.0
    %1360 = vmatprep.mubr.f32.mxu0 0.0
    %1361 = vmatmul.mubr.f32.gmra.mxu0 %v1294
    %v1362 = vpop.f32.mrf.mxu0
    %v1363 = vadd.f32 0.0, %v1362
    %v1364 = vpop.f32.mrf.mxu0
    %1365 = vdwg.mxu0
    %1366 = vrot.lane.b32.xlu0 %v185, 104
    %v1367 = vpop.permute.xlu0 %1366
    %1368 = vrot.lane.b32.xlu0 %v185, 72
    %v1369 = vpop.permute.xlu0 %1368
    %v1370 = vsel %vm192, %v1367, 0
    %v1372 = vsel %vm192, %v1369, 0
    %1374 = vmatprep.subr.mxu0 0.0
    %1375 = vmatpush1.xpose.msra.mxu0 0.0
    %1376 = vmatprep.subr.mxu0 0.0
    %1377 = vmatpush1.xpose.msra.mxu0 0.0
    %1378 = vmatprep.subr.mxu0 0.0
    %1379 = vmatpush1.xpose.msra.mxu0 0.0
    %1380 = vmatprep.subr.mxu0 0.0
    %1381 = vmatpush1.xpose.msra.mxu0 0.0
    %1382 = vmatprep.subr.mxu0 0.0
    %1383 = vmatpush1.xpose.msra.mxu0 0.0
    %1384 = vmatprep.subr.mxu0 0.0
    %1385 = vmatpush1.xpose.msra.mxu0 0.0
    %1386 = vmatprep.subr.mxu0 0.0
    %1387 = vmatpush1.xpose.msra.mxu0 0.0
    %1388 = vmatprep.subr.mxu0 0.0
    %1389 = vmatpush1.xpose.msra.mxu0 0.0
    %1390 = vmatprep.subr.mxu0 0.0
    %1391 = vmatpush1.xpose.msra.mxu0 0.0
    %1392 = vmatprep.subr.mxu0 0.0
    %1393 = vmatpush1.xpose.msra.mxu0 0.0
    %1394 = vmatprep.subr.mxu0 0.0
    %1395 = vmatpush1.xpose.msra.mxu0 0.0
    %1396 = vmatprep.subr.mxu0 0.0
    %1397 = vmatpush1.xpose.msra.mxu0 0.0
    %1398 = vmatprep.subr.mxu0 0.0
    %1399 = vmatpush1.xpose.msra.mxu0 0.0
    %1400 = vmatprep.subr.mxu0 0.0
    %1401 = vmatpush1.xpose.msra.mxu0 0.0
    %1402 = vmatprep.subr.mxu0 0.0
    %1403 = vmatpush1.xpose.msra.mxu0 0.0
    %1404 = vmatprep.subr.mxu0 0.0
    %1405 = vmatpush1.xpose.msra.mxu0 %v1372
    %1406 = vmatprep.subr.mxu0 0.0
    %1407 = vmatpush2.xpose.msra.mxu0 0.0
    %1408 = vmatprep.subr.mxu0 0.0
    %1409 = vmatpush2.xpose.msra.mxu0 0.0
    %1410 = vmatprep.subr.mxu0 0.0
    %1411 = vmatpush2.xpose.msra.mxu0 0.0
    %1412 = vmatprep.subr.mxu0 0.0
    %1413 = vmatpush2.xpose.msra.mxu0 0.0
    %1414 = vmatprep.subr.mxu0 0.0
    %1415 = vmatpush2.xpose.msra.mxu0 0.0
    %1416 = vmatprep.subr.mxu0 0.0
    %1417 = vmatpush2.xpose.msra.mxu0 0.0
    %1418 = vmatprep.subr.mxu0 0.0
    %1419 = vmatpush2.xpose.msra.mxu0 0.0
    %1420 = vmatprep.subr.mxu0 0.0
    %1421 = vmatpush2.xpose.msra.mxu0 0.0
    %1422 = vmatprep.subr.mxu0 0.0
    %1423 = vmatpush2.xpose.msra.mxu0 0.0
    %1424 = vmatprep.subr.mxu0 0.0
    %1425 = vmatpush2.xpose.msra.mxu0 0.0
    %1426 = vmatprep.subr.mxu0 0.0
    %1427 = vmatpush2.xpose.msra.mxu0 0.0
    %1428 = vmatprep.subr.mxu0 0.0
    %1429 = vmatpush2.xpose.msra.mxu0 0.0
    %1430 = vmatprep.subr.mxu0 0.0
    %1431 = vmatpush2.xpose.msra.mxu0 0.0
    %1432 = vmatprep.subr.mxu0 0.0
    %1433 = vmatpush2.xpose.msra.mxu0 0.0
    %1434 = vmatprep.subr.mxu0 0.0
    %1435 = vmatpush2.xpose.msra.mxu0 0.0
    %1436 = vmatprep.subr.mxu0 0.0
    %1437 = vmatpush2.xpose.msra.mxu0 0.0
    %1438 = vmatprep.mubr.f32.mxu0 0.0
    %1439 = vmatmul.mubr.f32.gmra.mxu0 %v1370
    %v1440 = vpop.f32.mrf.mxu0
    %v1441 = vadd.f32 0.0, %v1440
    %v1442 = vpop.f32.mrf.mxu0
    %1443 = vdwg.mxu0
    %v1444 = vmul.f32 %v1441, 0.35355338
    %v1445 = vadd.f32 %v1444, %v950
    %v1446 = vsel %vm192, %v1445, -inf
    %1447 = vmax.xlane.f32.xlu0 %v1446
    %v1448 = vpop.xlane.xlu0 %1447
    %v1449 = vsub.f32 %v1445, %v1448
    %v1450 = vmul.f32 %v1449, 1.442695
    %v1451 = vpow.pop %v1450
    %v1452 = vsel %vm192, %v1451, 0.0
    %1453 = vadd.xlane.f32.xlu0 %v1452
    %v1454 = vpop.xlane.xlu0 %1453
    %v1455 = vrcp.pop %v1454
    %v1456 = vmul.f32 %v1451, %v1455
    %v1459 = vsel %vm192, %v1456, 0
    %1461 = vmatprep.subr.mxu0 0.0
    %1462 = vmatpush1.msra.mxu0 0.0
    %1463 = vmatprep.subr.mxu0 0.0
    %1464 = vmatpush1.msra.mxu0 0.0
    %1465 = vmatprep.subr.mxu0 0.0
    %1466 = vmatpush1.msra.mxu0 0.0
    %1467 = vmatprep.subr.mxu0 0.0
    %1468 = vmatpush1.msra.mxu0 0.0
    %1469 = vmatprep.subr.mxu0 0.0
    %1470 = vmatpush1.msra.mxu0 0.0
    %1471 = vmatprep.subr.mxu0 0.0
    %1472 = vmatpush1.msra.mxu0 0.0
    %1473 = vmatprep.subr.mxu0 0.0
    %1474 = vmatpush1.msra.mxu0 0.0
    %1475 = vmatprep.subr.mxu0 0.0
    %1476 = vmatpush1.msra.mxu0 0.0
    %1477 = vmatprep.subr.mxu0 0.0
    %1478 = vmatpush1.msra.mxu0 0.0
    %1479 = vmatprep.subr.mxu0 0.0
    %1480 = vmatpush1.msra.mxu0 0.0
    %1481 = vmatprep.subr.mxu0 0.0
    %1482 = vmatpush1.msra.mxu0 0.0
    %1483 = vmatprep.subr.mxu0 0.0
    %1484 = vmatpush1.msra.mxu0 0.0
    %1485 = vmatprep.subr.mxu0 0.0
    %1486 = vmatpush1.msra.mxu0 0.0
    %1487 = vmatprep.subr.mxu0 0.0
    %1488 = vmatpush1.msra.mxu0 0.0
    %1489 = vmatprep.subr.mxu0 0.0
    %1490 = vmatpush1.msra.mxu0 0.0
    %1491 = vmatprep.subr.mxu0 0.0
    %1492 = vmatpush1.msra.mxu0 %v1367
    %1493 = vmatprep.subr.mxu0 0.0
    %1494 = vmatpush2.msra.mxu0 0.0
    %1495 = vmatprep.subr.mxu0 0.0
    %1496 = vmatpush2.msra.mxu0 0.0
    %1497 = vmatprep.subr.mxu0 0.0
    %1498 = vmatpush2.msra.mxu0 0.0
    %1499 = vmatprep.subr.mxu0 0.0
    %1500 = vmatpush2.msra.mxu0 0.0
    %1501 = vmatprep.subr.mxu0 0.0
    %1502 = vmatpush2.msra.mxu0 0.0
    %1503 = vmatprep.subr.mxu0 0.0
    %1504 = vmatpush2.msra.mxu0 0.0
    %1505 = vmatprep.subr.mxu0 0.0
    %1506 = vmatpush2.msra.mxu0 0.0
    %1507 = vmatprep.subr.mxu0 0.0
    %1508 = vmatpush2.msra.mxu0 0.0
    %1509 = vmatprep.subr.mxu0 0.0
    %1510 = vmatpush2.msra.mxu0 0.0
    %1511 = vmatprep.subr.mxu0 0.0
    %1512 = vmatpush2.msra.mxu0 0.0
    %1513 = vmatprep.subr.mxu0 0.0
    %1514 = vmatpush2.msra.mxu0 0.0
    %1515 = vmatprep.subr.mxu0 0.0
    %1516 = vmatpush2.msra.mxu0 0.0
    %1517 = vmatprep.subr.mxu0 0.0
    %1518 = vmatpush2.msra.mxu0 0.0
    %1519 = vmatprep.subr.mxu0 0.0
    %1520 = vmatpush2.msra.mxu0 0.0
    %1521 = vmatprep.subr.mxu0 0.0
    %1522 = vmatpush2.msra.mxu0 0.0
    %1523 = vmatprep.subr.mxu0 0.0
    %1524 = vmatpush2.msra.mxu0 0.0
    %1525 = vmatprep.mubr.f32.mxu0 0.0
    %1526 = vmatmul.mubr.f32.gmra.mxu0 %v1459
    %v1527 = vpop.f32.mrf.mxu0
    %v1528 = vadd.f32 0.0, %v1527
    %v1529 = vpop.f32.mrf.mxu0
    %1530 = vdwg.mxu0
    %1532 = vrot.lane.b32.xlu0 %v1198, 8
    %v1533 = vpop.permute.xlu0 %1532
    %1536 = vrot.lane.b32.xlu0 %v1363, 16
    %v1537 = vpop.permute.xlu0 %1536
    %1540 = vrot.lane.b32.xlu0 %v1528, 24
    %v1541 = vpop.permute.xlu0 %1540
    %v1543 = vsel %vm192, %v1033, %v1533
    %v1544 = vsel %vm865, %v1543, %v1537
    %v1545 = vsel %vm867, %v1544, %v1541
    %v1546 = vld [vmem:[%s6] sm:$0xff]
    %v1547 = vld [vmem:[%s6 + $0x8] sm:$0xff]
    %v1548 = vld [vmem:[%s6 + $0x10] sm:$0xff]
    %v1549 = vld [vmem:[%s6 + $0x18] sm:$0xff]
    %v1550 = vld [vmem:[%s7] sm:$0x1]
    %v1552 = vlaneseq
    %v1553 = vshrl.u32 %v1552, 7
    %v1554 = vsub.s32 0, %v1553
    %v1555 = vrot.slane %v1550, %v1554
    %v1558 = vsel %vm50, %v868, 0
    %v1561 = vsel %vm50, %v1545, 0
    %1563 = vmatprep.subr.mxu0 0.0
    %1564 = vmatpush1.msra.mxu0 0.0
    %1565 = vmatprep.subr.mxu0 0.0
    %1566 = vmatpush1.msra.mxu0 0.0
    %1567 = vmatprep.subr.mxu0 0.0
    %1568 = vmatpush1.msra.mxu0 0.0
    %1569 = vmatprep.subr.mxu0 0.0
    %1570 = vmatpush1.msra.mxu0 0.0
    %1571 = vmatprep.subr.mxu0 0.0
    %1572 = vmatpush1.msra.mxu0 0.0
    %1573 = vmatprep.subr.mxu0 0.0
    %1574 = vmatpush1.msra.mxu0 0.0
    %1575 = vmatprep.subr.mxu0 0.0
    %1576 = vmatpush1.msra.mxu0 0.0
    %1577 = vmatprep.subr.mxu0 0.0
    %1578 = vmatpush1.msra.mxu0 0.0
    %1579 = vmatprep.subr.mxu0 0.0
    %1580 = vmatpush1.msra.mxu0 0.0
    %1581 = vmatprep.subr.mxu0 0.0
    %1582 = vmatpush1.msra.mxu0 0.0
    %1583 = vmatprep.subr.mxu0 0.0
    %1584 = vmatpush1.msra.mxu0 0.0
    %1585 = vmatprep.subr.mxu0 0.0
    %1586 = vmatpush1.msra.mxu0 0.0
    %1587 = vmatprep.subr.mxu0 0.0
    %1588 = vmatpush1.msra.mxu0 %v1549
    %1589 = vmatprep.subr.mxu0 0.0
    %1590 = vmatpush1.msra.mxu0 %v1548
    %1591 = vmatprep.subr.mxu0 0.0
    %1592 = vmatpush1.msra.mxu0 %v1547
    %1593 = vmatprep.subr.mxu0 0.0
    %1594 = vmatpush1.msra.mxu0 %v1546
    %1595 = vmatprep.subr.mxu0 0.0
    %1596 = vmatpush2.msra.mxu0 0.0
    %1597 = vmatprep.subr.mxu0 0.0
    %1598 = vmatpush2.msra.mxu0 0.0
    %1599 = vmatprep.subr.mxu0 0.0
    %1600 = vmatpush2.msra.mxu0 0.0
    %1601 = vmatprep.subr.mxu0 0.0
    %1602 = vmatpush2.msra.mxu0 0.0
    %1603 = vmatprep.subr.mxu0 0.0
    %1604 = vmatpush2.msra.mxu0 0.0
    %1605 = vmatprep.subr.mxu0 0.0
    %1606 = vmatpush2.msra.mxu0 0.0
    %1607 = vmatprep.subr.mxu0 0.0
    %1608 = vmatpush2.msra.mxu0 0.0
    %1609 = vmatprep.subr.mxu0 0.0
    %1610 = vmatpush2.msra.mxu0 0.0
    %1611 = vmatprep.subr.mxu0 0.0
    %1612 = vmatpush2.msra.mxu0 0.0
    %1613 = vmatprep.subr.mxu0 0.0
    %1614 = vmatpush2.msra.mxu0 0.0
    %1615 = vmatprep.subr.mxu0 0.0
    %1616 = vmatpush2.msra.mxu0 0.0
    %1617 = vmatprep.subr.mxu0 0.0
    %1618 = vmatpush2.msra.mxu0 0.0
    %1619 = vmatprep.subr.mxu0 0.0
    %1620 = vmatpush2.msra.mxu0 0.0
    %1621 = vmatprep.subr.mxu0 0.0
    %1622 = vmatpush2.msra.mxu0 0.0
    %1623 = vmatprep.subr.mxu0 0.0
    %1624 = vmatpush2.msra.mxu0 0.0
    %1625 = vmatprep.subr.mxu0 0.0
    %1626 = vmatpush2.msra.mxu0 0.0
    %1627 = vmatprep.mubr.f32.mxu0 0.0
    %1628 = vmatmul.mubr.f32.gmra.mxu0 %v1558
    %v1629 = vpop.f32.mrf.mxu0
    %v1630 = vadd.f32 %v1555, %v1629
    %v1631 = vpop.f32.mrf.mxu0
    %1632 = vmatprep.mubr.f32.mxu0 0.0
    %1633 = vmatmul.mubr.f32.gmra.mxu0 %v1561
    %v1634 = vpop.f32.mrf.mxu0
    %v1635 = vadd.f32 %v1555, %v1634
    %v1636 = vpop.f32.mrf.mxu0
    %1637 = vdwg.mxu0
    %v1638 = vadd.f32 %v94, %v1630
    %v1639 = vadd.f32 %v95, %v1635
    %v1640 = vsel %vm50, %v1638, 0.0
    %1641 = vadd.xlane.f32.xlu0 %v1640
    %v1642 = vpop.xlane.xlu0 %1641
    %v1643 = vsel %vm50, %v1639, 0.0
    %1644 = vadd.xlane.f32.xlu0 %v1643
    %v1645 = vpop.xlane.xlu0 %1644
    %v1646 = vmul.f32 %v1642, %v57
    %v1647 = vmul.f32 %v1645, %v57
    %v1648 = vsub.f32 %v1638, %v1646
    %v1649 = vsub.f32 %v1639, %v1647
    %v1650 = vmul.f32 %v1648, %v1648
    %v1651 = vmul.f32 %v1649, %v1649
    %v1652 = vsel %vm50, %v1650, 0.0
    %1653 = vadd.xlane.f32.xlu0 %v1652
    %v1654 = vpop.xlane.xlu0 %1653
    %v1655 = vsel %vm50, %v1651, 0.0
    %1656 = vadd.xlane.f32.xlu0 %v1655
    %v1657 = vpop.xlane.xlu0 %1656
    %v1658 = vmul.f32 %v1654, %v57
    %v1659 = vmul.f32 %v1657, %v57
    %v1660 = vadd.f32 %v1658, 1e-05
    %v1661 = vadd.f32 %v1659, 1e-05
    %v1662 = vrsqrt.pop %v1660
    %v1663 = vrsqrt.pop %v1661
    %v1664 = vmul.f32 %v1648, %v1662
    %v1665 = vmul.f32 %v1649, %v1663
    %v1666 = vld [vmem:[%s8] sm:$0x1]
    %v1668 = vlaneseq
    %v1669 = vshrl.u32 %v1668, 7
    %v1670 = vsub.s32 0, %v1669
    %v1671 = vrot.slane %v1666, %v1670
    %v1673 = vmul.f32 %v1664, %v1671
    %v1674 = vmul.f32 %v1665, %v1671
    %v1675 = vld [vmem:[%s9] sm:$0x1]
    %v1677 = vlaneseq
    %v1678 = vshrl.u32 %v1677, 7
    %v1679 = vsub.s32 0, %v1678
    %v1680 = vrot.slane %v1675, %v1679
    %v1682 = vadd.f32 %v1673, %v1680
    %v1683 = vadd.f32 %v1674, %v1680
    %v1684 = vld [vmem:[%s10] sm:$0xff]
    %v1685 = vld [vmem:[%s10 + $0x8] sm:$0xff]
    %v1686 = vld [vmem:[%s10 + $0x10] sm:$0xff]
    %v1687 = vld [vmem:[%s10 + $0x18] sm:$0xff]
    %v1688 = vld [vmem:[%s11] sm:$0x1]
    %v1690 = vlaneseq
    %v1691 = vshrl.u32 %v1690, 7
    %v1692 = vsub.s32 0, %v1691
    %v1693 = vrot.slane %v1688, %v1692
    %v1696 = vsel %vm50, %v1682, 0
    %v1699 = vsel %vm50, %v1683, 0
    %1701 = vmatprep.subr.mxu0 0.0
    %1702 = vmatpush1.msra.mxu0 0.0
    %1703 = vmatprep.subr.mxu0 0.0
    %1704 = vmatpush1.msra.mxu0 0.0
    %1705 = vmatprep.subr.mxu0 0.0
    %1706 = vmatpush1.msra.mxu0 0.0
    %1707 = vmatprep.subr.mxu0 0.0
    %1708 = vmatpush1.msra.mxu0 0.0
    %1709 = vmatprep.subr.mxu0 0.0
    %1710 = vmatpush1.msra.mxu0 0.0
    %1711 = vmatprep.subr.mxu0 0.0
    %1712 = vmatpush1.msra.mxu0 0.0
    %1713 = vmatprep.subr.mxu0 0.0
    %1714 = vmatpush1.msra.mxu0 0.0
    %1715 = vmatprep.subr.mxu0 0.0
    %1716 = vmatpush1.msra.mxu0 0.0
    %1717 = vmatprep.subr.mxu0 0.0
    %1718 = vmatpush1.msra.mxu0 0.0
    %1719 = vmatprep.subr.mxu0 0.0
    %1720 = vmatpush1.msra.mxu0 0.0
    %1721 = vmatprep.subr.mxu0 0.0
    %1722 = vmatpush1.msra.mxu0 0.0
    %1723 = vmatprep.subr.mxu0 0.0
    %1724 = vmatpush1.msra.mxu0 0.0
    %1725 = vmatprep.subr.mxu0 0.0
    %1726 = vmatpush1.msra.mxu0 %v1687
    %1727 = vmatprep.subr.mxu0 0.0
    %1728 = vmatpush1.msra.mxu0 %v1686
    %1729 = vmatprep.subr.mxu0 0.0
    %1730 = vmatpush1.msra.mxu0 %v1685
    %1731 = vmatprep.subr.mxu0 0.0
    %1732 = vmatpush1.msra.mxu0 %v1684
    %1733 = vmatprep.subr.mxu0 0.0
    %1734 = vmatpush2.msra.mxu0 0.0
    %1735 = vmatprep.subr.mxu0 0.0
    %1736 = vmatpush2.msra.mxu0 0.0
    %1737 = vmatprep.subr.mxu0 0.0
    %1738 = vmatpush2.msra.mxu0 0.0
    %1739 = vmatprep.subr.mxu0 0.0
    %1740 = vmatpush2.msra.mxu0 0.0
    %1741 = vmatprep.subr.mxu0 0.0
    %1742 = vmatpush2.msra.mxu0 0.0
    %1743 = vmatprep.subr.mxu0 0.0
    %1744 = vmatpush2.msra.mxu0 0.0
    %1745 = vmatprep.subr.mxu0 0.0
    %1746 = vmatpush2.msra.mxu0 0.0
    %1747 = vmatprep.subr.mxu0 0.0
    %1748 = vmatpush2.msra.mxu0 0.0
    %1749 = vmatprep.subr.mxu0 0.0
    %1750 = vmatpush2.msra.mxu0 0.0
    %1751 = vmatprep.subr.mxu0 0.0
    %1752 = vmatpush2.msra.mxu0 0.0
    %1753 = vmatprep.subr.mxu0 0.0
    %1754 = vmatpush2.msra.mxu0 0.0
    %1755 = vmatprep.subr.mxu0 0.0
    %1756 = vmatpush2.msra.mxu0 0.0
    %1757 = vmatprep.subr.mxu0 0.0
    %1758 = vmatpush2.msra.mxu0 0.0
    %1759 = vmatprep.subr.mxu0 0.0
    %1760 = vmatpush2.msra.mxu0 0.0
    %1761 = vmatprep.subr.mxu0 0.0
    %1762 = vmatpush2.msra.mxu0 0.0
    %1763 = vmatprep.subr.mxu0 0.0
    %1764 = vmatpush2.msra.mxu0 0.0
    %1765 = vmatprep.mubr.f32.mxu0 0.0
    %1766 = vmatmul.mubr.f32.gmra.mxu0 %v1696
    %v1767 = vpop.f32.mrf.mxu0
    %v1768 = vadd.f32 %v1693, %v1767
    %v1769 = vpop.f32.mrf.mxu0
    %1770 = vmatprep.mubr.f32.mxu0 0.0
    %1771 = vmatmul.mubr.f32.gmra.mxu0 %v1699
    %v1772 = vpop.f32.mrf.mxu0
    %v1773 = vadd.f32 %v1693, %v1772
    %v1774 = vpop.f32.mrf.mxu0
    %1775 = vdwg.mxu0
    %v1776 = vmul.f32 %v1768, 0.5
    %v1777 = vmul.f32 %v1773, 0.5
    %v1778 = vrcp.pop 1.4142135
    %v1779 = vmul.f32 %v1768, %v1778
    %v1780 = vmul.f32 %v1773, %v1778
    %v1781 = verf.f32.pop %v1779
    %v1782 = verf.f32.pop %v1780
    %v1783 = vadd.f32 %v1781, 1.0
    %v1784 = vadd.f32 %v1782, 1.0
    %v1785 = vmul.f32 %v1776, %v1783
    %v1786 = vmul.f32 %v1777, %v1784
    %v1787 = vld [vmem:[%s12] sm:$0xff]
    %v1788 = vld [vmem:[%s12 + $0x8] sm:$0xff]
    %v1789 = vld [vmem:[%s12 + $0x10] sm:$0xff]
    %v1790 = vld [vmem:[%s12 + $0x18] sm:$0xff]
    %v1791 = vld [vmem:[%s12 + $0x20] sm:$0xff]
    %v1792 = vld [vmem:[%s12 + $0x28] sm:$0xff]
    %v1793 = vld [vmem:[%s12 + $0x30] sm:$0xff]
    %v1794 = vld [vmem:[%s12 + $0x38] sm:$0xff]
    %v1795 = vld [vmem:[%s13] sm:$0x1]
    %v1797 = vlaneseq
    %v1798 = vshrl.u32 %v1797, 7
    %v1799 = vsub.s32 0, %v1798
    %v1800 = vrot.slane %v1795, %v1799
    %vm1802 = vcmask 523264
    %v1804 = vsel %vm1802, %v1785, 0
    %v1807 = vsel %vm1802, %v1786, 0
    %1809 = vmatprep.subr.mxu0 0.0
    %1810 = vmatpush1.msra.mxu0 0.0
    %1811 = vmatprep.subr.mxu0 0.0
    %1812 = vmatpush1.msra.mxu0 0.0
    %1813 = vmatprep.subr.mxu0 0.0
    %1814 = vmatpush1.msra.mxu0 0.0
    %1815 = vmatprep.subr.mxu0 0.0
    %1816 = vmatpush1.msra.mxu0 0.0
    %1817 = vmatprep.subr.mxu0 0.0
    %1818 = vmatpush1.msra.mxu0 0.0
    %1819 = vmatprep.subr.mxu0 0.0
    %1820 = vmatpush1.msra.mxu0 0.0
    %1821 = vmatprep.subr.mxu0 0.0
    %1822 = vmatpush1.msra.mxu0 0.0
    %1823 = vmatprep.subr.mxu0 0.0
    %1824 = vmatpush1.msra.mxu0 0.0
    %1825 = vmatprep.subr.mxu0 0.0
    %1826 = vmatpush1.msra.mxu0 %v1794
    %1827 = vmatprep.subr.mxu0 0.0
    %1828 = vmatpush1.msra.mxu0 %v1793
    %1829 = vmatprep.subr.mxu0 0.0
    %1830 = vmatpush1.msra.mxu0 %v1792
    %1831 = vmatprep.subr.mxu0 0.0
    %1832 = vmatpush1.msra.mxu0 %v1791
    %1833 = vmatprep.subr.mxu0 0.0
    %1834 = vmatpush1.msra.mxu0 %v1790
    %1835 = vmatprep.subr.mxu0 0.0
    %1836 = vmatpush1.msra.mxu0 %v1789
    %1837 = vmatprep.subr.mxu0 0.0
    %1838 = vmatpush1.msra.mxu0 %v1788
    %1839 = vmatprep.subr.mxu0 0.0
    %1840 = vmatpush1.msra.mxu0 %v1787
    %1841 = vmatprep.subr.mxu0 0.0
    %1842 = vmatpush2.msra.mxu0 0.0
    %1843 = vmatprep.subr.mxu0 0.0
    %1844 = vmatpush2.msra.mxu0 0.0
    %1845 = vmatprep.subr.mxu0 0.0
    %1846 = vmatpush2.msra.mxu0 0.0
    %1847 = vmatprep.subr.mxu0 0.0
    %1848 = vmatpush2.msra.mxu0 0.0
    %1849 = vmatprep.subr.mxu0 0.0
    %1850 = vmatpush2.msra.mxu0 0.0
    %1851 = vmatprep.subr.mxu0 0.0
    %1852 = vmatpush2.msra.mxu0 0.0
    %1853 = vmatprep.subr.mxu0 0.0
    %1854 = vmatpush2.msra.mxu0 0.0
    %1855 = vmatprep.subr.mxu0 0.0
    %1856 = vmatpush2.msra.mxu0 0.0
    %1857 = vmatprep.subr.mxu0 0.0
    %1858 = vmatpush2.msra.mxu0 0.0
    %1859 = vmatprep.subr.mxu0 0.0
    %1860 = vmatpush2.msra.mxu0 0.0
    %1861 = vmatprep.subr.mxu0 0.0
    %1862 = vmatpush2.msra.mxu0 0.0
    %1863 = vmatprep.subr.mxu0 0.0
    %1864 = vmatpush2.msra.mxu0 0.0
    %1865 = vmatprep.subr.mxu0 0.0
    %1866 = vmatpush2.msra.mxu0 0.0
    %1867 = vmatprep.subr.mxu0 0.0
    %1868 = vmatpush2.msra.mxu0 0.0
    %1869 = vmatprep.subr.mxu0 0.0
    %1870 = vmatpush2.msra.mxu0 0.0
    %1871 = vmatprep.subr.mxu0 0.0
    %1872 = vmatpush2.msra.mxu0 0.0
    %1873 = vmatprep.mubr.f32.mxu0 0.0
    %1874 = vmatmul.mubr.f32.gmra.mxu0 %v1804
    %v1875 = vpop.f32.mrf.mxu0
    %v1876 = vadd.f32 %v1800, %v1875
    %v1877 = vpop.f32.mrf.mxu0
    %1878 = vmatprep.mubr.f32.mxu0 0.0
    %1879 = vmatmul.mubr.f32.gmra.mxu0 %v1807
    %v1880 = vpop.f32.mrf.mxu0
    %v1881 = vadd.f32 %v1800, %v1880
    %v1882 = vpop.f32.mrf.mxu0
    %1883 = vdwg.mxu0
    %v1884 = vadd.f32 %v1682, %v1876
    %v1885 = vadd.f32 %v1683, %v1881
    %1886 = vst.msk [vmem:[#allocation2] sm:$0xff] %vm50, %v1884
    %1887 = vst.msk [vmem:[#allocation2 + $0x8] sm:$0xff] %vm50, %v1885
    // Predicated region
    $region58: #{bert_forward.5} parent=1 // pred_check
      _
    $region59: #{bert_forward.5} parent=1 // pred_check_branch
      %1889 = sbr.rel (0) target = $region61
    $region60: #{bert_forward.5} parent=1 // pred_region
      %s1891 = ssub.s32 256, 256
      %1892 = vsyncadd [#allocation3], %s1891
      %s1893 = sshll.u32 [#allocation2], 4
      %s1894 = int_to_ptr.vmem [resolvable:$true] %s1893
      %1899 = dma.vmem_to_hbm [thread:$0]  %s1894, 256, %s14, [#allocation3], 128, 128, 8
    $region61: #{bert_forward.5} parent=1 // pred_fallthru
      _
    // Predicated region
    $region62: #{bert_forward.5} parent=1 // pred_check
      _
    $region63: #{bert_forward.5} parent=1 // pred_check_branch
      %1901 = sbr.rel (0) target = $region65
    $region64: #{bert_forward.5} parent=1 // pred_region
      %1902 = dma.done [#allocation3], 256
    $region65: #{bert_forward.5} parent=1 // pred_fallthru
      _
    %1903 = vsyncpa [#allocation3], 1

// kernel: bert_forward.4
$region0: #{bert_forward.4}
  #allocation0 [shape = 'u32[]', space=smem, size = 0x4, offset = 0x4, fixed_abs, tag = 'smem constant byte address 0x4 - core index']
  #allocation1 [shape = 'u32[144,128]{1,0:T(1,128)}', space=vmem, size = 0x12000, scoped, tag = 'internal scratch']
  %s0 = inlined_call_operand.vmem [shape: f32[16,32], index: 0, kind: input, shape index: {}]
  %s1 = inlined_call_operand.vmem [shape: f32[2,8], index: 1, kind: input, shape index: {}]
  %s2 = inlined_call_operand.vmem [shape: f32[1,32], index: 2, kind: input, shape index: {}]
  %s3 = inlined_call_operand.vmem [shape: f32[1,32], index: 3, kind: input, shape index: {}]
  %s4 = inlined_call_operand.vmem [shape: f32[32,64], index: 4, kind: input, shape index: {}]
  %s5 = inlined_call_operand.vmem [shape: f32[1,64], index: 5, kind: input, shape index: {}]
  %s6 = inlined_call_operand.vmem [shape: f32[32,32], index: 6, kind: input, shape index: {}]
  %s7 = inlined_call_operand.vmem [shape: f32[1,32], index: 7, kind: input, shape index: {}]
  %s8 = inlined_call_operand.vmem [shape: f32[1,32], index: 8, kind: input, shape index: {}]
  %s9 = inlined_call_operand.vmem [shape: f32[1,32], index: 9, kind: input, shape index: {}]
  %s10 = inlined_call_operand.vmem [shape: f32[32,64], index: 10, kind: input, shape index: {}]
  %s11 = inlined_call_operand.vmem [shape: f32[1,64], index: 11, kind: input, shape index: {}]
  %s12 = inlined_call_operand.vmem [shape: f32[64,32], index: 12, kind: input, shape index: {}]
  %s13 = inlined_call_operand.vmem [shape: f32[1,32], index: 13, kind: input, shape index: {}]
  %s14 = inlined_call_operand.vmem [shape: f32[16,32], index: 14, kind: output, shape index: {}]
  %s15 = sld [smem:[#allocation0]]
  $region66: #{bert_forward.4} parent=0
    _
  %s17 = ssub.s32 1, %s15
  %s18 = scalar_select 0, %s17, %s15
  // Predicated region
  $region2: #{bert_forward.4} parent=0 // pred_check
    _
  $region3: #{bert_forward.4} parent=0 // pred_check_branch
    %20 = sbr.rel (0) target = $region5
  $region4: #{bert_forward.4} parent=0 // pred_region
    _
  $region5: #{bert_forward.4} parent=0 // pred_fallthru
    _
  // Predicated region
  $region6: #{bert_forward.4} parent=0 // pred_check
    _
  $region7: #{bert_forward.4} parent=0 // pred_check_branch
    %22 = sbr.rel (0) target = $region9
  $region8: #{bert_forward.4} parent=0 // pred_region
    _
  $region9: #{bert_forward.4} parent=0 // pred_fallthru
    _
  // Predicated region
  $region10: #{bert_forward.4} parent=0 // pred_check
    _
  $region11: #{bert_forward.4} parent=0 // pred_check_branch
    %24 = sbr.rel (0) target = $region13
  $region12: #{bert_forward.4} parent=0 // pred_region
    _
  $region13: #{bert_forward.4} parent=0 // pred_fallthru
    _
  // Predicated region
  $region14: #{bert_forward.4} parent=0 // pred_check
    _
  $region15: #{bert_forward.4} parent=0 // pred_check_branch
    %26 = sbr.rel (0) target = $region17
  $region16: #{bert_forward.4} parent=0 // pred_region
    _
  $region17: #{bert_forward.4} parent=0 // pred_fallthru
    _
  // Predicated region
  $region18: #{bert_forward.4} parent=0 // pred_check
    _
  $region19: #{bert_forward.4} parent=0 // pred_check_branch
    %28 = sbr.rel (0) target = $region21
  $region20: #{bert_forward.4} parent=0 // pred_region
    _
  $region21: #{bert_forward.4} parent=0 // pred_fallthru
    _
  // Predicated region
  $region22: #{bert_forward.4} parent=0 // pred_check
    _
  $region23: #{bert_forward.4} parent=0 // pred_check_branch
    %30 = sbr.rel (0) target = $region25
  $region24: #{bert_forward.4} parent=0 // pred_region
    _
  $region25: #{bert_forward.4} parent=0 // pred_fallthru
    _
  // Predicated region
  $region26: #{bert_forward.4} parent=0 // pred_check
    _
  $region27: #{bert_forward.4} parent=0 // pred_check_branch
    %32 = sbr.rel (0) target = $region29
  $region28: #{bert_forward.4} parent=0 // pred_region
    _
  $region29: #{bert_forward.4} parent=0 // pred_fallthru
    _
  // Predicated region
  $region30: #{bert_forward.4} parent=0 // pred_check
    _
  $region31: #{bert_forward.4} parent=0 // pred_check_branch
    %34 = sbr.rel (0) target = $region33
  $region32: #{bert_forward.4} parent=0 // pred_region
    _
  $region33: #{bert_forward.4} parent=0 // pred_fallthru
    _
  // Predicated region
  $region34: #{bert_forward.4} parent=0 // pred_check
    _
  $region35: #{bert_forward.4} parent=0 // pred_check_branch
    %36 = sbr.rel (0) target = $region37
  $region36: #{bert_forward.4} parent=0 // pred_region
    _
  $region37: #{bert_forward.4} parent=0 // pred_fallthru
    _
  // Predicated region
  $region38: #{bert_forward.4} parent=0 // pred_check
    _
  $region39: #{bert_forward.4} parent=0 // pred_check_branch
    %38 = sbr.rel (0) target = $region41
  $region40: #{bert_forward.4} parent=0 // pred_region
    _
  $region41: #{bert_forward.4} parent=0 // pred_fallthru
    _
  // Predicated region
  $region42: #{bert_forward.4} parent=0 // pred_check
    _
  $region43: #{bert_forward.4} parent=0 // pred_check_branch
    %40 = sbr.rel (0) target = $region45
  $region44: #{bert_forward.4} parent=0 // pred_region
    _
  $region45: #{bert_forward.4} parent=0 // pred_fallthru
    _
  // Predicated region
  $region46: #{bert_forward.4} parent=0 // pred_check
    _
  $region47: #{bert_forward.4} parent=0 // pred_check_branch
    %42 = sbr.rel (0) target = $region49
  $region48: #{bert_forward.4} parent=0 // pred_region
    _
  $region49: #{bert_forward.4} parent=0 // pred_fallthru
    _
  // Predicated region
  $region50: #{bert_forward.4} parent=0 // pred_check
    _
  $region51: #{bert_forward.4} parent=0 // pred_check_branch
    %44 = sbr.rel (0) target = $region53
  $region52: #{bert_forward.4} parent=0 // pred_region
    _
  $region53: #{bert_forward.4} parent=0 // pred_fallthru
    _
  // Predicated region
  $region54: #{bert_forward.4} parent=0 // pred_check
    _
  $region55: #{bert_forward.4} parent=0 // pred_check_branch
    %46 = sbr.rel (0) target = $region57
  $region56: #{bert_forward.4} parent=0 // pred_region
    _
  $region57: #{bert_forward.4} parent=0 // pred_fallthru
    _
  %v47 = vld [vmem:[%s0] sm:$0xff]
  %v48 = vld [vmem:[%s0 + $0x8] sm:$0xff]
  %vm49 = vcmask 261120
  %v50 = vsel %vm49, %v47, 0.0
  %51 = vadd.xlane.f32.xlu0 %v50
  %v52 = vpop.xlane.xlu0 %51
  %v53 = vsel %vm49, %v48, 0.0
  %54 = vadd.xlane.f32.xlu0 %v53
  %v55 = vpop.xlane.xlu0 %54
  %v56 = vrcp.pop 32.0
  %v57 = vmul.f32 %v52, %v56
  %v58 = vmul.f32 %v55, %v56
  %v59 = vsub.f32 %v47, %v57
  %v60 = vsub.f32 %v48, %v58
  %v61 = vmul.f32 %v59, %v59
  %v62 = vmul.f32 %v60, %v60
  %v63 = vsel %vm49, %v61, 0.0
  %64 = vadd.xlane.f32.xlu0 %v63
  %v65 = vpop.xlane.xlu0 %64
  %v66 = vsel %vm49, %v62, 0.0
  %67 = vadd.xlane.f32.xlu0 %v66
  %v68 = vpop.xlane.xlu0 %67
  %v69 = vmul.f32 %v65, %v56
  %v70 = vmul.f32 %v68, %v56
  %v71 = vadd.f32 %v69, 1e-05
  %v72 = vadd.f32 %v70, 1e-05
  %v73 = vrsqrt.pop %v71
  %v74 = vrsqrt.pop %v72
  %v75 = vmul.f32 %v59, %v73
  %v76 = vmul.f32 %v60, %v74
  %v77 = vld [vmem:[%s2] sm:$0x1]
  %v79 = vlaneseq
  %v80 = vshrl.u32 %v79, 7
  %v81 = vsub.s32 0, %v80
  %v82 = vrot.slane %v77, %v81
  %v84 = vmul.f32 %v75, %v82
  %v85 = vmul.f32 %v76, %v82
  %v86 = vld [vmem:[%s3] sm:$0x1]
  %v88 = vlaneseq
  %v89 = vshrl.u32 %v88, 7
  %v90 = vsub.s32 0, %v89
  %v91 = vrot.slane %v86, %v90
  %v93 = vadd.f32 %v84, %v91
  %v94 = vadd.f32 %v85, %v91
  %v95 = vld [vmem:[%s4] sm:$0xff]
  %v96 = vld [vmem:[%s4 + $0x8] sm:$0xff]
  %v97 = vld [vmem:[%s4 + $0x10] sm:$0xff]
  %v98 = vld [vmem:[%s4 + $0x18] sm:$0xff]
  %v99 = vld [vmem:[%s5] sm:$0x1]
  %v101 = vlaneseq
  %v102 = vshrl.u32 %v101, 7
  %v103 = vsub.s32 0, %v102
  %v104 = vrot.slane %v99, %v103
  %v107 = vsel %vm49, %v93, 0
  %v110 = vsel %vm49, %v94, 0
  %112 = vmatprep.subr.mxu0 0.0
  %113 = vmatpush1.msra.mxu0 0.0
  %114 = vmatprep.subr.mxu0 0.0
  %115 = vmatpush1.msra.mxu0 0.0
  %116 = vmatprep.subr.mxu0 0.0
  %117 = vmatpush1.msra.mxu0 0.0
  %118 = vmatprep.subr.mxu0 0.0
  %119 = vmatpush1.msra.mxu0 0.0
  %120 = vmatprep.subr.mxu0 0.0
  %121 = vmatpush1.msra.mxu0 0.0
  %122 = vmatprep.subr.mxu0 0.0
  %123 = vmatpush1.msra.mxu0 0.0
  %124 = vmatprep.subr.mxu0 0.0
  %125 = vmatpush1.msra.mxu0 0.0
  %126 = vmatprep.subr.mxu0 0.0
  %127 = vmatpush1.msra.mxu0 0.0
  %128 = vmatprep.subr.mxu0 0.0
  %129 = vmatpush1.msra.mxu0 0.0
  %130 = vmatprep.subr.mxu0 0.0
  %131 = vmatpush1.msra.mxu0 0.0
  %132 = vmatprep.subr.mxu0 0.0
  %133 = vmatpush1.msra.mxu0 0.0
  %134 = vmatprep.subr.mxu0 0.0
  %135 = vmatpush1.msra.mxu0 0.0
  %136 = vmatprep.subr.mxu0 0.0
  %137 = vmatpush1.msra.mxu0 %v98
  %138 = vmatprep.subr.mxu0 0.0
  %139 = vmatpush1.msra.mxu0 %v97
  %140 = vmatprep.subr.mxu0 0.0
  %141 = vmatpush1.msra.mxu0 %v96
  %142 = vmatprep.subr.mxu0 0.0
  %143 = vmatpush1.msra.mxu0 %v95
  %144 = vmatprep.subr.mxu0 0.0
  %145 = vmatpush2.msra.mxu0 0.0
  %146 = vmatprep.subr.mxu0 0.0
  %147 = vmatpush2.msra.mxu0 0.0
  %148 = vmatprep.subr.mxu0 0.0
  %149 = vmatpush2.msra.mxu0 0.0
  %150 = vmatprep.subr.mxu0 0.0
  %151 = vmatpush2.msra.mxu0 0.0
  %152 = vmatprep.subr.mxu0 0.0
  %153 = vmatpush2.msra.mxu0 0.0
  %154 = vmatprep.subr.mxu0 0.0
  %155 = vmatpush2.msra.mxu0 0.0
  %156 = vmatprep.subr.mxu0 0.0
  %157 = vmatpush2.msra.mxu0 0.0
  %158 = vmatprep.subr.mxu0 0.0
  %159 = vmatpush2.msra.mxu0 0.0
  %160 = vmatprep.subr.mxu0 0.0
  %161 = vmatpush2.msra.mxu0 0.0
  %162 = vmatprep.subr.mxu0 0.0
  %163 = vmatpush2.msra.mxu0 0.0
  %164 = vmatprep.subr.mxu0 0.0
  %165 = vmatpush2.msra.mxu0 0.0
  %166 = vmatprep.subr.mxu0 0.0
  %167 = vmatpush2.msra.mxu0 0.0
  %168 = vmatprep.subr.mxu0 0.0
  %169 = vmatpush2.msra.mxu0 0.0
  %170 = vmatprep.subr.mxu0 0.0
  %171 = vmatpush2.msra.mxu0 0.0
  %172 = vmatprep.subr.mxu0 0.0
  %173 = vmatpush2.msra.mxu0 0.0
  %174 = vmatprep.subr.mxu0 0.0
  %175 = vmatpush2.msra.mxu0 0.0
  %176 = vmatprep.mubr.f32.mxu0 0.0
  %177 = vmatmul.mubr.f32.gmra.mxu0 %v107
  %v178 = vpop.f32.mrf.mxu0
  %v179 = vadd.f32 %v104, %v178
  %v180 = vpop.f32.mrf.mxu0
  %181 = vmatprep.mubr.f32.mxu0 0.0
  %182 = vmatmul.mubr.f32.gmra.mxu0 %v110
  %v183 = vpop.f32.mrf.mxu0
  %v184 = vadd.f32 %v104, %v183
  %v185 = vpop.f32.mrf.mxu0
  %186 = vdwg.mxu0
  %v187 = vld [vmem:[%s1] sm:$0x3]
  %189 = vrot.lane.b32.xlu0 %v179, 96
  %v190 = vpop.permute.xlu0 %189
  %vm191 = vcmask 64512
  %v192 = vsel %vm191, %v179, 0
  %v194 = vsel %vm191, %v190, 0
  %196 = vmatprep.subr.mxu0 0.0
  %197 = vmatpush1.xpose.msra.mxu0 0.0
  %198 = vmatprep.subr.mxu0 0.0
  %199 = vmatpush1.xpose.msra.mxu0 0.0
  %200 = vmatprep.subr.mxu0 0.0
  %201 = vmatpush1.xpose.msra.mxu0 0.0
  %202 = vmatprep.subr.mxu0 0.0
  %203 = vmatpush1.xpose.msra.mxu0 0.0
  %204 = vmatprep.subr.mxu0 0.0
  %205 = vmatpush1.xpose.msra.mxu0 0.0
  %206 = vmatprep.subr.mxu0 0.0
  %207 = vmatpush1.xpose.msra.mxu0 0.0
  %208 = vmatprep.subr.mxu0 0.0
  %209 = vmatpush1.xpose.msra.mxu0 0.0
  %210 = vmatprep.subr.mxu0 0.0
  %211 = vmatpush1.xpose.msra.mxu0 0.0
  %212 = vmatprep.subr.mxu0 0.0
  %213 = vmatpush1.xpose.msra.mxu0 0.0
  %214 = vmatprep.subr.mxu0 0.0
  %215 = vmatpush1.xpose.msra.mxu0 0.0
  %216 = vmatprep.subr.mxu0 0.0
  %217 = vmatpush1.xpose.msra.mxu0 0.0
  %218 = vmatprep.subr.mxu0 0.0
  %219 = vmatpush1.xpose.msra.mxu0 0.0
  %220 = vmatprep.subr.mxu0 0.0
  %221 = vmatpush1.xpose.msra.mxu0 0.0
  %222 = vmatprep.subr.mxu0 0.0
  %223 = vmatpush1.xpose.msra.mxu0 0.0
  %224 = vmatprep.subr.mxu0 0.0
  %225 = vmatpush1.xpose.msra.mxu0 0.0
  %226 = vmatprep.subr.mxu0 0.0
  %227 = vmatpush1.xpose.msra.mxu0 %v194
  %228 = vmatprep.subr.mxu0 0.0
  %229 = vmatpush2.xpose.msra.mxu0 0.0
  %230 = vmatprep.subr.mxu0 0.0
  %231 = vmatpush2.xpose.msra.mxu0 0.0
  %232 = vmatprep.subr.mxu0 0.0
  %233 = vmatpush2.xpose.msra.mxu0 0.0
  %234 = vmatprep.subr.mxu0 0.0
  %235 = vmatpush2.xpose.msra.mxu0 0.0
  %236 = vmatprep.subr.mxu0 0.0
  %237 = vmatpush2.xpose.msra.mxu0 0.0
  %238 = vmatprep.subr.mxu0 0.0
  %239 = vmatpush2.xpose.msra.mxu0 0.0
  %240 = vmatprep.subr.mxu0 0.0
  %241 = vmatpush2.xpose.msra.mxu0 0.0
  %242 = vmatprep.subr.mxu0 0.0
  %243 = vmatpush2.xpose.msra.mxu0 0.0
  %244 = vmatprep.subr.mxu0 0.0
  %245 = vmatpush2.xpose.msra.mxu0 0.0
  %246 = vmatprep.subr.mxu0 0.0
  %247 = vmatpush2.xpose.msra.mxu0 0.0
  %248 = vmatprep.subr.mxu0 0.0
  %249 = vmatpush2.xpose.msra.mxu0 0.0
  %250 = vmatprep.subr.mxu0 0.0
  %251 = vmatpush2.xpose.msra.mxu0 0.0
  %252 = vmatprep.subr.mxu0 0.0
  %253 = vmatpush2.xpose.msra.mxu0 0.0
  %254 = vmatprep.subr.mxu0 0.0
  %255 = vmatpush2.xpose.msra.mxu0 0.0
  %256 = vmatprep.subr.mxu0 0.0
  %257 = vmatpush2.xpose.msra.mxu0 0.0
  %258 = vmatprep.subr.mxu0 0.0
  %259 = vmatpush2.xpose.msra.mxu0 0.0
  %260 = vmatprep.mubr.f32.mxu0 0.0
  %261 = vmatmul.mubr.f32.gmra.mxu0 %v192
  %v262 = vpop.f32.mrf.mxu0
  %v263 = vadd.f32 0.0, %v262
  %v264 = vpop.f32.mrf.mxu0
  %265 = vdwg.mxu0
  %v266 = vmul.f32 %v263, 0.35355338
  %v267 = vlaneseq
  %v268 = vshrl.u32 %v267, 7
  %v269 = vsub.s32 0, %v268
  %v270 = vrot.slane %v187, %v269
  %v271 = vadd.f32 %v266, %v270
  %v272 = vsel %vm191, %v271, -inf
  %273 = vmax.xlane.f32.xlu0 %v272
  %v274 = vpop.xlane.xlu0 %273
  %v275 = vsub.f32 %v271, %v274
  %v276 = vmul.f32 %v275, 1.442695
  %v277 = vpow.pop %v276
  %v278 = vsel %vm191, %v277, 0.0
  %279 = vadd.xlane.f32.xlu0 %v278
  %v280 = vpop.xlane.xlu0 %279
  %v281 = vrcp.pop %v280
  %v282 = vmul.f32 %v277, %v281
  %v284 = vsel %vm191, %v282, 0
  %286 = vmatprep.subr.mxu0 0.0
  %287 = vmatpush1.msra.mxu0 0.0
  %288 = vmatprep.subr.mxu0 0.0
  %289 = vmatpush1.msra.mxu0 0.0
  %290 = vmatprep.subr.mxu0 0.0
  %291 = vmatpush1.msra.mxu0 0.0
  %292 = vmatprep.subr.mxu0 0.0
  %293 = vmatpush1.msra.mxu0 0.0
  %294 = vmatprep.subr.mxu0 0.0
  %295 = vmatpush1.msra.mxu0 0.0
  %296 = vmatprep.subr.mxu0 0.0
  %297 = vmatpush1.msra.mxu0 0.0
  %298 = vmatprep.subr.mxu0 0.0
  %299 = vmatpush1.msra.mxu0 0.0
  %300 = vmatprep.subr.mxu0 0.0
  %301 = vmatpush1.msra.mxu0 0.0
  %302 = vmatprep.subr.mxu0 0.0
  %303 = vmatpush1.msra.mxu0 0.0
  %304 = vmatprep.subr.mxu0 0.0
  %305 = vmatpush1.msra.mxu0 0.0
  %306 = vmatprep.subr.mxu0 0.0
  %307 = vmatpush1.msra.mxu0 0.0
  %308 = vmatprep.subr.mxu0 0.0
  %309 = vmatpush1.msra.mxu0 0.0
  %310 = vmatprep.subr.mxu0 0.0
  %311 = vmatpush1.msra.mxu0 0.0
  %312 = vmatprep.subr.mxu0 0.0
  %313 = vmatpush1.msra.mxu0 0.0
  %314 = vmatprep.subr.mxu0 0.0
  %315 = vmatpush1.msra.mxu0 0.0
  %316 = vmatprep.subr.mxu0 0.0
  %317 = vmatpush1.msra.mxu0 %v179
  %318 = vmatprep.subr.mxu0 0.0
  %319 = vmatpush2.msra.mxu0 0.0
  %320 = vmatprep.subr.mxu0 0.0
  %321 = vmatpush2.msra.mxu0 0.0
  %322 = vmatprep.subr.mxu0 0.0
  %323 = vmatpush2.msra.mxu0 0.0
  %324 = vmatprep.subr.mxu0 0.0
  %325 = vmatpush2.msra.mxu0 0.0
  %326 = vmatprep.subr.mxu0 0.0
  %327 = vmatpush2.msra.mxu0 0.0
  %328 = vmatprep.subr.mxu0 0.0
  %329 = vmatpush2.msra.mxu0 0.0
  %330 = vmatprep.subr.mxu0 0.0
  %331 = vmatpush2.msra.mxu0 0.0
  %332 = vmatprep.subr.mxu0 0.0
  %333 = vmatpush2.msra.mxu0 0.0
  %334 = vmatprep.subr.mxu0 0.0
  %335 = vmatpush2.msra.mxu0 0.0
  %336 = vmatprep.subr.mxu0 0.0
  %337 = vmatpush2.msra.mxu0 0.0
  %338 = vmatprep.subr.mxu0 0.0
  %339 = vmatpush2.msra.mxu0 0.0
  %340 = vmatprep.subr.mxu0 0.0
  %341 = vmatpush2.msra.mxu0 0.0
  %342 = vmatprep.subr.mxu0 0.0
  %343 = vmatpush2.msra.mxu0 0.0
  %344 = vmatprep.subr.mxu0 0.0
  %345 = vmatpush2.msra.mxu0 0.0
  %346 = vmatprep.subr.mxu0 0.0
  %347 = vmatpush2.msra.mxu0 0.0
  %348 = vmatprep.subr.mxu0 0.0
  %349 = vmatpush2.msra.mxu0 0.0
  %350 = vmatprep.mubr.f32.mxu0 0.0
  %351 = vmatmul.mubr.f32.gmra.mxu0 %v284
  %v352 = vpop.f32.mrf.mxu0
  %v353 = vadd.f32 0.0, %v352
  %v354 = vpop.f32.mrf.mxu0
  %355 = vdwg.mxu0
  %356 = vrot.lane.b32.xlu0 %v179, 120
  %v357 = vpop.permute.xlu0 %356
  %358 = vrot.lane.b32.xlu0 %v179, 88
  %v359 = vpop.permute.xlu0 %358
  %v360 = vsel %vm191, %v357, 0
  %v362 = vsel %vm191, %v359, 0
  %364 = vmatprep.subr.mxu0 0.0
  %365 = vmatpush1.xpose.msra.mxu0 0.0
  %366 = vmatprep.subr.mxu0 0.0
  %367 = vmatpush1.xpose.msra.mxu0 0.0
  %368 = vmatprep.subr.mxu0 0.0
  %369 = vmatpush1.xpose.msra.mxu0 0.0
  %370 = vmatprep.subr.mxu0 0.0
  %371 = vmatpush1.xpose.msra.mxu0 0.0
  %372 = vmatprep.subr.mxu0 0.0
  %373 = vmatpush1.xpose.msra.mxu0 0.0
  %374 = vmatprep.subr.mxu0 0.0
  %375 = vmatpush1.xpose.msra.mxu0 0.0
  %376 = vmatprep.subr.mxu0 0.0
  %377 = vmatpush1.xpose.msra.mxu0 0.0
  %378 = vmatprep.subr.mxu0 0.0
  %379 = vmatpush1.xpose.msra.mxu0 0.0
  %380 = vmatprep.subr.mxu0 0.0
  %381 = vmatpush1.xpose.msra.mxu0 0.0
  %382 = vmatprep.subr.mxu0 0.0
  %383 = vmatpush1.xpose.msra.mxu0 0.0
  %384 = vmatprep.subr.mxu0 0.0
  %385 = vmatpush1.xpose.msra.mxu0 0.0
  %386 = vmatprep.subr.mxu0 0.0
  %387 = vmatpush1.xpose.msra.mxu0 0.0
  %388 = vmatprep.subr.mxu0 0.0
  %389 = vmatpush1.xpose.msra.mxu0 0.0
  %390 = vmatprep.subr.mxu0 0.0
  %391 = vmatpush1.xpose.msra.mxu0 0.0
  %392 = vmatprep.subr.mxu0 0.0
  %393 = vmatpush1.xpose.msra.mxu0 0.0
  %394 = vmatprep.subr.mxu0 0.0
  %395 = vmatpush1.xpose.msra.mxu0 %v362
  %396 = vmatprep.subr.mxu0 0.0
  %397 = vmatpush2.xpose.msra.mxu0 0.0
  %398 = vmatprep.subr.mxu0 0.0
  %399 = vmatpush2.xpose.msra.mxu0 0.0
  %400 = vmatprep.subr.mxu0 0.0
  %401 = vmatpush2.xpose.msra.mxu0 0.0
  %402 = vmatprep.subr.mxu0 0.0
  %403 = vmatpush2.xpose.msra.mxu0 0.0
  %404 = vmatprep.subr.mxu0 0.0
  %405 = vmatpush2.xpose.msra.mxu0 0.0
  %406 = vmatprep.subr.mxu0 0.0
  %407 = vmatpush2.xpose.msra.mxu0 0.0
  %408 = vmatprep.subr.mxu0 0.0
  %409 = vmatpush2.xpose.msra.mxu0 0.0
  %410 = vmatprep.subr.mxu0 0.0
  %411 = vmatpush2.xpose.msra.mxu0 0.0
  %412 = vmatprep.subr.mxu0 0.0
  %413 = vmatpush2.xpose.msra.mxu0 0.0
  %414 = vmatprep.subr.mxu0 0.0
  %415 = vmatpush2.xpose.msra.mxu0 0.0
  %416 = vmatprep.subr.mxu0 0.0
  %417 = vmatpush2.xpose.msra.mxu0 0.0
  %418 = vmatprep.subr.mxu0 0.0
  %419 = vmatpush2.xpose.msra.mxu0 0.0
  %420 = vmatprep.subr.mxu0 0.0
  %421 = vmatpush2.xpose.msra.mxu0 0.0
  %422 = vmatprep.subr.mxu0 0.0
  %423 = vmatpush2.xpose.msra.mxu0 0.0
  %424 = vmatprep.subr.mxu0 0.0
  %425 = vmatpush2.xpose.msra.mxu0 0.0
  %426 = vmatprep.subr.mxu0 0.0
  %427 = vmatpush2.xpose.msra.mxu0 0.0
  %428 = vmatprep.mubr.f32.mxu0 0.0
  %429 = vmatmul.mubr.f32.gmra.mxu0 %v360
  %v430 = vpop.f32.mrf.mxu0
  %v431 = vadd.f32 0.0, %v430
  %v432 = vpop.f32.mrf.mxu0
  %433 = vdwg.mxu0
  %v434 = vmul.f32 %v431, 0.35355338
  %v435 = vadd.f32 %v434, %v270
  %v436 = vsel %vm191, %v435, -inf
  %437 = vmax.xlane.f32.xlu0 %v436
  %v438 = vpop.xlane.xlu0 %437
  %v439 = vsub.f32 %v435, %v438
  %v440 = vmul.f32 %v439, 1.442695
  %v441 = vpow.pop %v440
  %v442 = vsel %vm191, %v441, 0.0
  %443 = vadd.xlane.f32.xlu0 %v442
  %v444 = vpop.xlane.xlu0 %443
  %v445 = vrcp.pop %v444
  %v446 = vmul.f32 %v441, %v445
  %v449 = vsel %vm191, %v446, 0
  %451 = vmatprep.subr.mxu0 0.0
  %452 = vmatpush1.msra.mxu0 0.0
  %453 = vmatprep.subr.mxu0 0.0
  %454 = vmatpush1.msra.mxu0 0.0
  %455 = vmatprep.subr.mxu0 0.0
  %456 = vmatpush1.msra.mxu0 0.0
  %457 = vmatprep.subr.mxu0 0.0
  %458 = vmatpush1.msra.mxu0 0.0
  %459 = vmatprep.subr.mxu0 0.0
  %460 = vmatpush1.msra.mxu0 0.0
  %461 = vmatprep.subr.mxu0 0.0
  %462 = vmatpush1.msra.mxu0 0.0
  %463 = vmatprep.subr.mxu0 0.0
  %464 = vmatpush1.msra.mxu0 0.0
  %465 = vmatprep.subr.mxu0 0.0
  %466 = vmatpush1.msra.mxu0 0.0
  %467 = vmatprep.subr.mxu0 0.0
  %468 = vmatpush1.msra.mxu0 0.0
  %469 = vmatprep.subr.mxu0 0.0
  %470 = vmatpush1.msra.mxu0 0.0
  %471 = vmatprep.subr.mxu0 0.0
  %472 = vmatpush1.msra.mxu0 0.0
  %473 = vmatprep.subr.mxu0 0.0
  %474 = vmatpush1.msra.mxu0 0.0
  %475 = vmatprep.subr.mxu0 0.0
  %476 = vmatpush1.msra.mxu0 0.0
  %477 = vmatprep.subr.mxu0 0.0
  %478 = vmatpush1.msra.mxu0 0.0
  %479 = vmatprep.subr.mxu0 0.0
  %480 = vmatpush1.msra.mxu0 0.0
  %481 = vmatprep.subr.mxu0 0.0
  %482 = vmatpush1.msra.mxu0 %v357
  %483 = vmatprep.subr.mxu0 0.0
  %484 = vmatpush2.msra.mxu0 0.0
  %485 = vmatprep.subr.mxu0 0.0
  %486 = vmatpush2.msra.mxu0 0.0
  %487 = vmatprep.subr.mxu0 0.0
  %488 = vmatpush2.msra.mxu0 0.0
  %489 = vmatprep.subr.mxu0 0.0
  %490 = vmatpush2.msra.mxu0 0.0
  %491 = vmatprep.subr.mxu0 0.0
  %492 = vmatpush2.msra.mxu0 0.0
  %493 = vmatprep.subr.mxu0 0.0
  %494 = vmatpush2.msra.mxu0 0.0
  %495 = vmatprep.subr.mxu0 0.0
  %496 = vmatpush2.msra.mxu0 0.0
  %497 = vmatprep.subr.mxu0 0.0
  %498 = vmatpush2.msra.mxu0 0.0
  %499 = vmatprep.subr.mxu0 0.0
  %500 = vmatpush2.msra.mxu0 0.0
  %501 = vmatprep.subr.mxu0 0.0
  %502 = vmatpush2.msra.mxu0 0.0
  %503 = vmatprep.subr.mxu0 0.0
  %504 = vmatpush2.msra.mxu0 0.0
  %505 = vmatprep.subr.mxu0 0.0
  %506 = vmatpush2.msra.mxu0 0.0
  %507 = vmatprep.subr.mxu0 0.0
  %508 = vmatpush2.msra.mxu0 0.0
  %509 = vmatprep.subr.mxu0 0.0
  %510 = vmatpush2.msra.mxu0 0.0
  %511 = vmatprep.subr.mxu0 0.0
  %512 = vmatpush2.msra.mxu0 0.0
  %513 = vmatprep.subr.mxu0 0.0
  %514 = vmatpush2.msra.mxu0 0.0
  %515 = vmatprep.mubr.f32.mxu0 0.0
  %516 = vmatmul.mubr.f32.gmra.mxu0 %v449
  %v517 = vpop.f32.mrf.mxu0
  %v518 = vadd.f32 0.0, %v517
  %v519 = vpop.f32.mrf.mxu0
  %520 = vdwg.mxu0
  %521 = vrot.lane.b32.xlu0 %v179, 112
  %v522 = vpop.permute.xlu0 %521
  %523 = vrot.lane.b32.xlu0 %v179, 80
  %v524 = vpop.permute.xlu0 %523
  %v525 = vsel %vm191, %v522, 0
  %v527 = vsel %vm191, %v524, 0
  %529 = vmatprep.subr.mxu0 0.0
  %530 = vmatpush1.xpose.msra.mxu0 0.0
  %531 = vmatprep.subr.mxu0 0.0
  %532 = vmatpush1.xpose.msra.mxu0 0.0
  %533 = vmatprep.subr.mxu0 0.0
  %534 = vmatpush1.xpose.msra.mxu0 0.0
  %535 = vmatprep.subr.mxu0 0.0
  %536 = vmatpush1.xpose.msra.mxu0 0.0
  %537 = vmatprep.subr.mxu0 0.0
  %538 = vmatpush1.xpose.msra.mxu0 0.0
  %539 = vmatprep.subr.mxu0 0.0
  %540 = vmatpush1.xpose.msra.mxu0 0.0
  %541 = vmatprep.subr.mxu0 0.0
  %542 = vmatpush1.xpose.msra.mxu0 0.0
  %543 = vmatprep.subr.mxu0 0.0
  %544 = vmatpush1.xpose.msra.mxu0 0.0
  %545 = vmatprep.subr.mxu0 0.0
  %546 = vmatpush1.xpose.msra.mxu0 0.0
  %547 = vmatprep.subr.mxu0 0.0
  %548 = vmatpush1.xpose.msra.mxu0 0.0
  %549 = vmatprep.subr.mxu0 0.0
  %550 = vmatpush1.xpose.msra.mxu0 0.0
  %551 = vmatprep.subr.mxu0 0.0
  %552 = vmatpush1.xpose.msra.mxu0 0.0
  %553 = vmatprep.subr.mxu0 0.0
  %554 = vmatpush1.xpose.msra.mxu0 0.0
  %555 = vmatprep.subr.mxu0 0.0
  %556 = vmatpush1.xpose.msra.mxu0 0.0
  %557 = vmatprep.subr.mxu0 0.0
  %558 = vmatpush1.xpose.msra.mxu0 0.0
  %559 = vmatprep.subr.mxu0 0.0
  %560 = vmatpush1.xpose.msra.mxu0 %v527
  %561 = vmatprep.subr.mxu0 0.0
  %562 = vmatpush2.xpose.msra.mxu0 0.0
  %563 = vmatprep.subr.mxu0 0.0
  %564 = vmatpush2.xpose.msra.mxu0 0.0
  %565 = vmatprep.subr.mxu0 0.0
  %566 = vmatpush2.xpose.msra.mxu0 0.0
  %567 = vmatprep.subr.mxu0 0.0
  %568 = vmatpush2.xpose.msra.mxu0 0.0
  %569 = vmatprep.subr.mxu0 0.0
  %570 = vmatpush2.xpose.msra.mxu0 0.0
  %571 = vmatprep.subr.mxu0 0.0
  %572 = vmatpush2.xpose.msra.mxu0 0.0
  %573 = vmatprep.subr.mxu0 0.0
  %574 = vmatpush2.xpose.msra.mxu0 0.0
  %575 = vmatprep.subr.mxu0 0.0
  %576 = vmatpush2.xpose.msra.mxu0 0.0
  %577 = vmatprep.subr.mxu0 0.0
  %578 = vmatpush2.xpose.msra.mxu0 0.0
  %579 = vmatprep.subr.mxu0 0.0
  %580 = vmatpush2.xpose.msra.mxu0 0.0
  %581 = vmatprep.subr.mxu0 0.0
  %582 = vmatpush2.xpose.msra.mxu0 0.0
  %583 = vmatprep.subr.mxu0 0.0
  %584 = vmatpush2.xpose.msra.mxu0 0.0
  %585 = vmatprep.subr.mxu0 0.0
  %586 = vmatpush2.xpose.msra.mxu0 0.0
  %587 = vmatprep.subr.mxu0 0.0
  %588 = vmatpush2.xpose.msra.mxu0 0.0
  %589 = vmatprep.subr.mxu0 0.0
  %590 = vmatpush2.xpose.msra.mxu0 0.0
  %591 = vmatprep.subr.mxu0 0.0
  %592 = vmatpush2.xpose.msra.mxu0 0.0
  %593 = vmatprep.mubr.f32.mxu0 0.0
  %594 = vmatmul.mubr.f32.gmra.mxu0 %v525
  %v595 = vpop.f32.mrf.mxu0
  %v596 = vadd.f32 0.0, %v595
  %v597 = vpop.f32.mrf.mxu0
  %598 = vdwg.mxu0
  %v599 = vmul.f32 %v596, 0.35355338
  %v600 = vadd.f32 %v599, %v270
  %v601 = vsel %vm191, %v600, -inf
  %602 = vmax.xlane.f32.xlu0 %v601
  %v603 = vpop.xlane.xlu0 %602
  %v604 = vsub.f32 %v600, %v603
  %v605 = vmul.f32 %v604, 1.442695
  %v606 = vpow.pop %v605
  %v607 = vsel %vm191, %v606, 0.0
  %608 = vadd.xlane.f32.xlu0 %v607
  %v609 = vpop.xlane.xlu0 %608
  %v610 = vrcp.pop %v609
  %v611 = vmul.f32 %v606, %v610
  %v614 = vsel %vm191, %v611, 0
  %616 = vmatprep.subr.mxu0 0.0
  %617 = vmatpush1.msra.mxu0 0.0
  %618 = vmatprep.subr.mxu0 0.0
  %619 = vmatpush1.msra.mxu0 0.0
  %620 = vmatprep.subr.mxu0 0.0
  %621 = vmatpush1.msra.mxu0 0.0
  %622 = vmatprep.subr.mxu0 0.0
  %623 = vmatpush1.msra.mxu0 0.0
  %624 = vmatprep.subr.mxu0 0.0
  %625 = vmatpush1.msra.mxu0 0.0
  %626 = vmatprep.subr.mxu0 0.0
  %627 = vmatpush1.msra.mxu0 0.0
  %628 = vmatprep.subr.mxu0 0.0
  %629 = vmatpush1.msra.mxu0 0.0
  %630 = vmatprep.subr.mxu0 0.0
  %631 = vmatpush1.msra.mxu0 0.0
  %632 = vmatprep.subr.mxu0 0.0
  %633 = vmatpush1.msra.mxu0 0.0
  %634 = vmatprep.subr.mxu0 0.0
  %635 = vmatpush1.msra.mxu0 0.0
  %636 = vmatprep.subr.mxu0 0.0
  %637 = vmatpush1.msra.mxu0 0.0
  %638 = vmatprep.subr.mxu0 0.0
  %639 = vmatpush1.msra.mxu0 0.0
  %640 = vmatprep.subr.mxu0 0.0
  %641 = vmatpush1.msra.mxu0 0.0
  %642 = vmatprep.subr.mxu0 0.0
  %643 = vmatpush1.msra.mxu0 0.0
  %644 = vmatprep.subr.mxu0 0.0
  %645 = vmatpush1.msra.mxu0 0.0
  %646 = vmatprep.subr.mxu0 0.0
  %647 = vmatpush1.msra.mxu0 %v522
  %648 = vmatprep.subr.mxu0 0.0
  %649 = vmatpush2.msra.mxu0 0.0
  %650 = vmatprep.subr.mxu0 0.0
  %651 = vmatpush2.msra.mxu0 0.0
  %652 = vmatprep.subr.mxu0 0.0
  %653 = vmatpush2.msra.mxu0 0.0
  %654 = vmatprep.subr.mxu0 0.0
  %655 = vmatpush2.msra.mxu0 0.0
  %656 = vmatprep.subr.mxu0 0.0
  %657 = vmatpush2.msra.mxu0 0.0
  %658 = vmatprep.subr.mxu0 0.0
  %659 = vmatpush2.msra.mxu0 0.0
  %660 = vmatprep.subr.mxu0 0.0
  %661 = vmatpush2.msra.mxu0 0.0
  %662 = vmatprep.subr.mxu0 0.0
  %663 = vmatpush2.msra.mxu0 0.0
  %664 = vmatprep.subr.mxu0 0.0
  %665 = vmatpush2.msra.mxu0 0.0
  %666 = vmatprep.subr.mxu0 0.0
  %667 = vmatpush2.msra.mxu0 0.0
  %668 = vmatprep.subr.mxu0 0.0
  %669 = vmatpush2.msra.mxu0 0.0
  %670 = vmatprep.subr.mxu0 0.0
  %671 = vmatpush2.msra.mxu0 0.0
  %672 = vmatprep.subr.mxu0 0.0
  %673 = vmatpush2.msra.mxu0 0.0
  %674 = vmatprep.subr.mxu0 0.0
  %675 = vmatpush2.msra.mxu0 0.0
  %676 = vmatprep.subr.mxu0 0.0
  %677 = vmatpush2.msra.mxu0 0.0
  %678 = vmatprep.subr.mxu0 0.0
  %679 = vmatpush2.msra.mxu0 0.0
  %680 = vmatprep.mubr.f32.mxu0 0.0
  %681 = vmatmul.mubr.f32.gmra.mxu0 %v614
  %v682 = vpop.f32.mrf.mxu0
  %v683 = vadd.f32 0.0, %v682
  %v684 = vpop.f32.mrf.mxu0
  %685 = vdwg.mxu0
  %686 = vrot.lane.b32.xlu0 %v179, 104
  %v687 = vpop.permute.xlu0 %686
  %688 = vrot.lane.b32.xlu0 %v179, 72
  %v689 = vpop.permute.xlu0 %688
  %v690 = vsel %vm191, %v687, 0
  %v692 = vsel %vm191, %v689, 0
  %694 = vmatprep.subr.mxu0 0.0
  %695 = vmatpush1.xpose.msra.mxu0 0.0
  %696 = vmatprep.subr.mxu0 0.0
  %697 = vmatpush1.xpose.msra.mxu0 0.0
  %698 = vmatprep.subr.mxu0 0.0
  %699 = vmatpush1.xpose.msra.mxu0 0.0
  %700 = vmatprep.subr.mxu0 0.0
  %701 = vmatpush1.xpose.msra.mxu0 0.0
  %702 = vmatprep.subr.mxu0 0.0
  %703 = vmatpush1.xpose.msra.mxu0 0.0
  %704 = vmatprep.subr.mxu0 0.0
  %705 = vmatpush1.xpose.msra.mxu0 0.0
  %706 = vmatprep.subr.mxu0 0.0
  %707 = vmatpush1.xpose.msra.mxu0 0.0
  %708 = vmatprep.subr.mxu0 0.0
  %709 = vmatpush1.xpose.msra.mxu0 0.0
  %710 = vmatprep.subr.mxu0 0.0
  %711 = vmatpush1.xpose.msra.mxu0 0.0
  %712 = vmatprep.subr.mxu0 0.0
  %713 = vmatpush1.xpose.msra.mxu0 0.0
  %714 = vmatprep.subr.mxu0 0.0
  %715 = vmatpush1.xpose.msra.mxu0 0.0
  %716 = vmatprep.subr.mxu0 0.0
  %717 = vmatpush1.xpose.msra.mxu0 0.0
  %718 = vmatprep.subr.mxu0 0.0
  %719 = vmatpush1.xpose.msra.mxu0 0.0
  %720 = vmatprep.subr.mxu0 0.0
  %721 = vmatpush1.xpose.msra.mxu0 0.0
  %722 = vmatprep.subr.mxu0 0.0
  %723 = vmatpush1.xpose.msra.mxu0 0.0
  %724 = vmatprep.subr.mxu0 0.0
  %725 = vmatpush1.xpose.msra.mxu0 %v692
  %726 = vmatprep.subr.mxu0 0.0
  %727 = vmatpush2.xpose.msra.mxu0 0.0
  %728 = vmatprep.subr.mxu0 0.0
  %729 = vmatpush2.xpose.msra.mxu0 0.0
  %730 = vmatprep.subr.mxu0 0.0
  %731 = vmatpush2.xpose.msra.mxu0 0.0
  %732 = vmatprep.subr.mxu0 0.0
  %733 = vmatpush2.xpose.msra.mxu0 0.0
  %734 = vmatprep.subr.mxu0 0.0
  %735 = vmatpush2.xpose.msra.mxu0 0.0
  %736 = vmatprep.subr.mxu0 0.0
  %737 = vmatpush2.xpose.msra.mxu0 0.0
  %738 = vmatprep.subr.mxu0 0.0
  %739 = vmatpush2.xpose.msra.mxu0 0.0
  %740 = vmatprep.subr.mxu0 0.0
  %741 = vmatpush2.xpose.msra.mxu0 0.0
  %742 = vmatprep.subr.mxu0 0.0
  %743 = vmatpush2.xpose.msra.mxu0 0.0
  %744 = vmatprep.subr.mxu0 0.0
  %745 = vmatpush2.xpose.msra.mxu0 0.0
  %746 = vmatprep.subr.mxu0 0.0
  %747 = vmatpush2.xpose.msra.mxu0 0.0
  %748 = vmatprep.subr.mxu0 0.0
  %749 = vmatpush2.xpose.msra.mxu0 0.0
  %750 = vmatprep.subr.mxu0 0.0
  %751 = vmatpush2.xpose.msra.mxu0 0.0
  %752 = vmatprep.subr.mxu0 0.0
  %753 = vmatpush2.xpose.msra.mxu0 0.0
  %754 = vmatprep.subr.mxu0 0.0
  %755 = vmatpush2.xpose.msra.mxu0 0.0
  %756 = vmatprep.subr.mxu0 0.0
  %757 = vmatpush2.xpose.msra.mxu0 0.0
  %758 = vmatprep.mubr.f32.mxu0 0.0
  %759 = vmatmul.mubr.f32.gmra.mxu0 %v690
  %v760 = vpop.f32.mrf.mxu0
  %v761 = vadd.f32 0.0, %v760
  %v762 = vpop.f32.mrf.mxu0
  %763 = vdwg.mxu0
  %v764 = vmul.f32 %v761, 0.35355338
  %v765 = vadd.f32 %v764, %v270
  %v766 = vsel %vm191, %v765, -inf
  %767 = vmax.xlane.f32.xlu0 %v766
  %v768 = vpop.xlane.xlu0 %767
  %v769 = vsub.f32 %v765, %v768
  %v770 = vmul.f32 %v769, 1.442695
  %v771 = vpow.pop %v770
  %v772 = vsel %vm191, %v771, 0.0
  %773 = vadd.xlane.f32.xlu0 %v772
  %v774 = vpop.xlane.xlu0 %773
  %v775 = vrcp.pop %v774
  %v776 = vmul.f32 %v771, %v775
  %v779 = vsel %vm191, %v776, 0
  %781 = vmatprep.subr.mxu0 0.0
  %782 = vmatpush1.msra.mxu0 0.0
  %783 = vmatprep.subr.mxu0 0.0
  %784 = vmatpush1.msra.mxu0 0.0
  %785 = vmatprep.subr.mxu0 0.0
  %786 = vmatpush1.msra.mxu0 0.0
  %787 = vmatprep.subr.mxu0 0.0
  %788 = vmatpush1.msra.mxu0 0.0
  %789 = vmatprep.subr.mxu0 0.0
  %790 = vmatpush1.msra.mxu0 0.0
  %791 = vmatprep.subr.mxu0 0.0
  %792 = vmatpush1.msra.mxu0 0.0
  %793 = vmatprep.subr.mxu0 0.0
  %794 = vmatpush1.msra.mxu0 0.0
  %795 = vmatprep.subr.mxu0 0.0
  %796 = vmatpush1.msra.mxu0 0.0
  %797 = vmatprep.subr.mxu0 0.0
  %798 = vmatpush1.msra.mxu0 0.0
  %799 = vmatprep.subr.mxu0 0.0
  %800 = vmatpush1.msra.mxu0 0.0
  %801 = vmatprep.subr.mxu0 0.0
  %802 = vmatpush1.msra.mxu0 0.0
  %803 = vmatprep.subr.mxu0 0.0
  %804 = vmatpush1.msra.mxu0 0.0
  %805 = vmatprep.subr.mxu0 0.0
  %806 = vmatpush1.msra.mxu0 0.0
  %807 = vmatprep.subr.mxu0 0.0
  %808 = vmatpush1.msra.mxu0 0.0
  %809 = vmatprep.subr.mxu0 0.0
  %810 = vmatpush1.msra.mxu0 0.0
  %811 = vmatprep.subr.mxu0 0.0
  %812 = vmatpush1.msra.mxu0 %v687
  %813 = vmatprep.subr.mxu0 0.0
  %814 = vmatpush2.msra.mxu0 0.0
  %815 = vmatprep.subr.mxu0 0.0
  %816 = vmatpush2.msra.mxu0 0.0
  %817 = vmatprep.subr.mxu0 0.0
  %818 = vmatpush2.msra.mxu0 0.0
  %819 = vmatprep.subr.mxu0 0.0
  %820 = vmatpush2.msra.mxu0 0.0
  %821 = vmatprep.subr.mxu0 0.0
  %822 = vmatpush2.msra.mxu0 0.0
  %823 = vmatprep.subr.mxu0 0.0
  %824 = vmatpush2.msra.mxu0 0.0
  %825 = vmatprep.subr.mxu0 0.0
  %826 = vmatpush2.msra.mxu0 0.0
  %827 = vmatprep.subr.mxu0 0.0
  %828 = vmatpush2.msra.mxu0 0.0
  %829 = vmatprep.subr.mxu0 0.0
  %830 = vmatpush2.msra.mxu0 0.0
  %831 = vmatprep.subr.mxu0 0.0
  %832 = vmatpush2.msra.mxu0 0.0
  %833 = vmatprep.subr.mxu0 0.0
  %834 = vmatpush2.msra.mxu0 0.0
  %835 = vmatprep.subr.mxu0 0.0
  %836 = vmatpush2.msra.mxu0 0.0
  %837 = vmatprep.subr.mxu0 0.0
  %838 = vmatpush2.msra.mxu0 0.0
  %839 = vmatprep.subr.mxu0 0.0
  %840 = vmatpush2.msra.mxu0 0.0
  %841 = vmatprep.subr.mxu0 0.0
  %842 = vmatpush2.msra.mxu0 0.0
  %843 = vmatprep.subr.mxu0 0.0
  %844 = vmatpush2.msra.mxu0 0.0
  %845 = vmatprep.mubr.f32.mxu0 0.0
  %846 = vmatmul.mubr.f32.gmra.mxu0 %v779
  %v847 = vpop.f32.mrf.mxu0
  %v848 = vadd.f32 0.0, %v847
  %v849 = vpop.f32.mrf.mxu0
  %850 = vdwg.mxu0
  %852 = vrot.lane.b32.xlu0 %v518, 8
  %v853 = vpop.permute.xlu0 %852
  %856 = vrot.lane.b32.xlu0 %v683, 16
  %v857 = vpop.permute.xlu0 %856
  %860 = vrot.lane.b32.xlu0 %v848, 24
  %v861 = vpop.permute.xlu0 %860
  %v863 = vsel %vm191, %v353, %v853
  %vm864 = vcmask 130048
  %v865 = vsel %vm864, %v863, %v857
  %vm866 = vcmask 195584
  %v867 = vsel %vm866, %v865, %v861
  %869 = vrot.lane.b32.xlu0 %v184, 96
  %v870 = vpop.permute.xlu0 %869
  %v871 = vsel %vm191, %v184, 0
  %v873 = vsel %vm191, %v870, 0
  %875 = vmatprep.subr.mxu0 0.0
  %876 = vmatpush1.xpose.msra.mxu0 0.0
  %877 = vmatprep.subr.mxu0 0.0
  %878 = vmatpush1.xpose.msra.mxu0 0.0
  %879 = vmatprep.subr.mxu0 0.0
  %880 = vmatpush1.xpose.msra.mxu0 0.0
  %881 = vmatprep.subr.mxu0 0.0
  %882 = vmatpush1.xpose.msra.mxu0 0.0
  %883 = vmatprep.subr.mxu0 0.0
  %884 = vmatpush1.xpose.msra.mxu0 0.0
  %885 = vmatprep.subr.mxu0 0.0
  %886 = vmatpush1.xpose.msra.mxu0 0.0
  %887 = vmatprep.subr.mxu0 0.0
  %888 = vmatpush1.xpose.msra.mxu0 0.0
  %889 = vmatprep.subr.mxu0 0.0
  %890 = vmatpush1.xpose.msra.mxu0 0.0
  %891 = vmatprep.subr.mxu0 0.0
  %892 = vmatpush1.xpose.msra.mxu0 0.0
  %893 = vmatprep.subr.mxu0 0.0
  %894 = vmatpush1.xpose.msra.mxu0 0.0
  %895 = vmatprep.subr.mxu0 0.0
  %896 = vmatpush1.xpose.msra.mxu0 0.0
  %897 = vmatprep.subr.mxu0 0.0
  %898 = vmatpush1.xpose.msra.mxu0 0.0
  %899 = vmatprep.subr.mxu0 0.0
  %900 = vmatpush1.xpose.msra.mxu0 0.0
  %901 = vmatprep.subr.mxu0 0.0
  %902 = vmatpush1.xpose.msra.mxu0 0.0
  %903 = vmatprep.subr.mxu0 0.0
  %904 = vmatpush1.xpose.msra.mxu0 0.0
  %905 = vmatprep.subr.mxu0 0.0
  %906 = vmatpush1.xpose.msra.mxu0 %v873
  %907 = vmatprep.subr.mxu0 0.0
  %908 = vmatpush2.xpose.msra.mxu0 0.0
  %909 = vmatprep.subr.mxu0 0.0
  %910 = vmatpush2.xpose.msra.mxu0 0.0
  %911 = vmatprep.subr.mxu0 0.0
  %912 = vmatpush2.xpose.msra.mxu0 0.0
  %913 = vmatprep.subr.mxu0 0.0
  %914 = vmatpush2.xpose.msra.mxu0 0.0
  %915 = vmatprep.subr.mxu0 0.0
  %916 = vmatpush2.xpose.msra.mxu0 0.0
  %917 = vmatprep.subr.mxu0 0.0
  %918 = vmatpush2.xpose.msra.mxu0 0.0
  %919 = vmatprep.subr.mxu0 0.0
  %920 = vmatpush2.xpose.msra.mxu0 0.0
  %921 = vmatprep.subr.mxu0 0.0
  %922 = vmatpush2.xpose.msra.mxu0 0.0
  %923 = vmatprep.subr.mxu0 0.0
  %924 = vmatpush2.xpose.msra.mxu0 0.0
  %925 = vmatprep.subr.mxu0 0.0
  %926 = vmatpush2.xpose.msra.mxu0 0.0
  %927 = vmatprep.subr.mxu0 0.0
  %928 = vmatpush2.xpose.msra.mxu0 0.0
  %929 = vmatprep.subr.mxu0 0.0
  %930 = vmatpush2.xpose.msra.mxu0 0.0
  %931 = vmatprep.subr.mxu0 0.0
  %932 = vmatpush2.xpose.msra.mxu0 0.0
  %933 = vmatprep.subr.mxu0 0.0
  %934 = vmatpush2.xpose.msra.mxu0 0.0
  %935 = vmatprep.subr.mxu0 0.0
  %936 = vmatpush2.xpose.msra.mxu0 0.0
  %937 = vmatprep.subr.mxu0 0.0
  %938 = vmatpush2.xpose.msra.mxu0 0.0
  %939 = vmatprep.mubr.f32.mxu0 0.0
  %940 = vmatmul.mubr.f32.gmra.mxu0 %v871
  %v941 = vpop.f32.mrf.mxu0
  %v942 = vadd.f32 0.0, %v941
  %v943 = vpop.f32.mrf.mxu0
  %944 = vdwg.mxu0
  %v945 = vmul.f32 %v942, 0.35355338
  %v946 = vlaneseq
  %v947 = vshrl.u32 %v946, 7
  %v948 = vsub.s32 1, %v947
  %v949 = vrot.slane %v187, %v948
  %v950 = vadd.f32 %v945, %v949
  %v951 = vsel %vm191, %v950, -inf
  %952 = vmax.xlane.f32.xlu0 %v951
  %v953 = vpop.xlane.xlu0 %952
  %v954 = vsub.f32 %v950, %v953
  %v955 = vmul.f32 %v954, 1.442695
  %v956 = vpow.pop %v955
  %v957 = vsel %vm191, %v956, 0.0
  %958 = vadd.xlane.f32.xlu0 %v957
  %v959 = vpop.xlane.xlu0 %958
  %v960 = vrcp.pop %v959
  %v961 = vmul.f32 %v956, %v960
  %v963 = vsel %vm191, %v961, 0
  %965 = vmatprep.subr.mxu0 0.0
  %966 = vmatpush1.msra.mxu0 0.0
  %967 = vmatprep.subr.mxu0 0.0
  %968 = vmatpush1.msra.mxu0 0.0
  %969 = vmatprep.subr.mxu0 0.0
  %970 = vmatpush1.msra.mxu0 0.0
  %971 = vmatprep.subr.mxu0 0.0
  %972 = vmatpush1.msra.mxu0 0.0
  %973 = vmatprep.subr.mxu0 0.0
  %974 = vmatpush1.msra.mxu0 0.0
  %975 = vmatprep.subr.mxu0 0.0
  %976 = vmatpush1.msra.mxu0 0.0
  %977 = vmatprep.subr.mxu0 0.0
  %978 = vmatpush1.msra.mxu0 0.0
  %979 = vmatprep.subr.mxu0 0.0
  %980 = vmatpush1.msra.mxu0 0.0
  %981 = vmatprep.subr.mxu0 0.0
  %982 = vmatpush1.msra.mxu0 0.0
  %983 = vmatprep.subr.mxu0 0.0
  %984 = vmatpush1.msra.mxu0 0.0
  %985 = vmatprep.subr.mxu0 0.0
  %986 = vmatpush1.msra.mxu0 0.0
  %987 = vmatprep.subr.mxu0 0.0
  %988 = vmatpush1.msra.mxu0 0.0
  %989 = vmatprep.subr.mxu0 0.0
  %990 = vmatpush1.msra.mxu0 0.0
  %991 = vmatprep.subr.mxu0 0.0
  %992 = vmatpush1.msra.mxu0 0.0
  %993 = vmatprep.subr.mxu0 0.0
  %994 = vmatpush1.msra.mxu0 0.0
  %995 = vmatprep.subr.mxu0 0.0
  %996 = vmatpush1.msra.mxu0 %v184
  %997 = vmatprep.subr.mxu0 0.0
  %998 = vmatpush2.msra.mxu0 0.0
  %999 = vmatprep.subr.mxu0 0.0
  %1000 = vmatpush2.msra.mxu0 0.0
  %1001 = vmatprep.subr.mxu0 0.0
  %1002 = vmatpush2.msra.mxu0 0.0
  %1003 = vmatprep.subr.mxu0 0.0
  %1004 = vmatpush2.msra.mxu0 0.0
  %1005 = vmatprep.subr.mxu0 0.0
  %1006 = vmatpush2.msra.mxu0 0.0
  %1007 = vmatprep.subr.mxu0 0.0
  %1008 = vmatpush2.msra.mxu0 0.0
  %1009 = vmatprep.subr.mxu0 0.0
  %1010 = vmatpush2.msra.mxu0 0.0
  %1011 = vmatprep.subr.mxu0 0.0
  %1012 = vmatpush2.msra.mxu0 0.0
  %1013 = vmatprep.subr.mxu0 0.0
  %1014 = vmatpush2.msra.mxu0 0.0
  %1015 = vmatprep.subr.mxu0 0.0
  %1016 = vmatpush2.msra.mxu0 0.0
  %1017 = vmatprep.subr.mxu0 0.0
  %1018 = vmatpush2.msra.mxu0 0.0
  %1019 = vmatprep.subr.mxu0 0.0
  %1020 = vmatpush2.msra.mxu0 0.0
  %1021 = vmatprep.subr.mxu0 0.0
  %1022 = vmatpush2.msra.mxu0 0.0
  %1023 = vmatprep.subr.mxu0 0.0
  %1024 = vmatpush2.msra.mxu0 0.0
  %1025 = vmatprep.subr.mxu0 0.0
  %1026 = vmatpush2.msra.mxu0 0.0
  %1027 = vmatprep.subr.mxu0 0.0
  %1028 = vmatpush2.msra.mxu0 0.0
  %1029 = vmatprep.mubr.f32.mxu0 0.0
  %1030 = vmatmul.mubr.f32.gmra.mxu0 %v963
  %v1031 = vpop.f32.mrf.mxu0
  %v1032 = vadd.f32 0.0, %v1031
  %v1033 = vpop.f32.mrf.mxu0
  %1034 = vdwg.mxu0
  %1035 = vrot.lane.b32.xlu0 %v184, 120
  %v1036 = vpop.permute.xlu0 %1035
  %1037 = vrot.lane.b32.xlu0 %v184, 88
  %v1038 = vpop.permute.xlu0 %1037
  %v1039 = vsel %vm191, %v1036, 0
  %v1041 = vsel %vm191, %v1038, 0
  %1043 = vmatprep.subr.mxu0 0.0
  %1044 = vmatpush1.xpose.msra.mxu0 0.0
  %1045 = vmatprep.subr.mxu0 0.0
  %1046 = vmatpush1.xpose.msra.mxu0 0.0
  %1047 = vmatprep.subr.mxu0 0.0
  %1048 = vmatpush1.xpose.msra.mxu0 0.0
  %1049 = vmatprep.subr.mxu0 0.0
  %1050 = vmatpush1.xpose.msra.mxu0 0.0
  %1051 = vmatprep.subr.mxu0 0.0
  %1052 = vmatpush1.xpose.msra.mxu0 0.0
  %1053 = vmatprep.subr.mxu0 0.0
  %1054 = vmatpush1.xpose.msra.mxu0 0.0
  %1055 = vmatprep.subr.mxu0 0.0
  %1056 = vmatpush1.xpose.msra.mxu0 0.0
  %1057 = vmatprep.subr.mxu0 0.0
  %1058 = vmatpush1.xpose.msra.mxu0 0.0
  %1059 = vmatprep.subr.mxu0 0.0
  %1060 = vmatpush1.xpose.msra.mxu0 0.0
  %1061 = vmatprep.subr.mxu0 0.0
  %1062 = vmatpush1.xpose.msra.mxu0 0.0
  %1063 = vmatprep.subr.mxu0 0.0
  %1064 = vmatpush1.xpose.msra.mxu0 0.0
  %1065 = vmatprep.subr.mxu0 0.0
  %1066 = vmatpush1.xpose.msra.mxu0 0.0
  %1067 = vmatprep.subr.mxu0 0.0
  %1068 = vmatpush1.xpose.msra.mxu0 0.0
  %1069 = vmatprep.subr.mxu0 0.0
  %1070 = vmatpush1.xpose.msra.mxu0 0.0
  %1071 = vmatprep.subr.mxu0 0.0
  %1072 = vmatpush1.xpose.msra.mxu0 0.0
  %1073 = vmatprep.subr.mxu0 0.0
  %1074 = vmatpush1.xpose.msra.mxu0 %v1041
  %1075 = vmatprep.subr.mxu0 0.0
  %1076 = vmatpush2.xpose.msra.mxu0 0.0
  %1077 = vmatprep.subr.mxu0 0.0
  %1078 = vmatpush2.xpose.msra.mxu0 0.0
  %1079 = vmatprep.subr.mxu0 0.0
  %1080 = vmatpush2.xpose.msra.mxu0 0.0
  %1081 = vmatprep.subr.mxu0 0.0
  %1082 = vmatpush2.xpose.msra.mxu0 0.0
  %1083 = vmatprep.subr.mxu0 0.0
  %1084 = vmatpush2.xpose.msra.mxu0 0.0
  %1085 = vmatprep.subr.mxu0 0.0
  %1086 = vmatpush2.xpose.msra.mxu0 0.0
  %1087 = vmatprep.subr.mxu0 0.0
  %1088 = vmatpush2.xpose.msra.mxu0 0.0
  %1089 = vmatprep.subr.mxu0 0.0
  %1090 = vmatpush2.xpose.msra.mxu0 0.0
  %1091 = vmatprep.subr.mxu0 0.0
  %1092 = vmatpush2.xpose.msra.mxu0 0.0
  %1093 = vmatprep.subr.mxu0 0.0
  %1094 = vmatpush2.xpose.msra.mxu0 0.0
  %1095 = vmatprep.subr.mxu0 0.0
  %1096 = vmatpush2.xpose.msra.mxu0 0.0
  %1097 = vmatprep.subr.mxu0 0.0
  %1098 = vmatpush2.xpose.msra.mxu0 0.0
  %1099 = vmatprep.subr.mxu0 0.0
  %1100 = vmatpush2.xpose.msra.mxu0 0.0
  %1101 = vmatprep.subr.mxu0 0.0
  %1102 = vmatpush2.xpose.msra.mxu0 0.0
  %1103 = vmatprep.subr.mxu0 0.0
  %1104 = vmatpush2.xpose.msra.mxu0 0.0
  %1105 = vmatprep.subr.mxu0 0.0
  %1106 = vmatpush2.xpose.msra.mxu0 0.0
  %1107 = vmatprep.mubr.f32.mxu0 0.0
  %1108 = vmatmul.mubr.f32.gmra.mxu0 %v1039
  %v1109 = vpop.f32.mrf.mxu0
  %v1110 = vadd.f32 0.0, %v1109
  %v1111 = vpop.f32.mrf.mxu0
  %1112 = vdwg.mxu0
  %v1113 = vmul.f32 %v1110, 0.35355338
  %v1114 = vadd.f32 %v1113, %v949
  %v1115 = vsel %vm191, %v1114, -inf
  %1116 = vmax.xlane.f32.xlu0 %v1115
  %v1117 = vpop.xlane.xlu0 %1116
  %v1118 = vsub.f32 %v1114, %v1117
  %v1119 = vmul.f32 %v1118, 1.442695
  %v1120 = vpow.pop %v1119
  %v1121 = vsel %vm191, %v1120, 0.0
  %1122 = vadd.xlane.f32.xlu0 %v1121
  %v1123 = vpop.xlane.xlu0 %1122
  %v1124 = vrcp.pop %v1123
  %v1125 = vmul.f32 %v1120, %v1124
  %v1128 = vsel %vm191, %v1125, 0
  %1130 = vmatprep.subr.mxu0 0.0
  %1131 = vmatpush1.msra.mxu0 0.0
  %1132 = vmatprep.subr.mxu0 0.0
  %1133 = vmatpush1.msra.mxu0 0.0
  %1134 = vmatprep.subr.mxu0 0.0
  %1135 = vmatpush1.msra.mxu0 0.0
  %1136 = vmatprep.subr.mxu0 0.0
  %1137 = vmatpush1.msra.mxu0 0.0
  %1138 = vmatprep.subr.mxu0 0.0
  %1139 = vmatpush1.msra.mxu0 0.0
  %1140 = vmatprep.subr.mxu0 0.0
  %1141 = vmatpush1.msra.mxu0 0.0
  %1142 = vmatprep.subr.mxu0 0.0
  %1143 = vmatpush1.msra.mxu0 0.0
  %1144 = vmatprep.subr.mxu0 0.0
  %1145 = vmatpush1.msra.mxu0 0.0
  %1146 = vmatprep.subr.mxu0 0.0
  %1147 = vmatpush1.msra.mxu0 0.0
  %1148 = vmatprep.subr.mxu0 0.0
  %1149 = vmatpush1.msra.mxu0 0.0
  %1150 = vmatprep.subr.mxu0 0.0
  %1151 = vmatpush1.msra.mxu0 0.0
  %1152 = vmatprep.subr.mxu0 0.0
  %1153 = vmatpush1.msra.mxu0 0.0
  %1154 = vmatprep.subr.mxu0 0.0
  %1155 = vmatpush1.msra.mxu0 0.0
  %1156 = vmatprep.subr.mxu0 0.0
  %1157 = vmatpush1.msra.mxu0 0.0
  %1158 = vmatprep.subr.mxu0 0.0
  %1159 = vmatpush1.msra.mxu0 0.0
  %1160 = vmatprep.subr.mxu0 0.0
  %1161 = vmatpush1.msra.mxu0 %v1036
  %1162 = vmatprep.subr.mxu0 0.0
  %1163 = vmatpush2.msra.mxu0 0.0
  %1164 = vmatprep.subr.mxu0 0.0
  %1165 = vmatpush2.msra.mxu0 0.0
  %1166 = vmatprep.subr.mxu0 0.0
  %1167 = vmatpush2.msra.mxu0 0.0
  %1168 = vmatprep.subr.mxu0 0.0
  %1169 = vmatpush2.msra.mxu0 0.0
  %1170 = vmatprep.subr.mxu0 0.0
  %1171 = vmatpush2.msra.mxu0 0.0
  %1172 = vmatprep.subr.mxu0 0.0
  %1173 = vmatpush2.msra.mxu0 0.0
  %1174 = vmatprep.subr.mxu0 0.0
  %1175 = vmatpush2.msra.mxu0 0.0
  %1176 = vmatprep.subr.mxu0 0.0
  %1177 = vmatpush2.msra.mxu0 0.0
  %1178 = vmatprep.subr.mxu0 0.0
  %1179 = vmatpush2.msra.mxu0 0.0
  %1180 = vmatprep.subr.mxu0 0.0
  %1181 = vmatpush2.msra.mxu0 0.0
  %1182 = vmatprep.subr.mxu0 0.0
  %1183 = vmatpush2.msra.mxu0 0.0
  %1184 = vmatprep.subr.mxu0 0.0
  %1185 = vmatpush2.msra.mxu0 0.0
  %1186 = vmatprep.subr.mxu0 0.0
  %1187 = vmatpush2.msra.mxu0 0.0
  %1188 = vmatprep.subr.mxu0 0.0
  %1189 = vmatpush2.msra.mxu0 0.0
  %1190 = vmatprep.subr.mxu0 0.0
  %1191 = vmatpush2.msra.mxu0 0.0
  %1192 = vmatprep.subr.mxu0 0.0
  %1193 = vmatpush2.msra.mxu0 0.0
  %1194 = vmatprep.mubr.f32.mxu0 0.0
  %1195 = vmatmul.mubr.f32.gmra.mxu0 %v1128
  %v1196 = vpop.f32.mrf.mxu0
  %v1197 = vadd.f32 0.0, %v1196
  %v1198 = vpop.f32.mrf.mxu0
  %1199 = vdwg.mxu0
  %1200 = vrot.lane.b32.xlu0 %v184, 112
  %v1201 = vpop.permute.xlu0 %1200
  %1202 = vrot.lane.b32.xlu0 %v184, 80
  %v1203 = vpop.permute.xlu0 %1202
  %v1204 = vsel %vm191, %v1201, 0
  %v1206 = vsel %vm191, %v1203, 0
  %1208 = vmatprep.subr.mxu0 0.0
  %1209 = vmatpush1.xpose.msra.mxu0 0.0
  %1210 = vmatprep.subr.mxu0 0.0
  %1211 = vmatpush1.xpose.msra.mxu0 0.0
  %1212 = vmatprep.subr.mxu0 0.0
  %1213 = vmatpush1.xpose.msra.mxu0 0.0
  %1214 = vmatprep.subr.mxu0 0.0
  %1215 = vmatpush1.xpose.msra.mxu0 0.0
  %1216 = vmatprep.subr.mxu0 0.0
  %1217 = vmatpush1.xpose.msra.mxu0 0.0
  %1218 = vmatprep.subr.mxu0 0.0
  %1219 = vmatpush1.xpose.msra.mxu0 0.0
  %1220 = vmatprep.subr.mxu0 0.0
  %1221 = vmatpush1.xpose.msra.mxu0 0.0
  %1222 = vmatprep.subr.mxu0 0.0
  %1223 = vmatpush1.xpose.msra.mxu0 0.0
  %1224 = vmatprep.subr.mxu0 0.0
  %1225 = vmatpush1.xpose.msra.mxu0 0.0
  %1226 = vmatprep.subr.mxu0 0.0
  %1227 = vmatpush1.xpose.msra.mxu0 0.0
  %1228 = vmatprep.subr.mxu0 0.0
  %1229 = vmatpush1.xpose.msra.mxu0 0.0
  %1230 = vmatprep.subr.mxu0 0.0
  %1231 = vmatpush1.xpose.msra.mxu0 0.0
  %1232 = vmatprep.subr.mxu0 0.0
  %1233 = vmatpush1.xpose.msra.mxu0 0.0
  %1234 = vmatprep.subr.mxu0 0.0
  %1235 = vmatpush1.xpose.msra.mxu0 0.0
  %1236 = vmatprep.subr.mxu0 0.0
  %1237 = vmatpush1.xpose.msra.mxu0 0.0
  %1238 = vmatprep.subr.mxu0 0.0
  %1239 = vmatpush1.xpose.msra.mxu0 %v1206
  %1240 = vmatprep.subr.mxu0 0.0
  %1241 = vmatpush2.xpose.msra.mxu0 0.0
  %1242 = vmatprep.subr.mxu0 0.0
  %1243 = vmatpush2.xpose.msra.mxu0 0.0
  %1244 = vmatprep.subr.mxu0 0.0
  %1245 = vmatpush2.xpose.msra.mxu0 0.0
  %1246 = vmatprep.subr.mxu0 0.0
  %1247 = vmatpush2.xpose.msra.mxu0 0.0
  %1248 = vmatprep.subr.mxu0 0.0
  %1249 = vmatpush2.xpose.msra.mxu0 0.0
  %1250 = vmatprep.subr.mxu0 0.0
  %1251 = vmatpush2.xpose.msra.mxu0 0.0
  %1252 = vmatprep.subr.mxu0 0.0
  %1253 = vmatpush2.xpose.msra.mxu0 0.0
  %1254 = vmatprep.subr.mxu0 0.0
  %1255 = vmatpush2.xpose.msra.mxu0 0.0
  %1256 = vmatprep.subr.mxu0 0.0
  %1257 = vmatpush2.xpose.msra.mxu0 0.0
  %1258 = vmatprep.subr.mxu0 0.0
  %1259 = vmatpush2.xpose.msra.mxu0 0.0
  %1260 = vmatprep.subr.mxu0 0.0
  %1261 = vmatpush2.xpose.msra.mxu0 0.0
  %1262 = vmatprep.subr.mxu0 0.0
  %1263 = vmatpush2.xpose.msra.mxu0 0.0
  %1264 = vmatprep.subr.mxu0 0.0
  %1265 = vmatpush2.xpose.msra.mxu0 0.0
  %1266 = vmatprep.subr.mxu0 0.0
  %1267 = vmatpush2.xpose.msra.mxu0 0.0
  %1268 = vmatprep.subr.mxu0 0.0
  %1269 = vmatpush2.xpose.msra.mxu0 0.0
  %1270 = vmatprep.subr.mxu0 0.0
  %1271 = vmatpush2.xpose.msra.mxu0 0.0
  %1272 = vmatprep.mubr.f32.mxu0 0.0
  %1273 = vmatmul.mubr.f32.gmra.mxu0 %v1204
  %v1274 = vpop.f32.mrf.mxu0
  %v1275 = vadd.f32 0.0, %v1274
  %v1276 = vpop.f32.mrf.mxu0
  %1277 = vdwg.mxu0
  %v1278 = vmul.f32 %v1275, 0.35355338
  %v1279 = vadd.f32 %v1278, %v949
  %v1280 = vsel %vm191, %v1279, -inf
  %1281 = vmax.xlane.f32.xlu0 %v1280
  %v1282 = vpop.xlane.xlu0 %1281
  %v1283 = vsub.f32 %v1279, %v1282
  %v1284 = vmul.f32 %v1283, 1.442695
  %v1285 = vpow.pop %v1284
  %v1286 = vsel %vm191, %v1285, 0.0
  %1287 = vadd.xlane.f32.xlu0 %v1286
  %v1288 = vpop.xlane.xlu0 %1287
  %v1289 = vrcp.pop %v1288
  %v1290 = vmul.f32 %v1285, %v1289
  %v1293 = vsel %vm191, %v1290, 0
  %1295 = vmatprep.subr.mxu0 0.0
  %1296 = vmatpush1.msra.mxu0 0.0
  %1297 = vmatprep.subr.mxu0 0.0
  %1298 = vmatpush1.msra.mxu0 0.0
  %1299 = vmatprep.subr.mxu0 0.0
  %1300 = vmatpush1.msra.mxu0 0.0
  %1301 = vmatprep.subr.mxu0 0.0
  %1302 = vmatpush1.msra.mxu0 0.0
  %1303 = vmatprep.subr.mxu0 0.0
  %1304 = vmatpush1.msra.mxu0 0.0
  %1305 = vmatprep.subr.mxu0 0.0
  %1306 = vmatpush1.msra.mxu0 0.0
  %1307 = vmatprep.subr.mxu0 0.0
  %1308 = vmatpush1.msra.mxu0 0.0
  %1309 = vmatprep.subr.mxu0 0.0
  %1310 = vmatpush1.msra.mxu0 0.0
  %1311 = vmatprep.subr.mxu0 0.0
  %1312 = vmatpush1.msra.mxu0 0.0
  %1313 = vmatprep.subr.mxu0 0.0
  %1314 = vmatpush1.msra.mxu0 0.0
  %1315 = vmatprep.subr.mxu0 0.0
  %1316 = vmatpush1.msra.mxu0 0.0
  %1317 = vmatprep.subr.mxu0 0.0
  %1318 = vmatpush1.msra.mxu0 0.0
  %1319 = vmatprep.subr.mxu0 0.0
  %1320 = vmatpush1.msra.mxu0 0.0
  %1321 = vmatprep.subr.mxu0 0.0
  %1322 = vmatpush1.msra.mxu0 0.0
  %1323 = vmatprep.subr.mxu0 0.0
  %1324 = vmatpush1.msra.mxu0 0.0
  %1325 = vmatprep.subr.mxu0 0.0
  %1326 = vmatpush1.msra.mxu0 %v1201
  %1327 = vmatprep.subr.mxu0 0.0
  %1328 = vmatpush2.msra.mxu0 0.0
  %1329 = vmatprep.subr.mxu0 0.0
  %1330 = vmatpush2.msra.mxu0 0.0
  %1331 = vmatprep.subr.mxu0 0.0
  %1332 = vmatpush2.msra.mxu0 0.0
  %1333 = vmatprep.subr.mxu0 0.0
  %1334 = vmatpush2.msra.mxu0 0.0
  %1335 = vmatprep.subr.mxu0 0.0
  %1336 = vmatpush2.msra.mxu0 0.0
  %1337 = vmatprep.subr.mxu0 0.0
  %1338 = vmatpush2.msra.mxu0 0.0
  %1339 = vmatprep.subr.mxu0 0.0
  %1340 = vmatpush2.msra.mxu0 0.0
  %1341 = vmatprep.subr.mxu0 0.0
  %1342 = vmatpush2.msra.mxu0 0.0
  %1343 = vmatprep.subr.mxu0 0.0
  %1344 = vmatpush2.msra.mxu0 0.0
  %1345 = vmatprep.subr.mxu0 0.0
  %1346 = vmatpush2.msra.mxu0 0.0
  %1347 = vmatprep.subr.mxu0 0.0
  %1348 = vmatpush2.msra.mxu0 0.0
  %1349 = vmatprep.subr.mxu0 0.0
  %1350 = vmatpush2.msra.mxu0 0.0
  %1351 = vmatprep.subr.mxu0 0.0
  %1352 = vmatpush2.msra.mxu0 0.0
  %1353 = vmatprep.subr.mxu0 0.0
  %1354 = vmatpush2.msra.mxu0 0.0
  %1355 = vmatprep.subr.mxu0 0.0
  %1356 = vmatpush2.msra.mxu0 0.0
  %1357 = vmatprep.subr.mxu0 0.0
  %1358 = vmatpush2.msra.mxu0 0.0
  %1359 = vmatprep.mubr.f32.mxu0 0.0
  %1360 = vmatmul.mubr.f32.gmra.mxu0 %v1293
  %v1361 = vpop.f32.mrf.mxu0
  %v1362 = vadd.f32 0.0, %v1361
  %v1363 = vpop.f32.mrf.mxu0
  %1364 = vdwg.mxu0
  %1365 = vrot.lane.b32.xlu0 %v184, 104
  %v1366 = vpop.permute.xlu0 %1365
  %1367 = vrot.lane.b32.xlu0 %v184, 72
  %v1368 = vpop.permute.xlu0 %1367
  %v1369 = vsel %vm191, %v1366, 0
  %v1371 = vsel %vm191, %v1368, 0
  %1373 = vmatprep.subr.mxu0 0.0
  %1374 = vmatpush1.xpose.msra.mxu0 0.0
  %1375 = vmatprep.subr.mxu0 0.0
  %1376 = vmatpush1.xpose.msra.mxu0 0.0
  %1377 = vmatprep.subr.mxu0 0.0
  %1378 = vmatpush1.xpose.msra.mxu0 0.0
  %1379 = vmatprep.subr.mxu0 0.0
  %1380 = vmatpush1.xpose.msra.mxu0 0.0
  %1381 = vmatprep.subr.mxu0 0.0
  %1382 = vmatpush1.xpose.msra.mxu0 0.0
  %1383 = vmatprep.subr.mxu0 0.0
  %1384 = vmatpush1.xpose.msra.mxu0 0.0
  %1385 = vmatprep.subr.mxu0 0.0
  %1386 = vmatpush1.xpose.msra.mxu0 0.0
  %1387 = vmatprep.subr.mxu0 0.0
  %1388 = vmatpush1.xpose.msra.mxu0 0.0
  %1389 = vmatprep.subr.mxu0 0.0
  %1390 = vmatpush1.xpose.msra.mxu0 0.0
  %1391 = vmatprep.subr.mxu0 0.0
  %1392 = vmatpush1.xpose.msra.mxu0 0.0
  %1393 = vmatprep.subr.mxu0 0.0
  %1394 = vmatpush1.xpose.msra.mxu0 0.0
  %1395 = vmatprep.subr.mxu0 0.0
  %1396 = vmatpush1.xpose.msra.mxu0 0.0
  %1397 = vmatprep.subr.mxu0 0.0
  %1398 = vmatpush1.xpose.msra.mxu0 0.0
  %1399 = vmatprep.subr.mxu0 0.0
  %1400 = vmatpush1.xpose.msra.mxu0 0.0
  %1401 = vmatprep.subr.mxu0 0.0
  %1402 = vmatpush1.xpose.msra.mxu0 0.0
  %1403 = vmatprep.subr.mxu0 0.0
  %1404 = vmatpush1.xpose.msra.mxu0 %v1371
  %1405 = vmatprep.subr.mxu0 0.0
  %1406 = vmatpush2.xpose.msra.mxu0 0.0
  %1407 = vmatprep.subr.mxu0 0.0
  %1408 = vmatpush2.xpose.msra.mxu0 0.0
  %1409 = vmatprep.subr.mxu0 0.0
  %1410 = vmatpush2.xpose.msra.mxu0 0.0
  %1411 = vmatprep.subr.mxu0 0.0
  %1412 = vmatpush2.xpose.msra.mxu0 0.0
  %1413 = vmatprep.subr.mxu0 0.0
  %1414 = vmatpush2.xpose.msra.mxu0 0.0
  %1415 = vmatprep.subr.mxu0 0.0
  %1416 = vmatpush2.xpose.msra.mxu0 0.0
  %1417 = vmatprep.subr.mxu0 0.0
  %1418 = vmatpush2.xpose.msra.mxu0 0.0
  %1419 = vmatprep.subr.mxu0 0.0
  %1420 = vmatpush2.xpose.msra.mxu0 0.0
  %1421 = vmatprep.subr.mxu0 0.0
  %1422 = vmatpush2.xpose.msra.mxu0 0.0
  %1423 = vmatprep.subr.mxu0 0.0
  %1424 = vmatpush2.xpose.msra.mxu0 0.0
  %1425 = vmatprep.subr.mxu0 0.0
  %1426 = vmatpush2.xpose.msra.mxu0 0.0
  %1427 = vmatprep.subr.mxu0 0.0
  %1428 = vmatpush2.xpose.msra.mxu0 0.0
  %1429 = vmatprep.subr.mxu0 0.0
  %1430 = vmatpush2.xpose.msra.mxu0 0.0
  %1431 = vmatprep.subr.mxu0 0.0
  %1432 = vmatpush2.xpose.msra.mxu0 0.0
  %1433 = vmatprep.subr.mxu0 0.0
  %1434 = vmatpush2.xpose.msra.mxu0 0.0
  %1435 = vmatprep.subr.mxu0 0.0
  %1436 = vmatpush2.xpose.msra.mxu0 0.0
  %1437 = vmatprep.mubr.f32.mxu0 0.0
  %1438 = vmatmul.mubr.f32.gmra.mxu0 %v1369
  %v1439 = vpop.f32.mrf.mxu0
  %v1440 = vadd.f32 0.0, %v1439
  %v1441 = vpop.f32.mrf.mxu0
  %1442 = vdwg.mxu0
  %v1443 = vmul.f32 %v1440, 0.35355338
  %v1444 = vadd.f32 %v1443, %v949
  %v1445 = vsel %vm191, %v1444, -inf
  %1446 = vmax.xlane.f32.xlu0 %v1445
  %v1447 = vpop.xlane.xlu0 %1446
  %v1448 = vsub.f32 %v1444, %v1447
  %v1449 = vmul.f32 %v1448, 1.442695
  %v1450 = vpow.pop %v1449
  %v1451 = vsel %vm191, %v1450, 0.0
  %1452 = vadd.xlane.f32.xlu0 %v1451
  %v1453 = vpop.xlane.xlu0 %1452
  %v1454 = vrcp.pop %v1453
  %v1455 = vmul.f32 %v1450, %v1454
  %v1458 = vsel %vm191, %v1455, 0
  %1460 = vmatprep.subr.mxu0 0.0
  %1461 = vmatpush1.msra.mxu0 0.0
  %1462 = vmatprep.subr.mxu0 0.0
  %1463 = vmatpush1.msra.mxu0 0.0
  %1464 = vmatprep.subr.mxu0 0.0
  %1465 = vmatpush1.msra.mxu0 0.0
  %1466 = vmatprep.subr.mxu0 0.0
  %1467 = vmatpush1.msra.mxu0 0.0
  %1468 = vmatprep.subr.mxu0 0.0
  %1469 = vmatpush1.msra.mxu0 0.0
  %1470 = vmatprep.subr.mxu0 0.0
  %1471 = vmatpush1.msra.mxu0 0.0
  %1472 = vmatprep.subr.mxu0 0.0
  %1473 = vmatpush1.msra.mxu0 0.0
  %1474 = vmatprep.subr.mxu0 0.0
  %1475 = vmatpush1.msra.mxu0 0.0
  %1476 = vmatprep.subr.mxu0 0.0
  %1477 = vmatpush1.msra.mxu0 0.0
  %1478 = vmatprep.subr.mxu0 0.0
  %1479 = vmatpush1.msra.mxu0 0.0
  %1480 = vmatprep.subr.mxu0 0.0
  %1481 = vmatpush1.msra.mxu0 0.0
  %1482 = vmatprep.subr.mxu0 0.0
  %1483 = vmatpush1.msra.mxu0 0.0
  %1484 = vmatprep.subr.mxu0 0.0
  %1485 = vmatpush1.msra.mxu0 0.0
  %1486 = vmatprep.subr.mxu0 0.0
  %1487 = vmatpush1.msra.mxu0 0.0
  %1488 = vmatprep.subr.mxu0 0.0
  %1489 = vmatpush1.msra.mxu0 0.0
  %1490 = vmatprep.subr.mxu0 0.0
  %1491 = vmatpush1.msra.mxu0 %v1366
  %1492 = vmatprep.subr.mxu0 0.0
  %1493 = vmatpush2.msra.mxu0 0.0
  %1494 = vmatprep.subr.mxu0 0.0
  %1495 = vmatpush2.msra.mxu0 0.0
  %1496 = vmatprep.subr.mxu0 0.0
  %1497 = vmatpush2.msra.mxu0 0.0
  %1498 = vmatprep.subr.mxu0 0.0
  %1499 = vmatpush2.msra.mxu0 0.0
  %1500 = vmatprep.subr.mxu0 0.0
  %1501 = vmatpush2.msra.mxu0 0.0
  %1502 = vmatprep.subr.mxu0 0.0
  %1503 = vmatpush2.msra.mxu0 0.0
  %1504 = vmatprep.subr.mxu0 0.0
  %1505 = vmatpush2.msra.mxu0 0.0
  %1506 = vmatprep.subr.mxu0 0.0
  %1507 = vmatpush2.msra.mxu0 0.0
  %1508 = vmatprep.subr.mxu0 0.0
  %1509 = vmatpush2.msra.mxu0 0.0
  %1510 = vmatprep.subr.mxu0 0.0
  %1511 = vmatpush2.msra.mxu0 0.0
  %1512 = vmatprep.subr.mxu0 0.0
  %1513 = vmatpush2.msra.mxu0 0.0
  %1514 = vmatprep.subr.mxu0 0.0
  %1515 = vmatpush2.msra.mxu0 0.0
  %1516 = vmatprep.subr.mxu0 0.0
  %1517 = vmatpush2.msra.mxu0 0.0
  %1518 = vmatprep.subr.mxu0 0.0
  %1519 = vmatpush2.msra.mxu0 0.0
  %1520 = vmatprep.subr.mxu0 0.0
  %1521 = vmatpush2.msra.mxu0 0.0
  %1522 = vmatprep.subr.mxu0 0.0
  %1523 = vmatpush2.msra.mxu0 0.0
  %1524 = vmatprep.mubr.f32.mxu0 0.0
  %1525 = vmatmul.mubr.f32.gmra.mxu0 %v1458
  %v1526 = vpop.f32.mrf.mxu0
  %v1527 = vadd.f32 0.0, %v1526
  %v1528 = vpop.f32.mrf.mxu0
  %1529 = vdwg.mxu0
  %1531 = vrot.lane.b32.xlu0 %v1197, 8
  %v1532 = vpop.permute.xlu0 %1531
  %1535 = vrot.lane.b32.xlu0 %v1362, 16
  %v1536 = vpop.permute.xlu0 %1535
  %1539 = vrot.lane.b32.xlu0 %v1527, 24
  %v1540 = vpop.permute.xlu0 %1539
  %v1542 = vsel %vm191, %v1032, %v1532
  %v1543 = vsel %vm864, %v1542, %v1536
  %v1544 = vsel %vm866, %v1543, %v1540
  %v1545 = vld [vmem:[%s6] sm:$0xff]
  %v1546 = vld [vmem:[%s6 + $0x8] sm:$0xff]
  %v1547 = vld [vmem:[%s6 + $0x10] sm:$0xff]
  %v1548 = vld [vmem:[%s6 + $0x18] sm:$0xff]
  %v1549 = vld [vmem:[%s7] sm:$0x1]
  %v1551 = vlaneseq
  %v1552 = vshrl.u32 %v1551, 7
  %v1553 = vsub.s32 0, %v1552
  %v1554 = vrot.slane %v1549, %v1553
  %v1557 = vsel %vm49, %v867, 0
  %v1560 = vsel %vm49, %v1544, 0
  %1562 = vmatprep.subr.mxu0 0.0
  %1563 = vmatpush1.msra.mxu0 0.0
  %1564 = vmatprep.subr.mxu0 0.0
  %1565 = vmatpush1.msra.mxu0 0.0
  %1566 = vmatprep.subr.mxu0 0.0
  %1567 = vmatpush1.msra.mxu0 0.0
  %1568 = vmatprep.subr.mxu0 0.0
  %1569 = vmatpush1.msra.mxu0 0.0
  %1570 = vmatprep.subr.mxu0 0.0
  %1571 = vmatpush1.msra.mxu0 0.0
  %1572 = vmatprep.subr.mxu0 0.0
  %1573 = vmatpush1.msra.mxu0 0.0
  %1574 = vmatprep.subr.mxu0 0.0
  %1575 = vmatpush1.msra.mxu0 0.0
  %1576 = vmatprep.subr.mxu0 0.0
  %1577 = vmatpush1.msra.mxu0 0.0
  %1578 = vmatprep.subr.mxu0 0.0
  %1579 = vmatpush1.msra.mxu0 0.0
  %1580 = vmatprep.subr.mxu0 0.0
  %1581 = vmatpush1.msra.mxu0 0.0
  %1582 = vmatprep.subr.mxu0 0.0
  %1583 = vmatpush1.msra.mxu0 0.0
  %1584 = vmatprep.subr.mxu0 0.0
  %1585 = vmatpush1.msra.mxu0 0.0
  %1586 = vmatprep.subr.mxu0 0.0
  %1587 = vmatpush1.msra.mxu0 %v1548
  %1588 = vmatprep.subr.mxu0 0.0
  %1589 = vmatpush1.msra.mxu0 %v1547
  %1590 = vmatprep.subr.mxu0 0.0
  %1591 = vmatpush1.msra.mxu0 %v1546
  %1592 = vmatprep.subr.mxu0 0.0
  %1593 = vmatpush1.msra.mxu0 %v1545
  %1594 = vmatprep.subr.mxu0 0.0
  %1595 = vmatpush2.msra.mxu0 0.0
  %1596 = vmatprep.subr.mxu0 0.0
  %1597 = vmatpush2.msra.mxu0 0.0
  %1598 = vmatprep.subr.mxu0 0.0
  %1599 = vmatpush2.msra.mxu0 0.0
  %1600 = vmatprep.subr.mxu0 0.0
  %1601 = vmatpush2.msra.mxu0 0.0
  %1602 = vmatprep.subr.mxu0 0.0
  %1603 = vmatpush2.msra.mxu0 0.0
  %1604 = vmatprep.subr.mxu0 0.0
  %1605 = vmatpush2.msra.mxu0 0.0
  %1606 = vmatprep.subr.mxu0 0.0
  %1607 = vmatpush2.msra.mxu0 0.0
  %1608 = vmatprep.subr.mxu0 0.0
  %1609 = vmatpush2.msra.mxu0 0.0
  %1610 = vmatprep.subr.mxu0 0.0
  %1611 = vmatpush2.msra.mxu0 0.0
  %1612 = vmatprep.subr.mxu0 0.0
  %1613 = vmatpush2.msra.mxu0 0.0
  %1614 = vmatprep.subr.mxu0 0.0
  %1615 = vmatpush2.msra.mxu0 0.0
  %1616 = vmatprep.subr.mxu0 0.0
  %1617 = vmatpush2.msra.mxu0 0.0
  %1618 = vmatprep.subr.mxu0 0.0
  %1619 = vmatpush2.msra.mxu0 0.0
  %1620 = vmatprep.subr.mxu0 0.0
  %1621 = vmatpush2.msra.mxu0 0.0
  %1622 = vmatprep.subr.mxu0 0.0
  %1623 = vmatpush2.msra.mxu0 0.0
  %1624 = vmatprep.subr.mxu0 0.0
  %1625 = vmatpush2.msra.mxu0 0.0
  %1626 = vmatprep.mubr.f32.mxu0 0.0
  %1627 = vmatmul.mubr.f32.gmra.mxu0 %v1557
  %v1628 = vpop.f32.mrf.mxu0
  %v1629 = vadd.f32 %v1554, %v1628
  %v1630 = vpop.f32.mrf.mxu0
  %1631 = vmatprep.mubr.f32.mxu0 0.0
  %1632 = vmatmul.mubr.f32.gmra.mxu0 %v1560
  %v1633 = vpop.f32.mrf.mxu0
  %v1634 = vadd.f32 %v1554, %v1633
  %v1635 = vpop.f32.mrf.mxu0
  %1636 = vdwg.mxu0
  %v1637 = vadd.f32 %v93, %v1629
  %v1638 = vadd.f32 %v94, %v1634
  %v1639 = vsel %vm49, %v1637, 0.0
  %1640 = vadd.xlane.f32.xlu0 %v1639
  %v1641 = vpop.xlane.xlu0 %1640
  %v1642 = vsel %vm49, %v1638, 0.0
  %1643 = vadd.xlane.f32.xlu0 %v1642
  %v1644 = vpop.xlane.xlu0 %1643
  %v1645 = vmul.f32 %v1641, %v56
  %v1646 = vmul.f32 %v1644, %v56
  %v1647 = vsub.f32 %v1637, %v1645
  %v1648 = vsub.f32 %v1638, %v1646
  %v1649 = vmul.f32 %v1647, %v1647
  %v1650 = vmul.f32 %v1648, %v1648
  %v1651 = vsel %vm49, %v1649, 0.0
  %1652 = vadd.xlane.f32.xlu0 %v1651
  %v1653 = vpop.xlane.xlu0 %1652
  %v1654 = vsel %vm49, %v1650, 0.0
  %1655 = vadd.xlane.f32.xlu0 %v1654
  %v1656 = vpop.xlane.xlu0 %1655
  %v1657 = vmul.f32 %v1653, %v56
  %v1658 = vmul.f32 %v1656, %v56
  %v1659 = vadd.f32 %v1657, 1e-05
  %v1660 = vadd.f32 %v1658, 1e-05
  %v1661 = vrsqrt.pop %v1659
  %v1662 = vrsqrt.pop %v1660
  %v1663 = vmul.f32 %v1647, %v1661
  %v1664 = vmul.f32 %v1648, %v1662
  %v1665 = vld [vmem:[%s8] sm:$0x1]
  %v1667 = vlaneseq
  %v1668 = vshrl.u32 %v1667, 7
  %v1669 = vsub.s32 0, %v1668
  %v1670 = vrot.slane %v1665, %v1669
  %v1672 = vmul.f32 %v1663, %v1670
  %v1673 = vmul.f32 %v1664, %v1670
  %v1674 = vld [vmem:[%s9] sm:$0x1]
  %v1676 = vlaneseq
  %v1677 = vshrl.u32 %v1676, 7
  %v1678 = vsub.s32 0, %v1677
  %v1679 = vrot.slane %v1674, %v1678
  %v1681 = vadd.f32 %v1672, %v1679
  %v1682 = vadd.f32 %v1673, %v1679
  %v1683 = vld [vmem:[%s10] sm:$0xff]
  %v1684 = vld [vmem:[%s10 + $0x8] sm:$0xff]
  %v1685 = vld [vmem:[%s10 + $0x10] sm:$0xff]
  %v1686 = vld [vmem:[%s10 + $0x18] sm:$0xff]
  %v1687 = vld [vmem:[%s11] sm:$0x1]
  %v1689 = vlaneseq
  %v1690 = vshrl.u32 %v1689, 7
  %v1691 = vsub.s32 0, %v1690
  %v1692 = vrot.slane %v1687, %v1691
  %v1695 = vsel %vm49, %v1681, 0
  %v1698 = vsel %vm49, %v1682, 0
  %1700 = vmatprep.subr.mxu0 0.0
  %1701 = vmatpush1.msra.mxu0 0.0
  %1702 = vmatprep.subr.mxu0 0.0
  %1703 = vmatpush1.msra.mxu0 0.0
  %1704 = vmatprep.subr.mxu0 0.0
  %1705 = vmatpush1.msra.mxu0 0.0
  %1706 = vmatprep.subr.mxu0 0.0
  %1707 = vmatpush1.msra.mxu0 0.0
  %1708 = vmatprep.subr.mxu0 0.0
  %1709 = vmatpush1.msra.mxu0 0.0
  %1710 = vmatprep.subr.mxu0 0.0
  %1711 = vmatpush1.msra.mxu0 0.0
  %1712 = vmatprep.subr.mxu0 0.0
  %1713 = vmatpush1.msra.mxu0 0.0
  %1714 = vmatprep.subr.mxu0 0.0
  %1715 = vmatpush1.msra.mxu0 0.0
  %1716 = vmatprep.subr.mxu0 0.0
  %1717 = vmatpush1.msra.mxu0 0.0
  %1718 = vmatprep.subr.mxu0 0.0
  %1719 = vmatpush1.msra.mxu0 0.0
  %1720 = vmatprep.subr.mxu0 0.0
  %1721 = vmatpush1.msra.mxu0 0.0
  %1722 = vmatprep.subr.mxu0 0.0
  %1723 = vmatpush1.msra.mxu0 0.0
  %1724 = vmatprep.subr.mxu0 0.0
  %1725 = vmatpush1.msra.mxu0 %v1686
  %1726 = vmatprep.subr.mxu0 0.0
  %1727 = vmatpush1.msra.mxu0 %v1685
  %1728 = vmatprep.subr.mxu0 0.0
  %1729 = vmatpush1.msra.mxu0 %v1684
  %1730 = vmatprep.subr.mxu0 0.0
  %1731 = vmatpush1.msra.mxu0 %v1683
  %1732 = vmatprep.subr.mxu0 0.0
  %1733 = vmatpush2.msra.mxu0 0.0
  %1734 = vmatprep.subr.mxu0 0.0
  %1735 = vmatpush2.msra.mxu0 0.0
  %1736 = vmatprep.subr.mxu0 0.0
  %1737 = vmatpush2.msra.mxu0 0.0
  %1738 = vmatprep.subr.mxu0 0.0
  %1739 = vmatpush2.msra.mxu0 0.0
  %1740 = vmatprep.subr.mxu0 0.0
  %1741 = vmatpush2.msra.mxu0 0.0
  %1742 = vmatprep.subr.mxu0 0.0
  %1743 = vmatpush2.msra.mxu0 0.0
  %1744 = vmatprep.subr.mxu0 0.0
  %1745 = vmatpush2.msra.mxu0 0.0
  %1746 = vmatprep.subr.mxu0 0.0
  %1747 = vmatpush2.msra.mxu0 0.0
  %1748 = vmatprep.subr.mxu0 0.0
  %1749 = vmatpush2.msra.mxu0 0.0
  %1750 = vmatprep.subr.mxu0 0.0
  %1751 = vmatpush2.msra.mxu0 0.0
  %1752 = vmatprep.subr.mxu0 0.0
  %1753 = vmatpush2.msra.mxu0 0.0
  %1754 = vmatprep.subr.mxu0 0.0
  %1755 = vmatpush2.msra.mxu0 0.0
  %1756 = vmatprep.subr.mxu0 0.0
  %1757 = vmatpush2.msra.mxu0 0.0
  %1758 = vmatprep.subr.mxu0 0.0
  %1759 = vmatpush2.msra.mxu0 0.0
  %1760 = vmatprep.subr.mxu0 0.0
  %1761 = vmatpush2.msra.mxu0 0.0
  %1762 = vmatprep.subr.mxu0 0.0
  %1763 = vmatpush2.msra.mxu0 0.0
  %1764 = vmatprep.mubr.f32.mxu0 0.0
  %1765 = vmatmul.mubr.f32.gmra.mxu0 %v1695
  %v1766 = vpop.f32.mrf.mxu0
  %v1767 = vadd.f32 %v1692, %v1766
  %v1768 = vpop.f32.mrf.mxu0
  %1769 = vmatprep.mubr.f32.mxu0 0.0
  %1770 = vmatmul.mubr.f32.gmra.mxu0 %v1698
  %v1771 = vpop.f32.mrf.mxu0
  %v1772 = vadd.f32 %v1692, %v1771
  %v1773 = vpop.f32.mrf.mxu0
  %1774 = vdwg.mxu0
  %v1775 = vmul.f32 %v1767, 0.5
  %v1776 = vmul.f32 %v1772, 0.5
  %v1777 = vrcp.pop 1.4142135
  %v1778 = vmul.f32 %v1767, %v1777
  %v1779 = vmul.f32 %v1772, %v1777
  %v1780 = verf.f32.pop %v1778
  %v1781 = verf.f32.pop %v1779
  %v1782 = vadd.f32 %v1780, 1.0
  %v1783 = vadd.f32 %v1781, 1.0
  %v1784 = vmul.f32 %v1775, %v1782
  %v1785 = vmul.f32 %v1776, %v1783
  %v1786 = vld [vmem:[%s12] sm:$0xff]
  %v1787 = vld [vmem:[%s12 + $0x8] sm:$0xff]
  %v1788 = vld [vmem:[%s12 + $0x10] sm:$0xff]
  %v1789 = vld [vmem:[%s12 + $0x18] sm:$0xff]
  %v1790 = vld [vmem:[%s12 + $0x20] sm:$0xff]
  %v1791 = vld [vmem:[%s12 + $0x28] sm:$0xff]
  %v1792 = vld [vmem:[%s12 + $0x30] sm:$0xff]
  %v1793 = vld [vmem:[%s12 + $0x38] sm:$0xff]
  %v1794 = vld [vmem:[%s13] sm:$0x1]
  %v1796 = vlaneseq
  %v1797 = vshrl.u32 %v1796, 7
  %v1798 = vsub.s32 0, %v1797
  %v1799 = vrot.slane %v1794, %v1798
  %vm1801 = vcmask 523264
  %v1803 = vsel %vm1801, %v1784, 0
  %v1806 = vsel %vm1801, %v1785, 0
  %1808 = vmatprep.subr.mxu0 0.0
  %1809 = vmatpush1.msra.mxu0 0.0
  %1810 = vmatprep.subr.mxu0 0.0
  %1811 = vmatpush1.msra.mxu0 0.0
  %1812 = vmatprep.subr.mxu0 0.0
  %1813 = vmatpush1.msra.mxu0 0.0
  %1814 = vmatprep.subr.mxu0 0.0
  %1815 = vmatpush1.msra.mxu0 0.0
  %1816 = vmatprep.subr.mxu0 0.0
  %1817 = vmatpush1.msra.mxu0 0.0
  %1818 = vmatprep.subr.mxu0 0.0
  %1819 = vmatpush1.msra.mxu0 0.0
  %1820 = vmatprep.subr.mxu0 0.0
  %1821 = vmatpush1.msra.mxu0 0.0
  %1822 = vmatprep.subr.mxu0 0.0
  %1823 = vmatpush1.msra.mxu0 0.0
  %1824 = vmatprep.subr.mxu0 0.0
  %1825 = vmatpush1.msra.mxu0 %v1793
  %1826 = vmatprep.subr.mxu0 0.0
  %1827 = vmatpush1.msra.mxu0 %v1792
  %1828 = vmatprep.subr.mxu0 0.0
  %1829 = vmatpush1.msra.mxu0 %v1791
  %1830 = vmatprep.subr.mxu0 0.0
  %1831 = vmatpush1.msra.mxu0 %v1790
  %1832 = vmatprep.subr.mxu0 0.0
  %1833 = vmatpush1.msra.mxu0 %v1789
  %1834 = vmatprep.subr.mxu0 0.0
  %1835 = vmatpush1.msra.mxu0 %v1788
  %1836 = vmatprep.subr.mxu0 0.0
  %1837 = vmatpush1.msra.mxu0 %v1787
  %1838 = vmatprep.subr.mxu0 0.0
  %1839 = vmatpush1.msra.mxu0 %v1786
  %1840 = vmatprep.subr.mxu0 0.0
  %1841 = vmatpush2.msra.mxu0 0.0
  %1842 = vmatprep.subr.mxu0 0.0
  %1843 = vmatpush2.msra.mxu0 0.0
  %1844 = vmatprep.subr.mxu0 0.0
  %1845 = vmatpush2.msra.mxu0 0.0
  %1846 = vmatprep.subr.mxu0 0.0
  %1847 = vmatpush2.msra.mxu0 0.0
  %1848 = vmatprep.subr.mxu0 0.0
  %1849 = vmatpush2.msra.mxu0 0.0
  %1850 = vmatprep.subr.mxu0 0.0
  %1851 = vmatpush2.msra.mxu0 0.0
  %1852 = vmatprep.subr.mxu0 0.0
  %1853 = vmatpush2.msra.mxu0 0.0
  %1854 = vmatprep.subr.mxu0 0.0
  %1855 = vmatpush2.msra.mxu0 0.0
  %1856 = vmatprep.subr.mxu0 0.0
  %1857 = vmatpush2.msra.mxu0 0.0
  %1858 = vmatprep.subr.mxu0 0.0
  %1859 = vmatpush2.msra.mxu0 0.0
  %1860 = vmatprep.subr.mxu0 0.0
  %1861 = vmatpush2.msra.mxu0 0.0
  %1862 = vmatprep.subr.mxu0 0.0
  %1863 = vmatpush2.msra.mxu0 0.0
  %1864 = vmatprep.subr.mxu0 0.0
  %1865 = vmatpush2.msra.mxu0 0.0
  %1866 = vmatprep.subr.mxu0 0.0
  %1867 = vmatpush2.msra.mxu0 0.0
  %1868 = vmatprep.subr.mxu0 0.0
  %1869 = vmatpush2.msra.mxu0 0.0
  %1870 = vmatprep.subr.mxu0 0.0
  %1871 = vmatpush2.msra.mxu0 0.0
  %1872 = vmatprep.mubr.f32.mxu0 0.0
  %1873 = vmatmul.mubr.f32.gmra.mxu0 %v1803
  %v1874 = vpop.f32.mrf.mxu0
  %v1875 = vadd.f32 %v1799, %v1874
  %v1876 = vpop.f32.mrf.mxu0
  %1877 = vmatprep.mubr.f32.mxu0 0.0
  %1878 = vmatmul.mubr.f32.gmra.mxu0 %v1806
  %v1879 = vpop.f32.mrf.mxu0
  %v1880 = vadd.f32 %v1799, %v1879
  %v1881 = vpop.f32.mrf.mxu0
  %1882 = vdwg.mxu0
  %v1883 = vadd.f32 %v1681, %v1875
  %v1884 = vadd.f32 %v1682, %v1880
  %1885 = vst.msk [vmem:[%s14] sm:$0xff] %vm49, %v1883
  %1886 = vst.msk [vmem:[%s14 + $0x8] sm:$0xff] %vm49, %v1884
  // Predicated region
  $region58: #{bert_forward.4} parent=0 // pred_check
    _
  $region59: #{bert_forward.4} parent=0 // pred_check_branch
    %1888 = sbr.rel (0) target = $region61
  $region60: #{bert_forward.4} parent=0 // pred_region
    _
  $region61: #{bert_forward.4} parent=0 // pred_fallthru
    _
  // Predicated region
  $region62: #{bert_forward.4} parent=0 // pred_check
    _
  $region63: #{bert_forward.4} parent=0 // pred_check_branch
    %1890 = sbr.rel (0) target = $region65
  $region64: #{bert_forward.4} parent=0 // pred_region
    _
  $region65: #{bert_forward.4} parent=0 // pred_fallthru
    _

</llo_original>
